<compile_context>
chip_gen: v7x
topology: tpu7x:2x2x1
jax: 0.10.0
libtpu: 0.0.40
codegen_flags: <defaults>
</compile_context>

<pallas_src>
import jax
import jax.numpy as jnp
from jax.experimental import pallas as pl
from jax.experimental.pallas import tpu as pltpu

BN_EPS = 1e-5


# ---------------------------------------------------------------------------
# VMEM budgeting (generation aware: 128 MiB on v5e/v6e, 64 MiB per TC on v7x).
# ---------------------------------------------------------------------------
def _vmem_capacity_bytes():
    try:
        cap = int(getattr(pltpu.get_tpu_info(), "vmem_capacity_bytes"))
        if cap > 0:
            return cap
    except Exception:
        pass
    return 64 * 1024 * 1024            # conservative fallback (v7x per-TC)


def _vmem_limit_bytes():
    cap = _vmem_capacity_bytes()
    return int(min(cap * 3 // 4, 96 * 1024 * 1024))


def _compiler_params(semantics):
    return pltpu.CompilerParams(dimension_semantics=semantics,
                                vmem_limit_bytes=_vmem_limit_bytes())


def _pick_h_tile(ho, wo, c, n_batch):
    """Largest H tile (a divisor of ho, multiple of 8 or == ho) whose
    double-buffered block set (z + skip + out + m, f32) fits the VMEM budget,
    preferring >= 2 total grid steps so both v7x TensorCores stay busy."""
    budget = _vmem_limit_bytes() - 2 * 1024 * 1024
    def fits(th):
        one_buffer_set = 4 * th * wo * (2 * c + 2)     # f32 bytes
        return 2 * one_buffer_set <= budget            # double buffered
    cands = [d for d in range(ho, 0, -1)
             if ho % d == 0 and (d % 8 == 0 or d == ho)]
    first_fit = None
    for th in cands:                                   # descending
        if not fits(th):
            continue
        if first_fit is None:
            first_fit = th
        if n_batch * (ho // th) >= 2:
            return th
    if first_fit is not None:
        return first_fit
    return cands[-1]      # nothing fits the budget: smallest legal tile


# ---------------------------------------------------------------------------
# Pallas kernel 1: channel mean of an NHWC feature map (used once, on x5).
# ---------------------------------------------------------------------------
def _channel_mean_kernel(x_ref, m_ref):
    m_ref[...] = jnp.mean(x_ref[...], axis=-1, keepdims=True)


def channel_mean(x):
    """Per-pixel mean over channels of an NHWC map, returned as lane-dense
    (N, H, W) for the single-channel glue."""
    n, h, w, c = x.shape
    m4 = pl.pallas_call(
        _channel_mean_kernel,
        out_shape=jax.ShapeDtypeStruct((n, h, w, 1), jnp.float32),
        grid=(n,),
        in_specs=[pl.BlockSpec((1, h, w, c), lambda i: (i, 0, 0, 0))],
        out_specs=pl.BlockSpec((1, h, w, 1), lambda i: (i, 0, 0, 0)),
        compiler_params=_compiler_params(("parallel",)),
    )(x)
    return m4[..., 0]


# ---------------------------------------------------------------------------
# Pallas kernel 2: fused decoder stage body
#     out    = z (lane-broadcast 1 -> Cout) + skip
#     m_next = channel mean of out
# z is the already BN+ReLU'd single-channel deconv response.
# ---------------------------------------------------------------------------
def _add_mean_kernel(z_ref, s_ref, o_ref, m_ref):
    y = z_ref[...] + s_ref[...]           # (1, th, W, 1) + (1, th, W, C)
    o_ref[...] = y
    # Channel mean in the broadcast-friendly (W-on-sublanes) layout; its store
    # volume is 1/C of the tile and stays below the vst roofline.
    m_ref[...] = jnp.mean(y, axis=-1, keepdims=True)


def stage_add_and_mean(z, skip):
    """(z broadcast over channels + skip, channel mean of that) in one kernel.

    z:    (N, Ho, Wo) f32, lane-dense single-channel map.
    skip: (N, Ho, Wo, C) f32 NHWC skip connection.
    """
    n, ho, wo, c = skip.shape
    th = _pick_h_tile(ho, wo, c, n)
    grid = (n, ho // th)
    spec = lambda cc: pl.BlockSpec((1, th, wo, cc), lambda i, j: (i, j, 0, 0))
    out, m4 = pl.pallas_call(
        _add_mean_kernel,
        out_shape=(jax.ShapeDtypeStruct((n, ho, wo, c), jnp.float32),
                   jax.ShapeDtypeStruct((n, ho, wo, 1), jnp.float32)),
        grid=grid,
        in_specs=[spec(1), spec(c)],
        out_specs=(spec(c), spec(1)),
        compiler_params=_compiler_params(("parallel", "parallel")),
    )(z[..., None], skip)
    return out, m4[..., 0]


# ---------------------------------------------------------------------------
# Plain-JAX glue on tiny lane-dense single-channel maps (~1/Cout of a feature
# map's bytes): 2x polyphase bilinear upsample + one-pass BN stats + ReLU.
# ---------------------------------------------------------------------------
def upsample2x_bilinear(m):
    """Polyphase form of ConvTranspose2d(k=3, stride=2, padding=1,
    output_padding=1) with the separable bilinear stencil [.5, 1, .5]:
        out[2i,   2j  ] =  m[i, j]
        out[2i,   2j+1] = (m[i, j] + m[i, j+1]) / 2
        out[2i+1, 2j  ] = (m[i, j] + m[i+1, j]) / 2
        out[2i+1, 2j+1] = (m[i, j] + m[i, j+1] + m[i+1, j] + m[i+1, j+1]) / 4
    with out-of-range m treated as zero (reproduces output_padding=1)."""
    n, h, w = m.shape
    mp = jnp.pad(m, ((0, 0), (0, 1), (0, 1)))
    a = mp[:, :h, :w]
    b = mp[:, :h, 1:]
    c = mp[:, 1:, :w]
    d = mp[:, 1:, 1:]
    even = jnp.stack([a, 0.5 * (a + b)], axis=-1).reshape(n, h, 2 * w)
    odd = jnp.stack([0.5 * (a + c), 0.25 * (a + b + c + d)],
                    axis=-1).reshape(n, h, 2 * w)
    return jnp.stack([even, odd], axis=2).reshape(n, 2 * h, 2 * w)


def bn_relu_of_upsample(m):
    """relu(BN_train(bilinear_up2x(m))) on the single-channel map.
    BatchNorm as constructed: gamma=1, beta=0, eps=1e-5, training-mode biased
    batch variance computed in ONE pass (E[u^2] - E[u]^2).  The deconv output
    channels are all identical, so the per-channel statistics equal the
    statistics of this single-channel map."""
    u = upsample2x_bilinear(m)
    mean = jnp.mean(u)
    var = jnp.maximum(jnp.mean(u * u) - mean * mean, 0.0)
    return jnp.maximum((u - mean) * jax.lax.rsqrt(var + BN_EPS), 0.0)


# ---------------------------------------------------------------------------
# Decoder + full forward.
# ---------------------------------------------------------------------------
def _to_nhwc(a):
    return jnp.transpose(a, (0, 2, 3, 1)).astype(jnp.float32)


def decoder_single_channel(f1, f2, f3, f4, f5):
    """Runs conv5/bn5 .. conv9/bn9 (NHWC feature inputs).  Returns
    z9 = relu(bn9(conv9(...))) as a single lane-dense (N, S, S) map; every one
    of conv9's 32 output channels equals this map (rank-1 deconv weights), so
    the 32x channel broadcast is never materialised."""
    m = channel_mean(f5)                        # conv5's effective input
    for skip in (f4, f3, f2, f1):               # stages conv5/bn5 .. conv8/bn8
        z = bn_relu_of_upsample(m)              # rank-1 deconv + BN + ReLU
        _out, m = stage_add_and_mean(z, skip)   # fused skip add + next mean
    return bn_relu_of_upsample(m)               # stage conv9/bn9 (no skip)


def decoder_features_nhwc(f1, f2, f3, f4, f5):
    """Pre-conv10 decoder features relu(bn9(conv9(...))), (N, S, S, 32)."""
    z9 = decoder_single_channel(f1, f2, f3, f4, f5)
    return jnp.broadcast_to(z9[..., None], z9.shape + (32,))


def segresnet_forward(x1, x2, x3, x4, x5, num_classes):
    """SegResNet decoder forward given backbone features x1..x5 (NCHW with
    64/64/128/256/512 channels).  Returns NCHW logits (N, num_classes, S, S).

    conv10 = Conv2d(32, num_classes, k=7, p=3, bias=False) with
    init.constant(weight, 0): its output is identically zero; the zero fill
    below keeps a data dependence on the decoder so jit cannot DCE the Pallas
    kernels.
    TODO(synk): a real 7x7 stride-1 Pallas conv is required here if conv10
                ever carries nonzero (trained) weights."""
    f1, f2, f3, f4, f5 = map(_to_nhwc, (x1, x2, x3, x4, x5))
    z9 = decoder_single_channel(f1, f2, f3, f4, f5)        # (N, S, S)
    n, hh, ww = z9.shape
    logits_hw = z9 * jnp.float32(0.0)                      # == conv10 output
    return jnp.broadcast_to(logits_hw[:, None, :, :], (n, num_classes, hh, ww))


# ---------------------------------------------------------------------------
# Pure-JAX reference of the decoder (literal ConvTranspose2d via lhs-dilated
# conv + training-mode BN + ReLU + skip add), used only for validation.
# ---------------------------------------------------------------------------
def _ref_bilinear_weight_hwio(cin, cout):
    v = jnp.array([0.5, 1.0, 0.5], jnp.float32)
    w2d = jnp.outer(v, v) / float(cin)
    return jnp.broadcast_to(w2d[:, :, None, None], (3, 3, cin, cout))


def _ref_deconv(x, cout):
    w = _ref_bilinear_weight_hwio(x.shape[-1], cout)
    return jax.lax.conv_general_dilated(
        x, w, window_strides=(1, 1), padding=((1, 2), (1, 2)),
        lhs_dilation=(2, 2), rhs_dilation=(1, 1),
        dimension_numbers=("NHWC", "HWIO", "NHWC"),
        precision=jax.lax.Precision.HIGHEST)


def _ref_bn_relu(y):
    mean = jnp.mean(y, axis=(0, 1, 2), keepdims=True)
    var = jnp.mean((y - mean) ** 2, axis=(0, 1, 2), keepdims=True)
    return jnp.maximum((y - mean) * jax.lax.rsqrt(var + BN_EPS), 0.0)


def reference_decoder_nhwc(f1, f2, f3, f4, f5):
    x = _ref_bn_relu(_ref_deconv(f5, 256)) + f4
    x = _ref_bn_relu(_ref_deconv(x, 128)) + f3
    x = _ref_bn_relu(_ref_deconv(x, 64)) + f2
    x = _ref_bn_relu(_ref_deconv(x, 64)) + f1
    return _ref_bn_relu(_ref_deconv(x, 32))


if __name__ == "__main__":
    key = jax.random.PRNGKey(0)
    k1, k2, k3, k4, k5 = jax.random.split(key, 5)
    N, num_classes, S = 2, 5, 64                          # input image S x S
    # Backbone feature pyramid (NCHW), strides 2/4/8/16/32:
    x1 = jax.random.normal(k1, (N, 64, S // 2, S // 2), jnp.float32)
    x2 = jax.random.normal(k2, (N, 64, S // 4, S // 4), jnp.float32)
    x3 = jax.random.normal(k3, (N, 128, S // 8, S // 8), jnp.float32)
    x4 = jax.random.normal(k4, (N, 256, S // 16, S // 16), jnp.float32)
    x5 = jax.random.normal(k5, (N, 512, S // 32, S // 32), jnp.float32)

    # Correctness: Pallas decoder features (pre-conv10) vs. pure-JAX reference.
    fs = tuple(map(_to_nhwc, (x1, x2, x3, x4, x5)))
    feat = jax.block_until_ready(jax.jit(decoder_features_nhwc)(*fs))
    ref = reference_decoder_nhwc(*fs)
    assert feat.shape == (N, S, S, 32), feat.shape
    err = float(jnp.max(jnp.abs(feat - ref)))
    assert err < 1e-3, f"decoder mismatch vs reference: max abs err {err}"

    fwd = jax.jit(segresnet_forward, static_argnums=5)
    out = jax.block_until_ready(fwd(x1, x2, x3, x4, x5, num_classes))
    assert out.shape == (N, num_classes, S, S), out.shape
    assert bool(jnp.all(jnp.isfinite(out)))
    print("KERNEL_OK")
</pallas_src>

<mosaic_0001>
module attributes {stable_mosaic.version = 11 : i64} {
  func.func @_channel_mean_kernel(%arg0: i32, %arg1: memref<1x2x2x512xf32, #tpu.memory_space<vmem>>, %arg2: memref<1x2x2x1xf32, #tpu.memory_space<vmem>>) attributes {dimension_semantics = [#tpu.dimension_semantics<parallel>], iteration_bounds = array<i64: 2>, scalar_prefetch = 0 : i64, scratch_operands = 0 : i64, tpu.core_type = #tpu.core_type<tc>, window_params = [{transform_indices = @transform_0, window_bounds = array<i64: 1, 2, 2, 512>}, {transform_indices = @transform_1, window_bounds = array<i64: 1, 2, 2, 1>}]} {
    %c0 = arith.constant 0 : index
    %c0_0 = arith.constant 0 : index
    %c0_1 = arith.constant 0 : index
    %c0_2 = arith.constant 0 : index
    %0 = vector.load %arg1[%c0, %c0_0, %c0_1, %c0_2] : memref<1x2x2x512xf32, #tpu.memory_space<vmem>>, vector<1x2x2x512xf32>
    %cst = arith.constant dense<0.000000e+00> : vector<1x2x2xf32>
    %1 = vector.multi_reduction <add>, %0, %cst [3] : vector<1x2x2x512xf32> to vector<1x2x2xf32>
    %2 = vector.shape_cast %1 : vector<1x2x2xf32> to vector<1x2x2x1xf32>
    %cst_3 = arith.constant 5.120000e+02 : f32
    %3 = vector.broadcast %cst_3 : f32 to vector<1x2x2x1xf32>
    %4 = arith.divf %2, %3 : vector<1x2x2x1xf32>
    %c0_4 = arith.constant 0 : index
    %c0_5 = arith.constant 0 : index
    %c0_6 = arith.constant 0 : index
    %c0_7 = arith.constant 0 : index
    %5 = vector.load %arg2[%c0_4, %c0_5, %c0_6, %c0_7] : memref<1x2x2x1xf32, #tpu.memory_space<vmem>>, vector<1x2x2x1xf32>
    tpu.vector_store %arg2[%c0_4, %c0_5, %c0_6, %c0_7], %4 {strides = array<i32>} : memref<1x2x2x1xf32, #tpu.memory_space<vmem>>, vector<1x2x2x1xf32>,
    return
  }
  func.func @transform_0(%arg0: i32) -> (i32, i32, i32, i32) {
    %c0_i32 = arith.constant 0 : i32
    %c0_i32_0 = arith.constant 0 : i32
    %c0_i32_1 = arith.constant 0 : i32
    %c0_i32_2 = arith.constant 0 : i32
    return %arg0, %c0_i32, %c0_i32_0, %c0_i32_1 : i32, i32, i32, i32
  }
  func.func @transform_1(%arg0: i32) -> (i32, i32, i32, i32) {
    %c0_i32 = arith.constant 0 : i32
    %c0_i32_0 = arith.constant 0 : i32
    %c0_i32_1 = arith.constant 0 : i32
    %c0_i32_2 = arith.constant 0 : i32
    return %arg0, %c0_i32, %c0_i32_0, %c0_i32_1 : i32, i32, i32, i32
  }
}

module attributes {stable_mosaic.version = 11 : i64} {
  func.func @_add_mean_kernel(%arg0: i32, %arg1: i32, %arg2: memref<1x4x4x1xf32, #tpu.memory_space<vmem>>, %arg3: memref<1x4x4x256xf32, #tpu.memory_space<vmem>>, %arg4: memref<1x4x4x256xf32, #tpu.memory_space<vmem>>, %arg5: memref<1x4x4x1xf32, #tpu.memory_space<vmem>>) attributes {dimension_semantics = [#tpu.dimension_semantics<parallel>, #tpu.dimension_semantics<parallel>], iteration_bounds = array<i64: 2, 1>, scalar_prefetch = 0 : i64, scratch_operands = 0 : i64, tpu.core_type = #tpu.core_type<tc>, window_params = [{transform_indices = @transform_0, window_bounds = array<i64: 1, 4, 4, 1>}, {transform_indices = @transform_1, window_bounds = array<i64: 1, 4, 4, 256>}, {transform_indices = @transform_2, window_bounds = array<i64: 1, 4, 4, 256>}, {transform_indices = @transform_3, window_bounds = array<i64: 1, 4, 4, 1>}]} {
    %c0 = arith.constant 0 : index
    %c0_0 = arith.constant 0 : index
    %c0_1 = arith.constant 0 : index
    %c0_2 = arith.constant 0 : index
    %0 = vector.load %arg2[%c0, %c0_0, %c0_1, %c0_2] : memref<1x4x4x1xf32, #tpu.memory_space<vmem>>, vector<1x4x4x1xf32>
    %c0_3 = arith.constant 0 : index
    %c0_4 = arith.constant 0 : index
    %c0_5 = arith.constant 0 : index
    %c0_6 = arith.constant 0 : index
    %1 = vector.load %arg3[%c0_3, %c0_4, %c0_5, %c0_6] : memref<1x4x4x256xf32, #tpu.memory_space<vmem>>, vector<1x4x4x256xf32>
    %2 = vector.broadcast %0 : vector<1x4x4x1xf32> to vector<1x4x4x256xf32>
    %3 = arith.addf %2, %1 : vector<1x4x4x256xf32>
    %c0_7 = arith.constant 0 : index
    %c0_8 = arith.constant 0 : index
    %c0_9 = arith.constant 0 : index
    %c0_10 = arith.constant 0 : index
    %4 = vector.load %arg4[%c0_7, %c0_8, %c0_9, %c0_10] : memref<1x4x4x256xf32, #tpu.memory_space<vmem>>, vector<1x4x4x256xf32>
    tpu.vector_store %arg4[%c0_7, %c0_8, %c0_9, %c0_10], %3 {strides = array<i32>} : memref<1x4x4x256xf32, #tpu.memory_space<vmem>>, vector<1x4x4x256xf32>,
    %cst = arith.constant dense<0.000000e+00> : vector<1x4x4xf32>
    %5 = vector.multi_reduction <add>, %3, %cst [3] : vector<1x4x4x256xf32> to vector<1x4x4xf32>
    %6 = vector.shape_cast %5 : vector<1x4x4xf32> to vector<1x4x4x1xf32>
    %cst_11 = arith.constant 2.560000e+02 : f32
    %7 = vector.broadcast %cst_11 : f32 to vector<1x4x4x1xf32>
    %8 = arith.divf %6, %7 : vector<1x4x4x1xf32>
    %c0_12 = arith.constant 0 : index
    %c0_13 = arith.constant 0 : index
    %c0_14 = arith.constant 0 : index
    %c0_15 = arith.constant 0 : index
    %9 = vector.load %arg5[%c0_12, %c0_13, %c0_14, %c0_15] : memref<1x4x4x1xf32, #tpu.memory_space<vmem>>, vector<1x4x4x1xf32>
    tpu.vector_store %arg5[%c0_12, %c0_13, %c0_14, %c0_15], %8 {strides = array<i32>} : memref<1x4x4x1xf32, #tpu.memory_space<vmem>>, vector<1x4x4x1xf32>,
    return
  }
  func.func @transform_0(%arg0: i32, %arg1: i32) -> (i32, i32, i32, i32) {
    %c0_i32 = arith.constant 0 : i32
    %c0_i32_0 = arith.constant 0 : i32
    %c0_i32_1 = arith.constant 0 : i32
    return %arg0, %arg1, %c0_i32, %c0_i32_0 : i32, i32, i32, i32
  }
  func.func @transform_1(%arg0: i32, %arg1: i32) -> (i32, i32, i32, i32) {
    %c0_i32 = arith.constant 0 : i32
    %c0_i32_0 = arith.constant 0 : i32
    %c0_i32_1 = arith.constant 0 : i32
    return %arg0, %arg1, %c0_i32, %c0_i32_0 : i32, i32, i32, i32
  }
  func.func @transform_2(%arg0: i32, %arg1: i32) -> (i32, i32, i32, i32) {
    %c0_i32 = arith.constant 0 : i32
    %c0_i32_0 = arith.constant 0 : i32
    %c0_i32_1 = arith.constant 0 : i32
    return %arg0, %arg1, %c0_i32, %c0_i32_0 : i32, i32, i32, i32
  }
  func.func @transform_3(%arg0: i32, %arg1: i32) -> (i32, i32, i32, i32) {
    %c0_i32 = arith.constant 0 : i32
    %c0_i32_0 = arith.constant 0 : i32
    %c0_i32_1 = arith.constant 0 : i32
    return %arg0, %arg1, %c0_i32, %c0_i32_0 : i32, i32, i32, i32
  }
}

module attributes {stable_mosaic.version = 11 : i64} {
  func.func @_add_mean_kernel(%arg0: i32, %arg1: i32, %arg2: memref<1x8x8x1xf32, #tpu.memory_space<vmem>>, %arg3: memref<1x8x8x128xf32, #tpu.memory_space<vmem>>, %arg4: memref<1x8x8x128xf32, #tpu.memory_space<vmem>>, %arg5: memref<1x8x8x1xf32, #tpu.memory_space<vmem>>) attributes {dimension_semantics = [#tpu.dimension_semantics<parallel>, #tpu.dimension_semantics<parallel>], iteration_bounds = array<i64: 2, 1>, scalar_prefetch = 0 : i64, scratch_operands = 0 : i64, tpu.core_type = #tpu.core_type<tc>, window_params = [{transform_indices = @transform_0, window_bounds = array<i64: 1, 8, 8, 1>}, {transform_indices = @transform_1, window_bounds = array<i64: 1, 8, 8, 128>}, {transform_indices = @transform_2, window_bounds = array<i64: 1, 8, 8, 128>}, {transform_indices = @transform_3, window_bounds = array<i64: 1, 8, 8, 1>}]} {
    %c0 = arith.constant 0 : index
    %c0_0 = arith.constant 0 : index
    %c0_1 = arith.constant 0 : index
    %c0_2 = arith.constant 0 : index
    %0 = vector.load %arg2[%c0, %c0_0, %c0_1, %c0_2] : memref<1x8x8x1xf32, #tpu.memory_space<vmem>>, vector<1x8x8x1xf32>
    %c0_3 = arith.constant 0 : index
    %c0_4 = arith.constant 0 : index
    %c0_5 = arith.constant 0 : index
    %c0_6 = arith.constant 0 : index
    %1 = vector.load %arg3[%c0_3, %c0_4, %c0_5, %c0_6] : memref<1x8x8x128xf32, #tpu.memory_space<vmem>>, vector<1x8x8x128xf32>
    %2 = vector.broadcast %0 : vector<1x8x8x1xf32> to vector<1x8x8x128xf32>
    %3 = arith.addf %2, %1 : vector<1x8x8x128xf32>
    %c0_7 = arith.constant 0 : index
    %c0_8 = arith.constant 0 : index
    %c0_9 = arith.constant 0 : index
    %c0_10 = arith.constant 0 : index
    %4 = vector.load %arg4[%c0_7, %c0_8, %c0_9, %c0_10] : memref<1x8x8x128xf32, #tpu.memory_space<vmem>>, vector<1x8x8x128xf32>
    tpu.vector_store %arg4[%c0_7, %c0_8, %c0_9, %c0_10], %3 {strides = array<i32>} : memref<1x8x8x128xf32, #tpu.memory_space<vmem>>, vector<1x8x8x128xf32>,
    %cst = arith.constant dense<0.000000e+00> : vector<1x8x8xf32>
    %5 = vector.multi_reduction <add>, %3, %cst [3] : vector<1x8x8x128xf32> to vector<1x8x8xf32>
    %6 = vector.shape_cast %5 : vector<1x8x8xf32> to vector<1x8x8x1xf32>
    %cst_11 = arith.constant 1.280000e+02 : f32
    %7 = vector.broadcast %cst_11 : f32 to vector<1x8x8x1xf32>
    %8 = arith.divf %6, %7 : vector<1x8x8x1xf32>
    %c0_12 = arith.constant 0 : index
    %c0_13 = arith.constant 0 : index
    %c0_14 = arith.constant 0 : index
    %c0_15 = arith.constant 0 : index
    %9 = vector.load %arg5[%c0_12, %c0_13, %c0_14, %c0_15] : memref<1x8x8x1xf32, #tpu.memory_space<vmem>>, vector<1x8x8x1xf32>
    tpu.vector_store %arg5[%c0_12, %c0_13, %c0_14, %c0_15], %8 {strides = array<i32>} : memref<1x8x8x1xf32, #tpu.memory_space<vmem>>, vector<1x8x8x1xf32>,
    return
  }
  func.func @transform_0(%arg0: i32, %arg1: i32) -> (i32, i32, i32, i32) {
    %c0_i32 = arith.constant 0 : i32
    %c0_i32_0 = arith.constant 0 : i32
    %c0_i32_1 = arith.constant 0 : i32
    return %arg0, %arg1, %c0_i32, %c0_i32_0 : i32, i32, i32, i32
  }
  func.func @transform_1(%arg0: i32, %arg1: i32) -> (i32, i32, i32, i32) {
    %c0_i32 = arith.constant 0 : i32
    %c0_i32_0 = arith.constant 0 : i32
    %c0_i32_1 = arith.constant 0 : i32
    return %arg0, %arg1, %c0_i32, %c0_i32_0 : i32, i32, i32, i32
  }
  func.func @transform_2(%arg0: i32, %arg1: i32) -> (i32, i32, i32, i32) {
    %c0_i32 = arith.constant 0 : i32
    %c0_i32_0 = arith.constant 0 : i32
    %c0_i32_1 = arith.constant 0 : i32
    return %arg0, %arg1, %c0_i32, %c0_i32_0 : i32, i32, i32, i32
  }
  func.func @transform_3(%arg0: i32, %arg1: i32) -> (i32, i32, i32, i32) {
    %c0_i32 = arith.constant 0 : i32
    %c0_i32_0 = arith.constant 0 : i32
    %c0_i32_1 = arith.constant 0 : i32
    return %arg0, %arg1, %c0_i32, %c0_i32_0 : i32, i32, i32, i32
  }
}

module attributes {stable_mosaic.version = 11 : i64} {
  func.func @_add_mean_kernel(%arg0: i32, %arg1: i32, %arg2: memref<1x16x16x1xf32, #tpu.memory_space<vmem>>, %arg3: memref<1x16x16x64xf32, #tpu.memory_space<vmem>>, %arg4: memref<1x16x16x64xf32, #tpu.memory_space<vmem>>, %arg5: memref<1x16x16x1xf32, #tpu.memory_space<vmem>>) attributes {dimension_semantics = [#tpu.dimension_semantics<parallel>, #tpu.dimension_semantics<parallel>], iteration_bounds = array<i64: 2, 1>, scalar_prefetch = 0 : i64, scratch_operands = 0 : i64, tpu.core_type = #tpu.core_type<tc>, window_params = [{transform_indices = @transform_0, window_bounds = array<i64: 1, 16, 16, 1>}, {transform_indices = @transform_1, window_bounds = array<i64: 1, 16, 16, 64>}, {transform_indices = @transform_2, window_bounds = array<i64: 1, 16, 16, 64>}, {transform_indices = @transform_3, window_bounds = array<i64: 1, 16, 16, 1>}]} {
    %c0 = arith.constant 0 : index
    %c0_0 = arith.constant 0 : index
    %c0_1 = arith.constant 0 : index
    %c0_2 = arith.constant 0 : index
    %0 = vector.load %arg2[%c0, %c0_0, %c0_1, %c0_2] : memref<1x16x16x1xf32, #tpu.memory_space<vmem>>, vector<1x16x16x1xf32>
    %c0_3 = arith.constant 0 : index
    %c0_4 = arith.constant 0 : index
    %c0_5 = arith.constant 0 : index
    %c0_6 = arith.constant 0 : index
    %1 = vector.load %arg3[%c0_3, %c0_4, %c0_5, %c0_6] : memref<1x16x16x64xf32, #tpu.memory_space<vmem>>, vector<1x16x16x64xf32>
    %2 = vector.broadcast %0 : vector<1x16x16x1xf32> to vector<1x16x16x64xf32>
    %3 = arith.addf %2, %1 : vector<1x16x16x64xf32>
    %c0_7 = arith.constant 0 : index
    %c0_8 = arith.constant 0 : index
    %c0_9 = arith.constant 0 : index
    %c0_10 = arith.constant 0 : index
    %4 = vector.load %arg4[%c0_7, %c0_8, %c0_9, %c0_10] : memref<1x16x16x64xf32, #tpu.memory_space<vmem>>, vector<1x16x16x64xf32>
    tpu.vector_store %arg4[%c0_7, %c0_8, %c0_9, %c0_10], %3 {strides = array<i32>} : memref<1x16x16x64xf32, #tpu.memory_space<vmem>>, vector<1x16x16x64xf32>,
    %cst = arith.constant dense<0.000000e+00> : vector<1x16x16xf32>
    %5 = vector.multi_reduction <add>, %3, %cst [3] : vector<1x16x16x64xf32> to vector<1x16x16xf32>
    %6 = vector.shape_cast %5 : vector<1x16x16xf32> to vector<1x16x16x1xf32>
    %cst_11 = arith.constant 6.400000e+01 : f32
    %7 = vector.broadcast %cst_11 : f32 to vector<1x16x16x1xf32>
    %8 = arith.divf %6, %7 : vector<1x16x16x1xf32>
    %c0_12 = arith.constant 0 : index
    %c0_13 = arith.constant 0 : index
    %c0_14 = arith.constant 0 : index
    %c0_15 = arith.constant 0 : index
    %9 = vector.load %arg5[%c0_12, %c0_13, %c0_14, %c0_15] : memref<1x16x16x1xf32, #tpu.memory_space<vmem>>, vector<1x16x16x1xf32>
    tpu.vector_store %arg5[%c0_12, %c0_13, %c0_14, %c0_15], %8 {strides = array<i32>} : memref<1x16x16x1xf32, #tpu.memory_space<vmem>>, vector<1x16x16x1xf32>,
    return
  }
  func.func @transform_0(%arg0: i32, %arg1: i32) -> (i32, i32, i32, i32) {
    %c0_i32 = arith.constant 0 : i32
    %c0_i32_0 = arith.constant 0 : i32
    %c0_i32_1 = arith.constant 0 : i32
    return %arg0, %arg1, %c0_i32, %c0_i32_0 : i32, i32, i32, i32
  }
  func.func @transform_1(%arg0: i32, %arg1: i32) -> (i32, i32, i32, i32) {
    %c0_i32 = arith.constant 0 : i32
    %c0_i32_0 = arith.constant 0 : i32
    %c0_i32_1 = arith.constant 0 : i32
    return %arg0, %arg1, %c0_i32, %c0_i32_0 : i32, i32, i32, i32
  }
  func.func @transform_2(%arg0: i32, %arg1: i32) -> (i32, i32, i32, i32) {
    %c0_i32 = arith.constant 0 : i32
    %c0_i32_0 = arith.constant 0 : i32
    %c0_i32_1 = arith.constant 0 : i32
    return %arg0, %arg1, %c0_i32, %c0_i32_0 : i32, i32, i32, i32
  }
  func.func @transform_3(%arg0: i32, %arg1: i32) -> (i32, i32, i32, i32) {
    %c0_i32 = arith.constant 0 : i32
    %c0_i32_0 = arith.constant 0 : i32
    %c0_i32_1 = arith.constant 0 : i32
    return %arg0, %arg1, %c0_i32, %c0_i32_0 : i32, i32, i32, i32
  }
}

module attributes {stable_mosaic.version = 11 : i64} {
  func.func @_add_mean_kernel(%arg0: i32, %arg1: i32, %arg2: memref<1x32x32x1xf32, #tpu.memory_space<vmem>>, %arg3: memref<1x32x32x64xf32, #tpu.memory_space<vmem>>, %arg4: memref<1x32x32x64xf32, #tpu.memory_space<vmem>>, %arg5: memref<1x32x32x1xf32, #tpu.memory_space<vmem>>) attributes {dimension_semantics = [#tpu.dimension_semantics<parallel>, #tpu.dimension_semantics<parallel>], iteration_bounds = array<i64: 2, 1>, scalar_prefetch = 0 : i64, scratch_operands = 0 : i64, tpu.core_type = #tpu.core_type<tc>, window_params = [{transform_indices = @transform_0, window_bounds = array<i64: 1, 32, 32, 1>}, {transform_indices = @transform_1, window_bounds = array<i64: 1, 32, 32, 64>}, {transform_indices = @transform_2, window_bounds = array<i64: 1, 32, 32, 64>}, {transform_indices = @transform_3, window_bounds = array<i64: 1, 32, 32, 1>}]} {
    %c0 = arith.constant 0 : index
    %c0_0 = arith.constant 0 : index
    %c0_1 = arith.constant 0 : index
    %c0_2 = arith.constant 0 : index
    %0 = vector.load %arg2[%c0, %c0_0, %c0_1, %c0_2] : memref<1x32x32x1xf32, #tpu.memory_space<vmem>>, vector<1x32x32x1xf32>
    %c0_3 = arith.constant 0 : index
    %c0_4 = arith.constant 0 : index
    %c0_5 = arith.constant 0 : index
    %c0_6 = arith.constant 0 : index
    %1 = vector.load %arg3[%c0_3, %c0_4, %c0_5, %c0_6] : memref<1x32x32x64xf32, #tpu.memory_space<vmem>>, vector<1x32x32x64xf32>
    %2 = vector.broadcast %0 : vector<1x32x32x1xf32> to vector<1x32x32x64xf32>
    %3 = arith.addf %2, %1 : vector<1x32x32x64xf32>
    %c0_7 = arith.constant 0 : index
    %c0_8 = arith.constant 0 : index
    %c0_9 = arith.constant 0 : index
    %c0_10 = arith.constant 0 : index
    %4 = vector.load %arg4[%c0_7, %c0_8, %c0_9, %c0_10] : memref<1x32x32x64xf32, #tpu.memory_space<vmem>>, vector<1x32x32x64xf32>
    tpu.vector_store %arg4[%c0_7, %c0_8, %c0_9, %c0_10], %3 {strides = array<i32>} : memref<1x32x32x64xf32, #tpu.memory_space<vmem>>, vector<1x32x32x64xf32>,
    %cst = arith.constant dense<0.000000e+00> : vector<1x32x32xf32>
    %5 = vector.multi_reduction <add>, %3, %cst [3] : vector<1x32x32x64xf32> to vector<1x32x32xf32>
    %6 = vector.shape_cast %5 : vector<1x32x32xf32> to vector<1x32x32x1xf32>
    %cst_11 = arith.constant 6.400000e+01 : f32
    %7 = vector.broadcast %cst_11 : f32 to vector<1x32x32x1xf32>
    %8 = arith.divf %6, %7 : vector<1x32x32x1xf32>
    %c0_12 = arith.constant 0 : index
    %c0_13 = arith.constant 0 : index
    %c0_14 = arith.constant 0 : index
    %c0_15 = arith.constant 0 : index
    %9 = vector.load %arg5[%c0_12, %c0_13, %c0_14, %c0_15] : memref<1x32x32x1xf32, #tpu.memory_space<vmem>>, vector<1x32x32x1xf32>
    tpu.vector_store %arg5[%c0_12, %c0_13, %c0_14, %c0_15], %8 {strides = array<i32>} : memref<1x32x32x1xf32, #tpu.memory_space<vmem>>, vector<1x32x32x1xf32>,
    return
  }
  func.func @transform_0(%arg0: i32, %arg1: i32) -> (i32, i32, i32, i32) {
    %c0_i32 = arith.constant 0 : i32
    %c0_i32_0 = arith.constant 0 : i32
    %c0_i32_1 = arith.constant 0 : i32
    return %arg0, %arg1, %c0_i32, %c0_i32_0 : i32, i32, i32, i32
  }
  func.func @transform_1(%arg0: i32, %arg1: i32) -> (i32, i32, i32, i32) {
    %c0_i32 = arith.constant 0 : i32
    %c0_i32_0 = arith.constant 0 : i32
    %c0_i32_1 = arith.constant 0 : i32
    return %arg0, %arg1, %c0_i32, %c0_i32_0 : i32, i32, i32, i32
  }
  func.func @transform_2(%arg0: i32, %arg1: i32) -> (i32, i32, i32, i32) {
    %c0_i32 = arith.constant 0 : i32
    %c0_i32_0 = arith.constant 0 : i32
    %c0_i32_1 = arith.constant 0 : i32
    return %arg0, %arg1, %c0_i32, %c0_i32_0 : i32, i32, i32, i32
  }
  func.func @transform_3(%arg0: i32, %arg1: i32) -> (i32, i32, i32, i32) {
    %c0_i32 = arith.constant 0 : i32
    %c0_i32_0 = arith.constant 0 : i32
    %c0_i32_1 = arith.constant 0 : i32
    return %arg0, %arg1, %c0_i32, %c0_i32_0 : i32, i32, i32, i32
  }
}

</mosaic_0001>

<llo_original>
// kernel: decoder_features_nhwc.5
$region0: #{decoder_features_nhwc.5}
  #allocation0 [shape = 'u32[]', space=smem, size = 0x4, offset = 0x4, fixed_abs, tag = 'smem constant byte address 0x4 - core index']
  #allocation1 [shape = 'u32[144,128]{1,0:T(1,128)}', space=vmem, size = 0x12000, scoped, tag = 'internal scratch']
  %s0 = inlined_call_operand.hbm [shape: f32[2,2,2,512], index: 0, kind: input, shape index: {}]
  %s1 = inlined_call_operand.vmem [shape: f32[2,2,2,1], index: 1, kind: output, shape index: {}]
  %s2 = sld [smem:[#allocation0]]
  $region41: #{decoder_features_nhwc.5} parent=0
    _
  %s4 = ssub.s32 1, %s2
  %s5 = scalar_select 0, %s4, %s2
  $region1: #{decoder_features_nhwc.5} parent=0
    #allocation2 [shape = 'u8[16384]{0}', space=vmem, size = 0x4000, scoped, tag = 'input window, operand 0']
    #allocation3 [shape = 's32[2]{0}', space=sflag, size = 0x8, scoped, tag = 'scoped memory for decoder_features_nhwc.5']
    %6 = vsyncpa [#allocation3], 0
    %s7 = scalar_lea.sflag [#allocation3], 1
    %8 = vsyncpa %s7, 0
    loop: start=0, step=1, limit=4
    $region2: #{decoder_features_nhwc.5} parent=1 // loop_pre_header
      _
    $region3: #{decoder_features_nhwc.5} parent=1 // loop_header
      %s10 = sphi 0, %s14
      %p11 = scmp.ge.s32.totalorder %s10, 4
      %s20 = sphi 0, %s22
      %s23 = sphi 0, %s20
      %s24 = sphi 0, %s23
      %s40 = sphi 0, %s24
      %s46 = sphi 0, %s48
      %s49 = sphi 0, %s46
      %s50 = sphi 0, %s49
      %s66 = sphi 0, %s50
    $region4: #{decoder_features_nhwc.5} parent=1 // loop_header_branch
      %13 = sbr.rel (%p11) target = $region8
    $region5: #{decoder_features_nhwc.5} parent=1 // loop_body
      %s15 = ssub.s32 %s10, 1
      %s16 = ssub.s32 %s10, 2
      %s17 = sadd.s32 %s10, 1
      %s18 = ssub.s32 %s10, %s17
      %p19 = scmp.eq.s32.totalorder %s18, 0
      %s21 = sadd.s32 %s20, 1
      %s22 = scalar_select %p19, %s20, %s21
      %p25 = pneg %p19
      %p26 = scmp.eq.s32.totalorder %s10, 1
      %p27 = por %p25, %p26
      %p28 = scmp.ne.s32.totalorder %s20, %s23
      %p29 = scmp.eq.s32.totalorder %s10, 0
      %p30 = por %p28, %p29
      %p31 = scmp.ne.s32.totalorder %s20, %s23
      %p32 = scmp.eq.s32.totalorder %s15, 1
      %p33 = por %p31, %p32
      %p34 = scmp.ne.s32.totalorder %s23, %s24
      %p35 = scmp.eq.s32.totalorder %s15, 0
      %p36 = por %p34, %p35
      %p37 = scmp.ne.s32.totalorder %s23, %s24
      %p38 = scmp.eq.s32.totalorder %s16, 1
      %p39 = por %p37, %p38
      %p41 = scmp.ne.s32.totalorder %s24, %s40
      %p42 = scmp.eq.s32.totalorder %s16, 0
      %p43 = por %p41, %p42
      %s44 = ssub.s32 %s10, %s17
      %p45 = scmp.eq.s32.totalorder %s44, 0
      %s47 = sadd.s32 %s46, 1
      %s48 = scalar_select %p45, %s46, %s47
      %p51 = pneg %p45
      %p52 = scmp.eq.s32.totalorder %s10, 1
      %p53 = por %p51, %p52
      %p54 = scmp.ne.s32.totalorder %s46, %s49
      %p55 = scmp.eq.s32.totalorder %s10, 0
      %p56 = por %p54, %p55
      %p57 = scmp.ne.s32.totalorder %s46, %s49
      %p58 = scmp.eq.s32.totalorder %s15, 1
      %p59 = por %p57, %p58
      %p60 = scmp.ne.s32.totalorder %s49, %s50
      %p61 = scmp.eq.s32.totalorder %s15, 0
      %p62 = por %p60, %p61
      %p63 = scmp.ne.s32.totalorder %s49, %s50
      %p64 = scmp.eq.s32.totalorder %s16, 1
      %p65 = por %p63, %p64
      %p67 = scmp.ne.s32.totalorder %s50, %s66
      %p68 = scmp.eq.s32.totalorder %s16, 0
      %p69 = por %p67, %p68
      %p70 = scmp.le.s32.totalorder 1, %s10
      %p71 = scmp.lt.s32.totalorder %s10, 3
      %p72 = pnand %p70, %p71
      %p73 = pneg %p72
      // Predicated region
      $region9: #{decoder_features_nhwc.5} parent=5 // pred_check
        _
      $region10: #{decoder_features_nhwc.5} parent=5 // pred_check_branch
        %75 = sbr.rel (%p72) target = $region12
      $region11: #{decoder_features_nhwc.5} parent=5 // pred_region
        %s76 = ssub.s32 %s10, 1
      $region12: #{decoder_features_nhwc.5} parent=5 // pred_fallthru
        _
      %p77 = scmp.lt.s32.totalorder %s10, 2
      // Predicated region
      $region13: #{decoder_features_nhwc.5} parent=5 // pred_check
        %p78 = pneg %p77
      $region14: #{decoder_features_nhwc.5} parent=5 // pred_check_branch
        %80 = sbr.rel (%p78) target = $region16
      $region15: #{decoder_features_nhwc.5} parent=5 // pred_region
        // Predicated region
        $region17: #{decoder_features_nhwc.5} parent=15 // pred_check
          %p81 = pneg %p30
        $region18: #{decoder_features_nhwc.5} parent=15 // pred_check_branch
          %83 = sbr.rel (%p81) target = $region20
        $region19: #{decoder_features_nhwc.5} parent=15 // pred_region
          %s84 = sand.u32 %s20, 1
          %s85 = scalar_lea.sflag [#allocation3], %s84
          %s86 = sand.u32 %s20, 1
          %s87 = smul.addr %s86, 16
          %s88 = scalar_lea.vmem [#allocation2], %s87
          %s90 = ssub.s32 256, 256
          %91 = vsyncadd %s85, %s90
          %s92 = smul.addr %s10, 8
          %s93 = smul.addr %s92, 32
          %s94 = scalar_lea.hbm %s0, %s93
          %s95 = sshll.u32 %s88, 4
          %s96 = int_to_ptr.vmem [resolvable:$true] %s95
          %101 = dma.hbm_to_vmem [thread:$0]  %s94, 256, %s96, %s85, 128, 128, 8
        $region20: #{decoder_features_nhwc.5} parent=15 // pred_fallthru
          _
      $region16: #{decoder_features_nhwc.5} parent=5 // pred_fallthru
        _
      %p102 = scmp.le.s32.totalorder 1, %s10
      %p103 = scmp.lt.s32.totalorder %s10, 3
      %p104 = pnand %p102, %p103
      %p105 = pneg %p104
      // Predicated region
      $region21: #{decoder_features_nhwc.5} parent=5 // pred_check
        _
      $region22: #{decoder_features_nhwc.5} parent=5 // pred_check_branch
        %107 = sbr.rel (%p104) target = $region24
      $region23: #{decoder_features_nhwc.5} parent=5 // pred_region
        %s108 = ssub.s32 %s10, 1
        %s109 = sand.u32 %s23, 1
        %s110 = scalar_lea.sflag [#allocation3], %s109
        %s111 = sand.u32 %s23, 1
        %s112 = smul.addr %s111, 16
        %s113 = scalar_lea.vmem [#allocation2], %s112
        // Predicated region
        $region25: #{decoder_features_nhwc.5} parent=23 // pred_check
          %p114 = pneg %p36
        $region26: #{decoder_features_nhwc.5} parent=23 // pred_check_branch
          %116 = sbr.rel (%p114) target = $region28
        $region27: #{decoder_features_nhwc.5} parent=23 // pred_region
          %117 = dma.done %s110, 256
        $region28: #{decoder_features_nhwc.5} parent=23 // pred_fallthru
          _
        %s118 = sand.u32 %s23, 1
        %s119 = scalar_lea.sflag [#allocation3], %s118
        %s120 = sand.u32 %s23, 1
        %s121 = smul.addr %s120, 16
        %s122 = scalar_lea.vmem [#allocation2], %s121
        %p123 = pneg %p36
        %p124 = pneg %p33
        %p125 = pneg %p62
        %p126 = pneg %p59
        %p127 = scmp.lt.s32.totalorder %s15, 1
        %s128 = scalar_select %p127, %s15, 1
        %s129 = smul.addr %s128, 2
        %s130 = smul.addr %s129, 2
        %s131 = scalar_lea.vmem %s1, %s130
        %p132 = scmp.lt.s32.totalorder %s15, 1
        %s133 = scalar_select %p132, %s15, 1
        %s134 = smul.addr %s133, 2
        %s135 = smul.addr %s134, 2
        %s136 = scalar_lea.vmem %s1, %s135
        %v137 = vld [vmem:[%s113] sm:$0xff]
        %v138 = vld [vmem:[%s113 + $0x8] sm:$0xff]
        %v141 = vcombine.high %v137, %v137
        %v143 = vunpack.c.l.s4 1983009808
        %v144 = vunpack.c.0.s8 %v143
        %v145 = vlaneseq
        %v146 = vshrl.u32 %v145, 7
        %v147 = vsub.s32 %v144, %v146
        %v148 = vrot.slane %v137, %v147
        %v150 = vunpack.c.l.s4 1983009808
        %v151 = vunpack.c.0.s8 %v150
        %v152 = vlaneseq
        %v153 = vshrl.u32 %v152, 7
        %v154 = vsub.s32 %v151, %v153
        %v155 = vrot.slane %v141, %v154
        %v156 = vcombine.high %v148, %v148
        %v157 = vcombine.high %v155, %v155
        %v158 = vcombine.high %v138, %v138
        %v160 = vunpack.c.l.s4 1983009808
        %v161 = vunpack.c.0.s8 %v160
        %v162 = vlaneseq
        %v163 = vshrl.u32 %v162, 7
        %v164 = vsub.s32 %v161, %v163
        %v165 = vrot.slane %v138, %v164
        %v167 = vunpack.c.l.s4 1983009808
        %v168 = vunpack.c.0.s8 %v167
        %v169 = vlaneseq
        %v170 = vshrl.u32 %v169, 7
        %v171 = vsub.s32 %v168, %v170
        %v172 = vrot.slane %v158, %v171
        %v173 = vcombine.high %v165, %v165
        %v174 = vcombine.high %v172, %v172
        %vm183 = vcmask 1041408
        %v184 = vsel %vm183, %v148, 0.0
        %v185 = vsel %vm183, %v156, 0.0
        %v186 = vadd.f32 %v184, %v185
        %v187 = vsel %vm183, %v155, 0.0
        %v188 = vadd.f32 %v186, %v187
        %v189 = vsel %vm183, %v157, 0.0
        %v190 = vadd.f32 %v188, %v189
        %191 = vadd.xlane.f32.xlu0 %v190
        %v192 = vpop.xlane.xlu0 %191
        %v193 = vsel %vm183, %v165, 0.0
        %v194 = vsel %vm183, %v173, 0.0
        %v195 = vadd.f32 %v193, %v194
        %v196 = vsel %vm183, %v172, 0.0
        %v197 = vadd.f32 %v195, %v196
        %v198 = vsel %vm183, %v174, 0.0
        %v199 = vadd.f32 %v197, %v198
        %200 = vadd.xlane.f32.xlu0 %v199
        %v201 = vpop.xlane.xlu0 %200
        %v202 = vrcp.pop 512.0
        %v203 = vmul.f32 %v192, %v202
        %v204 = vmul.f32 %v201, %v202
        %vm205 = vcmask 1024
        %206 = vst.msk [vmem:[%s136] sm:$0x3] %vm205, %v203
        %207 = vst.msk [vmem:[%s136 + $0x2] sm:$0x3] %vm205, %v204
        %p208 = scmp.lt.s32.totalorder %s15, 1
        %s209 = scalar_select %p208, %s15, 1
        %s210 = smul.addr %s209, 2
        %s211 = smul.addr %s210, 2
        %s212 = scalar_lea.vmem %s1, %s211
        // Predicated region
        $region29: #{decoder_features_nhwc.5} parent=23 // pred_check
          %p213 = pneg %p59
        $region30: #{decoder_features_nhwc.5} parent=23 // pred_check_branch
          %215 = sbr.rel (%p213) target = $region32
        $region31: #{decoder_features_nhwc.5} parent=23 // pred_region
          _
        $region32: #{decoder_features_nhwc.5} parent=23 // pred_fallthru
          _
      $region24: #{decoder_features_nhwc.5} parent=5 // pred_fallthru
        _
      %p216 = scmp.le.s32.totalorder 2, %s10
      // Predicated region
      $region33: #{decoder_features_nhwc.5} parent=5 // pred_check
        %p217 = pneg %p216
      $region34: #{decoder_features_nhwc.5} parent=5 // pred_check_branch
        %219 = sbr.rel (%p217) target = $region36
      $region35: #{decoder_features_nhwc.5} parent=5 // pred_region
        %s220 = ssub.s32 %s10, 2
        // Predicated region
        $region37: #{decoder_features_nhwc.5} parent=35 // pred_check
          %p221 = pneg %p65
        $region38: #{decoder_features_nhwc.5} parent=35 // pred_check_branch
          %223 = sbr.rel (%p221) target = $region40
        $region39: #{decoder_features_nhwc.5} parent=35 // pred_region
          %p224 = scmp.lt.s32.totalorder %s16, 1
          %s225 = scalar_select %p224, %s16, 1
          %s226 = smul.addr %s225, 2
          %s227 = smul.addr %s226, 2
          %s228 = scalar_lea.vmem %s1, %s227
        $region40: #{decoder_features_nhwc.5} parent=35 // pred_fallthru
          _
      $region36: #{decoder_features_nhwc.5} parent=5 // pred_fallthru
        _
    $region6: #{decoder_features_nhwc.5} parent=1 // loop_footer
      %s14 = sadd.s32 1, %s10
    $region7: #{decoder_features_nhwc.5} parent=1 // loop_footer_branch
      %9 = sbr.rel target = $region3
    $region8: #{decoder_features_nhwc.5} parent=1 // loop_exit
      _
    %229 = vsyncpa [#allocation3], 1
    %s230 = scalar_lea.sflag [#allocation3], 1
    %231 = vsyncpa %s230, 1

// kernel: decoder_features_nhwc.6
$region0: #{decoder_features_nhwc.6}
  #allocation0 [shape = 'u32[]', space=smem, size = 0x4, offset = 0x4, fixed_abs, tag = 'smem constant byte address 0x4 - core index']
  #allocation1 [shape = 'u32[144,128]{1,0:T(1,128)}', space=vmem, size = 0x12000, scoped, tag = 'internal scratch']
  %s0 = inlined_call_operand.vmem [shape: f32[2,4,4,1], index: 0, kind: input, shape index: {}]
  %s1 = inlined_call_operand.hbm [shape: f32[2,4,4,256], index: 1, kind: input, shape index: {}]
  %s2 = inlined_call_operand.hbm [shape: f32[2,4,4,256], index: 2, kind: output, shape index: {0}]
  %s3 = inlined_call_operand.vmem [shape: f32[2,4,4,1], index: 3, kind: output, shape index: {1}]
  %4 = xla_tuple %s2, %s3
  %s5 = sld [smem:[#allocation0]]
  $region53: #{decoder_features_nhwc.6} parent=0
    _
  %s7 = ssub.s32 1, %s5
  %s8 = scalar_select 0, %s7, %s5
  $region1: #{decoder_features_nhwc.6} parent=0
    #allocation2 [shape = 'u8[32768]{0}', space=vmem, size = 0x8000, scoped, tag = 'input window, operand 1']
    #allocation3 [shape = 's32[2]{0}', space=sflag, size = 0x8, scoped, tag = 'scoped memory for decoder_features_nhwc.6']
    #allocation4 [shape = 's32[2]{0}', space=sflag, size = 0x8, scoped, tag = 'scoped memory for decoder_features_nhwc.6']
    #allocation5 [shape = 'u8[32768]{0}', space=vmem, size = 0x8000, scoped, tag = 'output window, operand 0']
    %9 = vsyncpa [#allocation3], 0
    %s10 = scalar_lea.sflag [#allocation3], 1
    %11 = vsyncpa %s10, 0
    %12 = vsyncpa [#allocation4], 0
    %s13 = scalar_lea.sflag [#allocation4], 1
    %14 = vsyncpa %s13, 0
    loop: start=0, step=1, limit=4
    $region2: #{decoder_features_nhwc.6} parent=1 // loop_pre_header
      _
    $region3: #{decoder_features_nhwc.6} parent=1 // loop_header
      %s16 = sphi 0, %s20
      %p17 = scmp.ge.s32.totalorder %s16, 4
      %s23 = sphi 0, %s35
      %s24 = sphi 0, %s31
      %s25 = sphi 0, %s23
      %s26 = sphi 0, %s24
      %s27 = sphi 0, %s25
      %s28 = sphi 0, %s26
      %s40 = sphi 0, %s42
      %s43 = sphi 0, %s40
      %s44 = sphi 0, %s43
      %s60 = sphi 0, %s44
      %s68 = sphi 0, %s70
      %s71 = sphi 0, %s68
      %s72 = sphi 0, %s71
      %s88 = sphi 0, %s72
      %s96 = sphi 0, %s98
      %s99 = sphi 0, %s96
      %s100 = sphi 0, %s99
      %s116 = sphi 0, %s100
      %s124 = sphi 0, %s126
      %s127 = sphi 0, %s124
      %s128 = sphi 0, %s127
      %s144 = sphi 0, %s128
    $region4: #{decoder_features_nhwc.6} parent=1 // loop_header_branch
      %19 = sbr.rel (%p17) target = $region8
    $region5: #{decoder_features_nhwc.6} parent=1 // loop_body
      %s21 = ssub.s32 %s16, 1
      %s22 = ssub.s32 %s16, 2
      %s29 = sadd.s32 1, %s24
      %p30 = scmp.ge.s32.totalorder %s29, 1
      %s31 = scalar_select %p30, 0, %s29
      %s32 = sadd.s32 1, %s23
      %s33 = scalar_select %p30, %s32, %s23
      %p34 = scmp.ge.s32.totalorder %s33, 2
      %s35 = scalar_select %p34, 0, %s33
      %s36 = ssub.s32 %s23, %s35
      %s37 = ssub.s32 %s24, %s31
      %s38 = sor.u32 %s36, %s37
      %p39 = scmp.eq.s32.totalorder %s38, 0
      %s41 = sadd.s32 %s40, 1
      %s42 = scalar_select %p39, %s40, %s41
      %p45 = pneg %p39
      %p46 = scmp.eq.s32.totalorder %s16, 1
      %p47 = por %p45, %p46
      %p48 = scmp.ne.s32.totalorder %s40, %s43
      %p49 = scmp.eq.s32.totalorder %s16, 0
      %p50 = por %p48, %p49
      %p51 = scmp.ne.s32.totalorder %s40, %s43
      %p52 = scmp.eq.s32.totalorder %s21, 1
      %p53 = por %p51, %p52
      %p54 = scmp.ne.s32.totalorder %s43, %s44
      %p55 = scmp.eq.s32.totalorder %s21, 0
      %p56 = por %p54, %p55
      %p57 = scmp.ne.s32.totalorder %s43, %s44
      %p58 = scmp.eq.s32.totalorder %s22, 1
      %p59 = por %p57, %p58
      %p61 = scmp.ne.s32.totalorder %s44, %s60
      %p62 = scmp.eq.s32.totalorder %s22, 0
      %p63 = por %p61, %p62
      %s64 = ssub.s32 %s23, %s35
      %s65 = ssub.s32 %s24, %s31
      %s66 = sor.u32 %s64, %s65
      %p67 = scmp.eq.s32.totalorder %s66, 0
      %s69 = sadd.s32 %s68, 1
      %s70 = scalar_select %p67, %s68, %s69
      %p73 = pneg %p67
      %p74 = scmp.eq.s32.totalorder %s16, 1
      %p75 = por %p73, %p74
      %p76 = scmp.ne.s32.totalorder %s68, %s71
      %p77 = scmp.eq.s32.totalorder %s16, 0
      %p78 = por %p76, %p77
      %p79 = scmp.ne.s32.totalorder %s68, %s71
      %p80 = scmp.eq.s32.totalorder %s21, 1
      %p81 = por %p79, %p80
      %p82 = scmp.ne.s32.totalorder %s71, %s72
      %p83 = scmp.eq.s32.totalorder %s21, 0
      %p84 = por %p82, %p83
      %p85 = scmp.ne.s32.totalorder %s71, %s72
      %p86 = scmp.eq.s32.totalorder %s22, 1
      %p87 = por %p85, %p86
      %p89 = scmp.ne.s32.totalorder %s72, %s88
      %p90 = scmp.eq.s32.totalorder %s22, 0
      %p91 = por %p89, %p90
      %s92 = ssub.s32 %s23, %s35
      %s93 = ssub.s32 %s24, %s31
      %s94 = sor.u32 %s92, %s93
      %p95 = scmp.eq.s32.totalorder %s94, 0
      %s97 = sadd.s32 %s96, 1
      %s98 = scalar_select %p95, %s96, %s97
      %p101 = pneg %p95
      %p102 = scmp.eq.s32.totalorder %s16, 1
      %p103 = por %p101, %p102
      %p104 = scmp.ne.s32.totalorder %s96, %s99
      %p105 = scmp.eq.s32.totalorder %s16, 0
      %p106 = por %p104, %p105
      %p107 = scmp.ne.s32.totalorder %s96, %s99
      %p108 = scmp.eq.s32.totalorder %s21, 1
      %p109 = por %p107, %p108
      %p110 = scmp.ne.s32.totalorder %s99, %s100
      %p111 = scmp.eq.s32.totalorder %s21, 0
      %p112 = por %p110, %p111
      %p113 = scmp.ne.s32.totalorder %s99, %s100
      %p114 = scmp.eq.s32.totalorder %s22, 1
      %p115 = por %p113, %p114
      %p117 = scmp.ne.s32.totalorder %s100, %s116
      %p118 = scmp.eq.s32.totalorder %s22, 0
      %p119 = por %p117, %p118
      %s120 = ssub.s32 %s23, %s35
      %s121 = ssub.s32 %s24, %s31
      %s122 = sor.u32 %s120, %s121
      %p123 = scmp.eq.s32.totalorder %s122, 0
      %s125 = sadd.s32 %s124, 1
      %s126 = scalar_select %p123, %s124, %s125
      %p129 = pneg %p123
      %p130 = scmp.eq.s32.totalorder %s16, 1
      %p131 = por %p129, %p130
      %p132 = scmp.ne.s32.totalorder %s124, %s127
      %p133 = scmp.eq.s32.totalorder %s16, 0
      %p134 = por %p132, %p133
      %p135 = scmp.ne.s32.totalorder %s124, %s127
      %p136 = scmp.eq.s32.totalorder %s21, 1
      %p137 = por %p135, %p136
      %p138 = scmp.ne.s32.totalorder %s127, %s128
      %p139 = scmp.eq.s32.totalorder %s21, 0
      %p140 = por %p138, %p139
      %p141 = scmp.ne.s32.totalorder %s127, %s128
      %p142 = scmp.eq.s32.totalorder %s22, 1
      %p143 = por %p141, %p142
      %p145 = scmp.ne.s32.totalorder %s128, %s144
      %p146 = scmp.eq.s32.totalorder %s22, 0
      %p147 = por %p145, %p146
      %p148 = scmp.le.s32.totalorder 1, %s16
      %p149 = scmp.lt.s32.totalorder %s16, 3
      %p150 = pnand %p148, %p149
      %p151 = pneg %p150
      // Predicated region
      $region9: #{decoder_features_nhwc.6} parent=5 // pred_check
        _
      $region10: #{decoder_features_nhwc.6} parent=5 // pred_check_branch
        %153 = sbr.rel (%p150) target = $region12
      $region11: #{decoder_features_nhwc.6} parent=5 // pred_region
        %s154 = ssub.s32 %s16, 1
      $region12: #{decoder_features_nhwc.6} parent=5 // pred_fallthru
        _
      %p155 = scmp.lt.s32.totalorder %s16, 2
      // Predicated region
      $region13: #{decoder_features_nhwc.6} parent=5 // pred_check
        %p156 = pneg %p155
      $region14: #{decoder_features_nhwc.6} parent=5 // pred_check_branch
        %158 = sbr.rel (%p156) target = $region16
      $region15: #{decoder_features_nhwc.6} parent=5 // pred_region
        // Predicated region
        $region17: #{decoder_features_nhwc.6} parent=15 // pred_check
          %p159 = pneg %p50
        $region18: #{decoder_features_nhwc.6} parent=15 // pred_check_branch
          %161 = sbr.rel (%p159) target = $region20
        $region19: #{decoder_features_nhwc.6} parent=15 // pred_region
          %s162 = smul.u32 4, %s24
          %p163 = scmp.lt.s32.totalorder %s23, 1
          %s164 = scalar_select %p163, %s23, 1
          %p165 = scmp.lt.s32.totalorder %s162, 3
          %s166 = scalar_select %p165, %s162, 3
          %s167 = smul.addr %s164, 4
          %s168 = sadd.s32 %s166, %s167
          %s169 = smul.addr %s168, 4
          %s170 = scalar_lea.vmem %s0, %s169
          %s171 = smul.u32 4, %s24
        $region20: #{decoder_features_nhwc.6} parent=15 // pred_fallthru
          _
        // Predicated region
        $region21: #{decoder_features_nhwc.6} parent=15 // pred_check
          %p172 = pneg %p78
        $region22: #{decoder_features_nhwc.6} parent=15 // pred_check_branch
          %174 = sbr.rel (%p172) target = $region24
        $region23: #{decoder_features_nhwc.6} parent=15 // pred_region
          %s175 = sand.u32 %s68, 1
          %s176 = scalar_lea.sflag [#allocation3], %s175
          %s177 = sand.u32 %s68, 1
          %s178 = smul.addr %s177, 32
          %s179 = scalar_lea.vmem [#allocation2], %s178
          %s180 = smul.u32 4, %s24
          %s182 = ssub.s32 512, 512
          %183 = vsyncadd %s176, %s182
          %s184 = smul.addr %s180, 2
          %s185 = smul.addr %s23, 8
          %s186 = sadd.s32 %s184, %s185
          %s187 = smul.addr %s186, 64
          %s188 = scalar_lea.hbm %s1, %s187
          %s189 = sshll.u32 %s179, 4
          %s190 = int_to_ptr.vmem [resolvable:$true] %s189
          %195 = dma.hbm_to_vmem [thread:$0]  %s188, 512, %s190, %s176, 128, 128, 8
        $region24: #{decoder_features_nhwc.6} parent=15 // pred_fallthru
          _
      $region16: #{decoder_features_nhwc.6} parent=5 // pred_fallthru
        _
      %p196 = scmp.le.s32.totalorder 1, %s16
      %p197 = scmp.lt.s32.totalorder %s16, 3
      %p198 = pnand %p196, %p197
      %p199 = pneg %p198
      // Predicated region
      $region25: #{decoder_features_nhwc.6} parent=5 // pred_check
        _
      $region26: #{decoder_features_nhwc.6} parent=5 // pred_check_branch
        %201 = sbr.rel (%p198) target = $region28
      $region27: #{decoder_features_nhwc.6} parent=5 // pred_region
        %s202 = ssub.s32 %s16, 1
        %s203 = sand.u32 %s71, 1
        %s204 = scalar_lea.sflag [#allocation3], %s203
        %s205 = sand.u32 %s71, 1
        %s206 = smul.addr %s205, 32
        %s207 = scalar_lea.vmem [#allocation2], %s206
        // Predicated region
        $region29: #{decoder_features_nhwc.6} parent=27 // pred_check
          %p208 = pneg %p84
        $region30: #{decoder_features_nhwc.6} parent=27 // pred_check_branch
          %210 = sbr.rel (%p208) target = $region32
        $region31: #{decoder_features_nhwc.6} parent=27 // pred_region
          %211 = dma.done %s204, 512
        $region32: #{decoder_features_nhwc.6} parent=27 // pred_fallthru
          _
        %s212 = smul.u32 4, %s26
        %p213 = scmp.lt.s32.totalorder %s25, 1
        %s214 = scalar_select %p213, %s25, 1
        %p215 = scmp.lt.s32.totalorder %s212, 3
        %s216 = scalar_select %p215, %s212, 3
        %s217 = smul.addr %s214, 4
        %s218 = sadd.s32 %s216, %s217
        %s219 = smul.addr %s218, 4
        %s220 = scalar_lea.vmem %s0, %s219
        %p221 = pneg %p56
        %p222 = pneg %p53
        %s223 = sand.u32 %s71, 1
        %s224 = scalar_lea.sflag [#allocation3], %s223
        %s225 = sand.u32 %s71, 1
        %s226 = smul.addr %s225, 32
        %s227 = scalar_lea.vmem [#allocation2], %s226
        %p228 = pneg %p84
        %p229 = pneg %p81
        %p230 = pneg %p112
        %p231 = pneg %p109
        %s232 = sand.u32 %s99, 1
        %s233 = scalar_lea.sflag [#allocation4], %s232
        %s234 = sand.u32 %s99, 1
        %s235 = smul.addr %s234, 32
        %s236 = scalar_lea.vmem [#allocation5], %s235
        %p237 = pneg %p140
        %p238 = pneg %p137
        %s239 = smul.u32 4, %s26
        %p240 = scmp.lt.s32.totalorder %s25, 1
        %s241 = scalar_select %p240, %s25, 1
        %p242 = scmp.lt.s32.totalorder %s239, 3
        %s243 = scalar_select %p242, %s239, 3
        %s244 = smul.addr %s241, 4
        %s245 = sadd.s32 %s243, %s244
        %s246 = smul.addr %s245, 4
        %s247 = scalar_lea.vmem %s3, %s246
        %s248 = smul.u32 4, %s26
        %p249 = scmp.lt.s32.totalorder %s25, 1
        %s250 = scalar_select %p249, %s25, 1
        %p251 = scmp.lt.s32.totalorder %s248, 3
        %s252 = scalar_select %p251, %s248, 3
        %s253 = smul.addr %s250, 4
        %s254 = sadd.s32 %s252, %s253
        %s255 = smul.addr %s254, 4
        %s256 = scalar_lea.vmem %s0, %s255
        %s257 = smul.u32 4, %s26
        %s258 = smul.u32 4, %s26
        %s259 = smul.u32 4, %s26
        %s260 = smul.u32 4, %s26
        %p261 = scmp.lt.s32.totalorder %s25, 1
        %s262 = scalar_select %p261, %s25, 1
        %p263 = scmp.lt.s32.totalorder %s260, 3
        %s264 = scalar_select %p263, %s260, 3
        %s265 = smul.addr %s262, 4
        %s266 = sadd.s32 %s264, %s265
        %s267 = smul.addr %s266, 4
        %s268 = scalar_lea.vmem %s3, %s267
        %s269 = smul.u32 4, %s26
        %v270 = vld [vmem:[%s256] sm:$0xf]
        %v271 = vld [vmem:[%s256 + $0x4] sm:$0xf]
        %v272 = vld [vmem:[%s256 + $0x8] sm:$0xf]
        %v273 = vld [vmem:[%s256 + $0xc] sm:$0xf]
        %v274 = vld [vmem:[%s207] sm:$0xff]
        %v275 = vld [vmem:[%s207 + $0x8] sm:$0xff]
        %v276 = vld [vmem:[%s207 + $0x10] sm:$0xff]
        %v277 = vld [vmem:[%s207 + $0x18] sm:$0xff]
        %279 = vset.pattern.permute.xlu0 0
        %280 = vperm.xlu0 %279, %v270
        %v281 = vpop.permute.xlu0 %280
        %284 = vset.pattern.permute.xlu0 0
        %285 = vperm.xlu0 %284, %v271
        %v286 = vpop.permute.xlu0 %285
        %289 = vset.pattern.permute.xlu0 0
        %290 = vperm.xlu0 %289, %v272
        %v291 = vpop.permute.xlu0 %290
        %294 = vset.pattern.permute.xlu0 0
        %295 = vperm.xlu0 %294, %v273
        %v296 = vpop.permute.xlu0 %295
        %v302 = vcombine.high %v274, %v274
        %v303 = vcombine.high %v275, %v275
        %v304 = vcombine.high %v276, %v276
        %v305 = vcombine.high %v277, %v277
        %v310 = vadd.f32 %v281, %v274
        %v311 = vadd.f32 %v281, %v302
        %v312 = vadd.f32 %v286, %v275
        %v313 = vadd.f32 %v286, %v303
        %v314 = vadd.f32 %v291, %v276
        %v315 = vadd.f32 %v291, %v304
        %v316 = vadd.f32 %v296, %v277
        %v317 = vadd.f32 %v296, %v305
        %v326 = vcombine.low %v310, %v311
        %v327 = vcombine.low %v312, %v313
        %v328 = vcombine.low %v314, %v315
        %v329 = vcombine.low %v316, %v317
        %334 = vst [vmem:[%s236] sm:$0xff] %v326
        %335 = vst [vmem:[%s236 + $0x8] sm:$0xff] %v327
        %336 = vst [vmem:[%s236 + $0x10] sm:$0xff] %v328
        %337 = vst [vmem:[%s236 + $0x18] sm:$0xff] %v329
        %vm338 = vcmask 1043456
        %v339 = vsel %vm338, %v310, 0.0
        %v340 = vsel %vm338, %v311, 0.0
        %v341 = vadd.f32 %v339, %v340
        %342 = vadd.xlane.f32.xlu0 %v341
        %v343 = vpop.xlane.xlu0 %342
        %v344 = vsel %vm338, %v312, 0.0
        %v345 = vsel %vm338, %v313, 0.0
        %v346 = vadd.f32 %v344, %v345
        %347 = vadd.xlane.f32.xlu0 %v346
        %v348 = vpop.xlane.xlu0 %347
        %v349 = vsel %vm338, %v314, 0.0
        %v350 = vsel %vm338, %v315, 0.0
        %v351 = vadd.f32 %v349, %v350
        %352 = vadd.xlane.f32.xlu0 %v351
        %v353 = vpop.xlane.xlu0 %352
        %v354 = vsel %vm338, %v316, 0.0
        %v355 = vsel %vm338, %v317, 0.0
        %v356 = vadd.f32 %v354, %v355
        %357 = vadd.xlane.f32.xlu0 %v356
        %v358 = vpop.xlane.xlu0 %357
        %v359 = vrcp.pop 256.0
        %v360 = vmul.f32 %v343, %v359
        %v361 = vmul.f32 %v348, %v359
        %v362 = vmul.f32 %v353, %v359
        %v363 = vmul.f32 %v358, %v359
        %vm364 = vcmask 3072
        %365 = vst.msk [vmem:[%s268] sm:$0xf] %vm364, %v360
        %366 = vst.msk [vmem:[%s268 + $0x4] sm:$0xf] %vm364, %v361
        %367 = vst.msk [vmem:[%s268 + $0x8] sm:$0xf] %vm364, %v362
        %368 = vst.msk [vmem:[%s268 + $0xc] sm:$0xf] %vm364, %v363
        %s369 = sand.u32 %s99, 1
        %s370 = scalar_lea.sflag [#allocation4], %s369
        %s371 = sand.u32 %s99, 1
        %s372 = smul.addr %s371, 32
        %s373 = scalar_lea.vmem [#allocation5], %s372
        %s374 = smul.u32 4, %s26
        %p375 = scmp.lt.s32.totalorder %s25, 1
        %s376 = scalar_select %p375, %s25, 1
        %p377 = scmp.lt.s32.totalorder %s374, 3
        %s378 = scalar_select %p377, %s374, 3
        %s379 = smul.addr %s376, 4
        %s380 = sadd.s32 %s378, %s379
        %s381 = smul.addr %s380, 4
        %s382 = scalar_lea.vmem %s3, %s381
        // Predicated region
        $region33: #{decoder_features_nhwc.6} parent=27 // pred_check
          %p383 = pneg %p109
        $region34: #{decoder_features_nhwc.6} parent=27 // pred_check_branch
          %385 = sbr.rel (%p383) target = $region36
        $region35: #{decoder_features_nhwc.6} parent=27 // pred_region
          %s386 = smul.u32 4, %s26
          %s388 = ssub.s32 512, 512
          %389 = vsyncadd %s370, %s388
          %s390 = smul.addr %s386, 2
          %s391 = smul.addr %s25, 8
          %s392 = sadd.s32 %s390, %s391
          %s393 = smul.addr %s392, 64
          %s394 = scalar_lea.hbm %s2, %s393
          %s395 = sshll.u32 %s373, 4
          %s396 = int_to_ptr.vmem [resolvable:$true] %s395
          %401 = dma.vmem_to_hbm [thread:$0]  %s396, 512, %s394, %s370, 128, 128, 8
        $region36: #{decoder_features_nhwc.6} parent=27 // pred_fallthru
          _
        // Predicated region
        $region37: #{decoder_features_nhwc.6} parent=27 // pred_check
          %p402 = pneg %p137
        $region38: #{decoder_features_nhwc.6} parent=27 // pred_check_branch
          %404 = sbr.rel (%p402) target = $region40
        $region39: #{decoder_features_nhwc.6} parent=27 // pred_region
          %s405 = smul.u32 4, %s26
        $region40: #{decoder_features_nhwc.6} parent=27 // pred_fallthru
          _
      $region28: #{decoder_features_nhwc.6} parent=5 // pred_fallthru
        _
      %p406 = scmp.le.s32.totalorder 2, %s16
      // Predicated region
      $region41: #{decoder_features_nhwc.6} parent=5 // pred_check
        %p407 = pneg %p406
      $region42: #{decoder_features_nhwc.6} parent=5 // pred_check_branch
        %409 = sbr.rel (%p407) target = $region44
      $region43: #{decoder_features_nhwc.6} parent=5 // pred_region
        %s410 = ssub.s32 %s16, 2
        // Predicated region
        $region45: #{decoder_features_nhwc.6} parent=43 // pred_check
          %p411 = pneg %p115
        $region46: #{decoder_features_nhwc.6} parent=43 // pred_check_branch
          %413 = sbr.rel (%p411) target = $region48
        $region47: #{decoder_features_nhwc.6} parent=43 // pred_region
          %s414 = sand.u32 %s100, 1
          %s415 = scalar_lea.sflag [#allocation4], %s414
          %s416 = sand.u32 %s100, 1
          %s417 = smul.addr %s416, 32
          %s418 = scalar_lea.vmem [#allocation5], %s417
          %419 = dma.done %s415, 512
        $region48: #{decoder_features_nhwc.6} parent=43 // pred_fallthru
          _
        // Predicated region
        $region49: #{decoder_features_nhwc.6} parent=43 // pred_check
          %p420 = pneg %p143
        $region50: #{decoder_features_nhwc.6} parent=43 // pred_check_branch
          %422 = sbr.rel (%p420) target = $region52
        $region51: #{decoder_features_nhwc.6} parent=43 // pred_region
          %s423 = smul.u32 4, %s28
          %p424 = scmp.lt.s32.totalorder %s27, 1
          %s425 = scalar_select %p424, %s27, 1
          %p426 = scmp.lt.s32.totalorder %s423, 3
          %s427 = scalar_select %p426, %s423, 3
          %s428 = smul.addr %s425, 4
          %s429 = sadd.s32 %s427, %s428
          %s430 = smul.addr %s429, 4
          %s431 = scalar_lea.vmem %s3, %s430
        $region52: #{decoder_features_nhwc.6} parent=43 // pred_fallthru
          _
      $region44: #{decoder_features_nhwc.6} parent=5 // pred_fallthru
        _
    $region6: #{decoder_features_nhwc.6} parent=1 // loop_footer
      %s20 = sadd.s32 1, %s16
    $region7: #{decoder_features_nhwc.6} parent=1 // loop_footer_branch
      %15 = sbr.rel target = $region3
    $region8: #{decoder_features_nhwc.6} parent=1 // loop_exit
      _
    %432 = vsyncpa [#allocation3], 1
    %s433 = scalar_lea.sflag [#allocation3], 1
    %434 = vsyncpa %s433, 1
    %435 = vsyncpa [#allocation4], 1
    %s436 = scalar_lea.sflag [#allocation4], 1
    %437 = vsyncpa %s436, 1

// kernel: decoder_features_nhwc.7
$region0: #{decoder_features_nhwc.7}
  #allocation0 [shape = 'u32[]', space=smem, size = 0x4, offset = 0x4, fixed_abs, tag = 'smem constant byte address 0x4 - core index']
  #allocation1 [shape = 'u32[144,128]{1,0:T(1,128)}', space=vmem, size = 0x12000, scoped, tag = 'internal scratch']
  %s0 = inlined_call_operand.vmem [shape: f32[2,8,8,1], index: 0, kind: input, shape index: {}]
  %s1 = inlined_call_operand.hbm [shape: f32[2,8,8,128], index: 1, kind: input, shape index: {}]
  %s2 = inlined_call_operand.hbm [shape: f32[2,8,8,128], index: 2, kind: output, shape index: {0}]
  %s3 = inlined_call_operand.vmem [shape: f32[2,8,8,1], index: 3, kind: output, shape index: {1}]
  %4 = xla_tuple %s2, %s3
  %s5 = sld [smem:[#allocation0]]
  $region53: #{decoder_features_nhwc.7} parent=0
    _
  %s7 = ssub.s32 1, %s5
  %s8 = scalar_select 0, %s7, %s5
  $region1: #{decoder_features_nhwc.7} parent=0
    #allocation2 [shape = 'u8[65536]{0}', space=vmem, size = 0x10000, scoped, tag = 'input window, operand 1']
    #allocation3 [shape = 's32[2]{0}', space=sflag, size = 0x8, scoped, tag = 'scoped memory for decoder_features_nhwc.7']
    #allocation4 [shape = 's32[2]{0}', space=sflag, size = 0x8, scoped, tag = 'scoped memory for decoder_features_nhwc.7']
    #allocation5 [shape = 'u8[65536]{0}', space=vmem, size = 0x10000, scoped, tag = 'output window, operand 0']
    %9 = vsyncpa [#allocation3], 0
    %s10 = scalar_lea.sflag [#allocation3], 1
    %11 = vsyncpa %s10, 0
    %12 = vsyncpa [#allocation4], 0
    %s13 = scalar_lea.sflag [#allocation4], 1
    %14 = vsyncpa %s13, 0
    loop: start=0, step=1, limit=4
    $region2: #{decoder_features_nhwc.7} parent=1 // loop_pre_header
      _
    $region3: #{decoder_features_nhwc.7} parent=1 // loop_header
      %s16 = sphi 0, %s20
      %p17 = scmp.ge.s32.totalorder %s16, 4
      %s23 = sphi 0, %s35
      %s24 = sphi 0, %s31
      %s25 = sphi 0, %s23
      %s26 = sphi 0, %s24
      %s27 = sphi 0, %s25
      %s28 = sphi 0, %s26
      %s40 = sphi 0, %s42
      %s43 = sphi 0, %s40
      %s44 = sphi 0, %s43
      %s60 = sphi 0, %s44
      %s68 = sphi 0, %s70
      %s71 = sphi 0, %s68
      %s72 = sphi 0, %s71
      %s88 = sphi 0, %s72
      %s96 = sphi 0, %s98
      %s99 = sphi 0, %s96
      %s100 = sphi 0, %s99
      %s116 = sphi 0, %s100
      %s124 = sphi 0, %s126
      %s127 = sphi 0, %s124
      %s128 = sphi 0, %s127
      %s144 = sphi 0, %s128
    $region4: #{decoder_features_nhwc.7} parent=1 // loop_header_branch
      %19 = sbr.rel (%p17) target = $region8
    $region5: #{decoder_features_nhwc.7} parent=1 // loop_body
      %s21 = ssub.s32 %s16, 1
      %s22 = ssub.s32 %s16, 2
      %s29 = sadd.s32 1, %s24
      %p30 = scmp.ge.s32.totalorder %s29, 1
      %s31 = scalar_select %p30, 0, %s29
      %s32 = sadd.s32 1, %s23
      %s33 = scalar_select %p30, %s32, %s23
      %p34 = scmp.ge.s32.totalorder %s33, 2
      %s35 = scalar_select %p34, 0, %s33
      %s36 = ssub.s32 %s23, %s35
      %s37 = ssub.s32 %s24, %s31
      %s38 = sor.u32 %s36, %s37
      %p39 = scmp.eq.s32.totalorder %s38, 0
      %s41 = sadd.s32 %s40, 1
      %s42 = scalar_select %p39, %s40, %s41
      %p45 = pneg %p39
      %p46 = scmp.eq.s32.totalorder %s16, 1
      %p47 = por %p45, %p46
      %p48 = scmp.ne.s32.totalorder %s40, %s43
      %p49 = scmp.eq.s32.totalorder %s16, 0
      %p50 = por %p48, %p49
      %p51 = scmp.ne.s32.totalorder %s40, %s43
      %p52 = scmp.eq.s32.totalorder %s21, 1
      %p53 = por %p51, %p52
      %p54 = scmp.ne.s32.totalorder %s43, %s44
      %p55 = scmp.eq.s32.totalorder %s21, 0
      %p56 = por %p54, %p55
      %p57 = scmp.ne.s32.totalorder %s43, %s44
      %p58 = scmp.eq.s32.totalorder %s22, 1
      %p59 = por %p57, %p58
      %p61 = scmp.ne.s32.totalorder %s44, %s60
      %p62 = scmp.eq.s32.totalorder %s22, 0
      %p63 = por %p61, %p62
      %s64 = ssub.s32 %s23, %s35
      %s65 = ssub.s32 %s24, %s31
      %s66 = sor.u32 %s64, %s65
      %p67 = scmp.eq.s32.totalorder %s66, 0
      %s69 = sadd.s32 %s68, 1
      %s70 = scalar_select %p67, %s68, %s69
      %p73 = pneg %p67
      %p74 = scmp.eq.s32.totalorder %s16, 1
      %p75 = por %p73, %p74
      %p76 = scmp.ne.s32.totalorder %s68, %s71
      %p77 = scmp.eq.s32.totalorder %s16, 0
      %p78 = por %p76, %p77
      %p79 = scmp.ne.s32.totalorder %s68, %s71
      %p80 = scmp.eq.s32.totalorder %s21, 1
      %p81 = por %p79, %p80
      %p82 = scmp.ne.s32.totalorder %s71, %s72
      %p83 = scmp.eq.s32.totalorder %s21, 0
      %p84 = por %p82, %p83
      %p85 = scmp.ne.s32.totalorder %s71, %s72
      %p86 = scmp.eq.s32.totalorder %s22, 1
      %p87 = por %p85, %p86
      %p89 = scmp.ne.s32.totalorder %s72, %s88
      %p90 = scmp.eq.s32.totalorder %s22, 0
      %p91 = por %p89, %p90
      %s92 = ssub.s32 %s23, %s35
      %s93 = ssub.s32 %s24, %s31
      %s94 = sor.u32 %s92, %s93
      %p95 = scmp.eq.s32.totalorder %s94, 0
      %s97 = sadd.s32 %s96, 1
      %s98 = scalar_select %p95, %s96, %s97
      %p101 = pneg %p95
      %p102 = scmp.eq.s32.totalorder %s16, 1
      %p103 = por %p101, %p102
      %p104 = scmp.ne.s32.totalorder %s96, %s99
      %p105 = scmp.eq.s32.totalorder %s16, 0
      %p106 = por %p104, %p105
      %p107 = scmp.ne.s32.totalorder %s96, %s99
      %p108 = scmp.eq.s32.totalorder %s21, 1
      %p109 = por %p107, %p108
      %p110 = scmp.ne.s32.totalorder %s99, %s100
      %p111 = scmp.eq.s32.totalorder %s21, 0
      %p112 = por %p110, %p111
      %p113 = scmp.ne.s32.totalorder %s99, %s100
      %p114 = scmp.eq.s32.totalorder %s22, 1
      %p115 = por %p113, %p114
      %p117 = scmp.ne.s32.totalorder %s100, %s116
      %p118 = scmp.eq.s32.totalorder %s22, 0
      %p119 = por %p117, %p118
      %s120 = ssub.s32 %s23, %s35
      %s121 = ssub.s32 %s24, %s31
      %s122 = sor.u32 %s120, %s121
      %p123 = scmp.eq.s32.totalorder %s122, 0
      %s125 = sadd.s32 %s124, 1
      %s126 = scalar_select %p123, %s124, %s125
      %p129 = pneg %p123
      %p130 = scmp.eq.s32.totalorder %s16, 1
      %p131 = por %p129, %p130
      %p132 = scmp.ne.s32.totalorder %s124, %s127
      %p133 = scmp.eq.s32.totalorder %s16, 0
      %p134 = por %p132, %p133
      %p135 = scmp.ne.s32.totalorder %s124, %s127
      %p136 = scmp.eq.s32.totalorder %s21, 1
      %p137 = por %p135, %p136
      %p138 = scmp.ne.s32.totalorder %s127, %s128
      %p139 = scmp.eq.s32.totalorder %s21, 0
      %p140 = por %p138, %p139
      %p141 = scmp.ne.s32.totalorder %s127, %s128
      %p142 = scmp.eq.s32.totalorder %s22, 1
      %p143 = por %p141, %p142
      %p145 = scmp.ne.s32.totalorder %s128, %s144
      %p146 = scmp.eq.s32.totalorder %s22, 0
      %p147 = por %p145, %p146
      %p148 = scmp.le.s32.totalorder 1, %s16
      %p149 = scmp.lt.s32.totalorder %s16, 3
      %p150 = pnand %p148, %p149
      %p151 = pneg %p150
      // Predicated region
      $region9: #{decoder_features_nhwc.7} parent=5 // pred_check
        _
      $region10: #{decoder_features_nhwc.7} parent=5 // pred_check_branch
        %153 = sbr.rel (%p150) target = $region12
      $region11: #{decoder_features_nhwc.7} parent=5 // pred_region
        %s154 = ssub.s32 %s16, 1
      $region12: #{decoder_features_nhwc.7} parent=5 // pred_fallthru
        _
      %p155 = scmp.lt.s32.totalorder %s16, 2
      // Predicated region
      $region13: #{decoder_features_nhwc.7} parent=5 // pred_check
        %p156 = pneg %p155
      $region14: #{decoder_features_nhwc.7} parent=5 // pred_check_branch
        %158 = sbr.rel (%p156) target = $region16
      $region15: #{decoder_features_nhwc.7} parent=5 // pred_region
        // Predicated region
        $region17: #{decoder_features_nhwc.7} parent=15 // pred_check
          %p159 = pneg %p50
        $region18: #{decoder_features_nhwc.7} parent=15 // pred_check_branch
          %161 = sbr.rel (%p159) target = $region20
        $region19: #{decoder_features_nhwc.7} parent=15 // pred_region
          %s162 = smul.u32 8, %s24
          %p163 = scmp.lt.s32.totalorder %s23, 1
          %s164 = scalar_select %p163, %s23, 1
          %p165 = scmp.lt.s32.totalorder %s162, 7
          %s166 = scalar_select %p165, %s162, 7
          %s167 = smul.addr %s164, 8
          %s168 = sadd.s32 %s166, %s167
          %s169 = smul.addr %s168, 8
          %s170 = scalar_lea.vmem %s0, %s169
          %s171 = smul.u32 8, %s24
        $region20: #{decoder_features_nhwc.7} parent=15 // pred_fallthru
          _
        // Predicated region
        $region21: #{decoder_features_nhwc.7} parent=15 // pred_check
          %p172 = pneg %p78
        $region22: #{decoder_features_nhwc.7} parent=15 // pred_check_branch
          %174 = sbr.rel (%p172) target = $region24
        $region23: #{decoder_features_nhwc.7} parent=15 // pred_region
          %s175 = sand.u32 %s68, 1
          %s176 = scalar_lea.sflag [#allocation3], %s175
          %s177 = sand.u32 %s68, 1
          %s178 = smul.addr %s177, 64
          %s179 = scalar_lea.vmem [#allocation2], %s178
          %s180 = smul.u32 8, %s24
          %s182 = ssub.s32 1024, 1024
          %183 = vsyncadd %s176, %s182
          %s184 = smul.addr %s23, 8
          %s185 = sadd.s32 %s180, %s184
          %s186 = smul.addr %s185, 128
          %s187 = scalar_lea.hbm %s1, %s186
          %s188 = sshll.u32 %s179, 4
          %s189 = int_to_ptr.vmem [resolvable:$true] %s188
          %194 = dma.hbm_to_vmem [thread:$0]  %s187, 1024, %s189, %s176, 128, 128, 8
        $region24: #{decoder_features_nhwc.7} parent=15 // pred_fallthru
          _
      $region16: #{decoder_features_nhwc.7} parent=5 // pred_fallthru
        _
      %p195 = scmp.le.s32.totalorder 1, %s16
      %p196 = scmp.lt.s32.totalorder %s16, 3
      %p197 = pnand %p195, %p196
      %p198 = pneg %p197
      // Predicated region
      $region25: #{decoder_features_nhwc.7} parent=5 // pred_check
        _
      $region26: #{decoder_features_nhwc.7} parent=5 // pred_check_branch
        %200 = sbr.rel (%p197) target = $region28
      $region27: #{decoder_features_nhwc.7} parent=5 // pred_region
        %s201 = ssub.s32 %s16, 1
        %s202 = sand.u32 %s71, 1
        %s203 = scalar_lea.sflag [#allocation3], %s202
        %s204 = sand.u32 %s71, 1
        %s205 = smul.addr %s204, 64
        %s206 = scalar_lea.vmem [#allocation2], %s205
        // Predicated region
        $region29: #{decoder_features_nhwc.7} parent=27 // pred_check
          %p207 = pneg %p84
        $region30: #{decoder_features_nhwc.7} parent=27 // pred_check_branch
          %209 = sbr.rel (%p207) target = $region32
        $region31: #{decoder_features_nhwc.7} parent=27 // pred_region
          %210 = dma.done %s203, 1024
        $region32: #{decoder_features_nhwc.7} parent=27 // pred_fallthru
          _
        %s211 = smul.u32 8, %s26
        %p212 = scmp.lt.s32.totalorder %s25, 1
        %s213 = scalar_select %p212, %s25, 1
        %p214 = scmp.lt.s32.totalorder %s211, 7
        %s215 = scalar_select %p214, %s211, 7
        %s216 = smul.addr %s213, 8
        %s217 = sadd.s32 %s215, %s216
        %s218 = smul.addr %s217, 8
        %s219 = scalar_lea.vmem %s0, %s218
        %p220 = pneg %p56
        %p221 = pneg %p53
        %s222 = sand.u32 %s71, 1
        %s223 = scalar_lea.sflag [#allocation3], %s222
        %s224 = sand.u32 %s71, 1
        %s225 = smul.addr %s224, 64
        %s226 = scalar_lea.vmem [#allocation2], %s225
        %p227 = pneg %p84
        %p228 = pneg %p81
        %p229 = pneg %p112
        %p230 = pneg %p109
        %s231 = sand.u32 %s99, 1
        %s232 = scalar_lea.sflag [#allocation4], %s231
        %s233 = sand.u32 %s99, 1
        %s234 = smul.addr %s233, 64
        %s235 = scalar_lea.vmem [#allocation5], %s234
        %p236 = pneg %p140
        %p237 = pneg %p137
        %s238 = smul.u32 8, %s26
        %p239 = scmp.lt.s32.totalorder %s25, 1
        %s240 = scalar_select %p239, %s25, 1
        %p241 = scmp.lt.s32.totalorder %s238, 7
        %s242 = scalar_select %p241, %s238, 7
        %s243 = smul.addr %s240, 8
        %s244 = sadd.s32 %s242, %s243
        %s245 = smul.addr %s244, 8
        %s246 = scalar_lea.vmem %s3, %s245
        %s247 = smul.u32 8, %s26
        %p248 = scmp.lt.s32.totalorder %s25, 1
        %s249 = scalar_select %p248, %s25, 1
        %p250 = scmp.lt.s32.totalorder %s247, 7
        %s251 = scalar_select %p250, %s247, 7
        %s252 = smul.addr %s249, 8
        %s253 = sadd.s32 %s251, %s252
        %s254 = smul.addr %s253, 8
        %s255 = scalar_lea.vmem %s0, %s254
        %s256 = smul.u32 8, %s26
        %s257 = smul.u32 8, %s26
        %s258 = smul.u32 8, %s26
        %s259 = smul.u32 8, %s26
        %p260 = scmp.lt.s32.totalorder %s25, 1
        %s261 = scalar_select %p260, %s25, 1
        %p262 = scmp.lt.s32.totalorder %s259, 7
        %s263 = scalar_select %p262, %s259, 7
        %s264 = smul.addr %s261, 8
        %s265 = sadd.s32 %s263, %s264
        %s266 = smul.addr %s265, 8
        %s267 = scalar_lea.vmem %s3, %s266
        %s268 = smul.u32 8, %s26
        %v269 = vld [vmem:[%s255] sm:$0xff]
        %v270 = vld [vmem:[%s255 + $0x8] sm:$0xff]
        %v271 = vld [vmem:[%s255 + $0x10] sm:$0xff]
        %v272 = vld [vmem:[%s255 + $0x18] sm:$0xff]
        %v273 = vld [vmem:[%s255 + $0x20] sm:$0xff]
        %v274 = vld [vmem:[%s255 + $0x28] sm:$0xff]
        %v275 = vld [vmem:[%s255 + $0x30] sm:$0xff]
        %v276 = vld [vmem:[%s255 + $0x38] sm:$0xff]
        %v277 = vld [vmem:[%s206] sm:$0xff]
        %v278 = vld [vmem:[%s206 + $0x8] sm:$0xff]
        %v279 = vld [vmem:[%s206 + $0x10] sm:$0xff]
        %v280 = vld [vmem:[%s206 + $0x18] sm:$0xff]
        %v281 = vld [vmem:[%s206 + $0x20] sm:$0xff]
        %v282 = vld [vmem:[%s206 + $0x28] sm:$0xff]
        %v283 = vld [vmem:[%s206 + $0x30] sm:$0xff]
        %v284 = vld [vmem:[%s206 + $0x38] sm:$0xff]
        %286 = vset.pattern.permute.xlu0 0
        %287 = vperm.xlu0 %286, %v269
        %v288 = vpop.permute.xlu0 %287
        %291 = vset.pattern.permute.xlu0 0
        %292 = vperm.xlu0 %291, %v270
        %v293 = vpop.permute.xlu0 %292
        %296 = vset.pattern.permute.xlu0 0
        %297 = vperm.xlu0 %296, %v271
        %v298 = vpop.permute.xlu0 %297
        %301 = vset.pattern.permute.xlu0 0
        %302 = vperm.xlu0 %301, %v272
        %v303 = vpop.permute.xlu0 %302
        %306 = vset.pattern.permute.xlu0 0
        %307 = vperm.xlu0 %306, %v273
        %v308 = vpop.permute.xlu0 %307
        %311 = vset.pattern.permute.xlu0 0
        %312 = vperm.xlu0 %311, %v274
        %v313 = vpop.permute.xlu0 %312
        %316 = vset.pattern.permute.xlu0 0
        %317 = vperm.xlu0 %316, %v275
        %v318 = vpop.permute.xlu0 %317
        %321 = vset.pattern.permute.xlu0 0
        %322 = vperm.xlu0 %321, %v276
        %v323 = vpop.permute.xlu0 %322
        %v325 = vadd.f32 %v288, %v277
        %v326 = vadd.f32 %v293, %v278
        %v327 = vadd.f32 %v298, %v279
        %v328 = vadd.f32 %v303, %v280
        %v329 = vadd.f32 %v308, %v281
        %v330 = vadd.f32 %v313, %v282
        %v331 = vadd.f32 %v318, %v283
        %v332 = vadd.f32 %v323, %v284
        %333 = vst [vmem:[%s235] sm:$0xff] %v325
        %334 = vst [vmem:[%s235 + $0x8] sm:$0xff] %v326
        %335 = vst [vmem:[%s235 + $0x10] sm:$0xff] %v327
        %336 = vst [vmem:[%s235 + $0x18] sm:$0xff] %v328
        %337 = vst [vmem:[%s235 + $0x20] sm:$0xff] %v329
        %338 = vst [vmem:[%s235 + $0x28] sm:$0xff] %v330
        %339 = vst [vmem:[%s235 + $0x30] sm:$0xff] %v331
        %340 = vst [vmem:[%s235 + $0x38] sm:$0xff] %v332
        %341 = vadd.xlane.f32.xlu0 %v325
        %v342 = vpop.xlane.xlu0 %341
        %343 = vadd.xlane.f32.xlu0 %v326
        %v344 = vpop.xlane.xlu0 %343
        %345 = vadd.xlane.f32.xlu0 %v327
        %v346 = vpop.xlane.xlu0 %345
        %347 = vadd.xlane.f32.xlu0 %v328
        %v348 = vpop.xlane.xlu0 %347
        %349 = vadd.xlane.f32.xlu0 %v329
        %v350 = vpop.xlane.xlu0 %349
        %351 = vadd.xlane.f32.xlu0 %v330
        %v352 = vpop.xlane.xlu0 %351
        %353 = vadd.xlane.f32.xlu0 %v331
        %v354 = vpop.xlane.xlu0 %353
        %355 = vadd.xlane.f32.xlu0 %v332
        %v356 = vpop.xlane.xlu0 %355
        %v357 = vrcp.pop 128.0
        %v358 = vmul.f32 %v342, %v357
        %v359 = vmul.f32 %v344, %v357
        %v360 = vmul.f32 %v346, %v357
        %v361 = vmul.f32 %v348, %v357
        %v362 = vmul.f32 %v350, %v357
        %v363 = vmul.f32 %v352, %v357
        %v364 = vmul.f32 %v354, %v357
        %v365 = vmul.f32 %v356, %v357
        %vm366 = vcmask 7168
        %367 = vst.msk [vmem:[%s267] sm:$0xff] %vm366, %v358
        %368 = vst.msk [vmem:[%s267 + $0x8] sm:$0xff] %vm366, %v359
        %369 = vst.msk [vmem:[%s267 + $0x10] sm:$0xff] %vm366, %v360
        %370 = vst.msk [vmem:[%s267 + $0x18] sm:$0xff] %vm366, %v361
        %371 = vst.msk [vmem:[%s267 + $0x20] sm:$0xff] %vm366, %v362
        %372 = vst.msk [vmem:[%s267 + $0x28] sm:$0xff] %vm366, %v363
        %373 = vst.msk [vmem:[%s267 + $0x30] sm:$0xff] %vm366, %v364
        %374 = vst.msk [vmem:[%s267 + $0x38] sm:$0xff] %vm366, %v365
        %s375 = sand.u32 %s99, 1
        %s376 = scalar_lea.sflag [#allocation4], %s375
        %s377 = sand.u32 %s99, 1
        %s378 = smul.addr %s377, 64
        %s379 = scalar_lea.vmem [#allocation5], %s378
        %s380 = smul.u32 8, %s26
        %p381 = scmp.lt.s32.totalorder %s25, 1
        %s382 = scalar_select %p381, %s25, 1
        %p383 = scmp.lt.s32.totalorder %s380, 7
        %s384 = scalar_select %p383, %s380, 7
        %s385 = smul.addr %s382, 8
        %s386 = sadd.s32 %s384, %s385
        %s387 = smul.addr %s386, 8
        %s388 = scalar_lea.vmem %s3, %s387
        // Predicated region
        $region33: #{decoder_features_nhwc.7} parent=27 // pred_check
          %p389 = pneg %p109
        $region34: #{decoder_features_nhwc.7} parent=27 // pred_check_branch
          %391 = sbr.rel (%p389) target = $region36
        $region35: #{decoder_features_nhwc.7} parent=27 // pred_region
          %s392 = smul.u32 8, %s26
          %s394 = ssub.s32 1024, 1024
          %395 = vsyncadd %s376, %s394
          %s396 = smul.addr %s25, 8
          %s397 = sadd.s32 %s392, %s396
          %s398 = smul.addr %s397, 128
          %s399 = scalar_lea.hbm %s2, %s398
          %s400 = sshll.u32 %s379, 4
          %s401 = int_to_ptr.vmem [resolvable:$true] %s400
          %406 = dma.vmem_to_hbm [thread:$0]  %s401, 1024, %s399, %s376, 128, 128, 8
        $region36: #{decoder_features_nhwc.7} parent=27 // pred_fallthru
          _
        // Predicated region
        $region37: #{decoder_features_nhwc.7} parent=27 // pred_check
          %p407 = pneg %p137
        $region38: #{decoder_features_nhwc.7} parent=27 // pred_check_branch
          %409 = sbr.rel (%p407) target = $region40
        $region39: #{decoder_features_nhwc.7} parent=27 // pred_region
          %s410 = smul.u32 8, %s26
        $region40: #{decoder_features_nhwc.7} parent=27 // pred_fallthru
          _
      $region28: #{decoder_features_nhwc.7} parent=5 // pred_fallthru
        _
      %p411 = scmp.le.s32.totalorder 2, %s16
      // Predicated region
      $region41: #{decoder_features_nhwc.7} parent=5 // pred_check
        %p412 = pneg %p411
      $region42: #{decoder_features_nhwc.7} parent=5 // pred_check_branch
        %414 = sbr.rel (%p412) target = $region44
      $region43: #{decoder_features_nhwc.7} parent=5 // pred_region
        %s415 = ssub.s32 %s16, 2
        // Predicated region
        $region45: #{decoder_features_nhwc.7} parent=43 // pred_check
          %p416 = pneg %p115
        $region46: #{decoder_features_nhwc.7} parent=43 // pred_check_branch
          %418 = sbr.rel (%p416) target = $region48
        $region47: #{decoder_features_nhwc.7} parent=43 // pred_region
          %s419 = sand.u32 %s100, 1
          %s420 = scalar_lea.sflag [#allocation4], %s419
          %s421 = sand.u32 %s100, 1
          %s422 = smul.addr %s421, 64
          %s423 = scalar_lea.vmem [#allocation5], %s422
          %424 = dma.done %s420, 1024
        $region48: #{decoder_features_nhwc.7} parent=43 // pred_fallthru
          _
        // Predicated region
        $region49: #{decoder_features_nhwc.7} parent=43 // pred_check
          %p425 = pneg %p143
        $region50: #{decoder_features_nhwc.7} parent=43 // pred_check_branch
          %427 = sbr.rel (%p425) target = $region52
        $region51: #{decoder_features_nhwc.7} parent=43 // pred_region
          %s428 = smul.u32 8, %s28
          %p429 = scmp.lt.s32.totalorder %s27, 1
          %s430 = scalar_select %p429, %s27, 1
          %p431 = scmp.lt.s32.totalorder %s428, 7
          %s432 = scalar_select %p431, %s428, 7
          %s433 = smul.addr %s430, 8
          %s434 = sadd.s32 %s432, %s433
          %s435 = smul.addr %s434, 8
          %s436 = scalar_lea.vmem %s3, %s435
        $region52: #{decoder_features_nhwc.7} parent=43 // pred_fallthru
          _
      $region44: #{decoder_features_nhwc.7} parent=5 // pred_fallthru
        _
    $region6: #{decoder_features_nhwc.7} parent=1 // loop_footer
      %s20 = sadd.s32 1, %s16
    $region7: #{decoder_features_nhwc.7} parent=1 // loop_footer_branch
      %15 = sbr.rel target = $region3
    $region8: #{decoder_features_nhwc.7} parent=1 // loop_exit
      _
    %437 = vsyncpa [#allocation3], 1
    %s438 = scalar_lea.sflag [#allocation3], 1
    %439 = vsyncpa %s438, 1
    %440 = vsyncpa [#allocation4], 1
    %s441 = scalar_lea.sflag [#allocation4], 1
    %442 = vsyncpa %s441, 1

// kernel: decoder_features_nhwc.8
$region0: #{decoder_features_nhwc.8}
  #allocation0 [shape = 'u32[]', space=smem, size = 0x4, offset = 0x4, fixed_abs, tag = 'smem constant byte address 0x4 - core index']
  #allocation1 [shape = 'u32[144,128]{1,0:T(1,128)}', space=vmem, size = 0x12000, scoped, tag = 'internal scratch']
  %s0 = inlined_call_operand.vmem [shape: f32[2,16,16,1], index: 0, kind: input, shape index: {}]
  %s1 = inlined_call_operand.hbm [shape: f32[2,16,16,64], index: 1, kind: input, shape index: {}]
  %s2 = inlined_call_operand.hbm [shape: f32[2,16,16,64], index: 2, kind: output, shape index: {0}]
  %s3 = inlined_call_operand.vmem [shape: f32[2,16,16,1], index: 3, kind: output, shape index: {1}]
  %4 = xla_tuple %s2, %s3
  %s5 = sld [smem:[#allocation0]]
  $region53: #{decoder_features_nhwc.8} parent=0
    _
  %s7 = ssub.s32 1, %s5
  %s8 = scalar_select 0, %s7, %s5
  $region1: #{decoder_features_nhwc.8} parent=0
    #allocation2 [shape = 'u8[262144]{0}', space=vmem, size = 0x40000, scoped, tag = 'input window, operand 1']
    #allocation3 [shape = 's32[2]{0}', space=sflag, size = 0x8, scoped, tag = 'scoped memory for decoder_features_nhwc.8']
    #allocation4 [shape = 's32[2]{0}', space=sflag, size = 0x8, scoped, tag = 'scoped memory for decoder_features_nhwc.8']
    #allocation5 [shape = 'u8[262144]{0}', space=vmem, size = 0x40000, scoped, tag = 'output window, operand 0']
    %9 = vsyncpa [#allocation3], 0
    %s10 = scalar_lea.sflag [#allocation3], 1
    %11 = vsyncpa %s10, 0
    %12 = vsyncpa [#allocation4], 0
    %s13 = scalar_lea.sflag [#allocation4], 1
    %14 = vsyncpa %s13, 0
    loop: start=0, step=1, limit=4
    $region2: #{decoder_features_nhwc.8} parent=1 // loop_pre_header
      _
    $region3: #{decoder_features_nhwc.8} parent=1 // loop_header
      %s16 = sphi 0, %s20
      %p17 = scmp.ge.s32.totalorder %s16, 4
      %s23 = sphi 0, %s35
      %s24 = sphi 0, %s31
      %s25 = sphi 0, %s23
      %s26 = sphi 0, %s24
      %s27 = sphi 0, %s25
      %s28 = sphi 0, %s26
      %s40 = sphi 0, %s42
      %s43 = sphi 0, %s40
      %s44 = sphi 0, %s43
      %s60 = sphi 0, %s44
      %s68 = sphi 0, %s70
      %s71 = sphi 0, %s68
      %s72 = sphi 0, %s71
      %s88 = sphi 0, %s72
      %s96 = sphi 0, %s98
      %s99 = sphi 0, %s96
      %s100 = sphi 0, %s99
      %s116 = sphi 0, %s100
      %s124 = sphi 0, %s126
      %s127 = sphi 0, %s124
      %s128 = sphi 0, %s127
      %s144 = sphi 0, %s128
    $region4: #{decoder_features_nhwc.8} parent=1 // loop_header_branch
      %19 = sbr.rel (%p17) target = $region8
    $region5: #{decoder_features_nhwc.8} parent=1 // loop_body
      %s21 = ssub.s32 %s16, 1
      %s22 = ssub.s32 %s16, 2
      %s29 = sadd.s32 1, %s24
      %p30 = scmp.ge.s32.totalorder %s29, 1
      %s31 = scalar_select %p30, 0, %s29
      %s32 = sadd.s32 1, %s23
      %s33 = scalar_select %p30, %s32, %s23
      %p34 = scmp.ge.s32.totalorder %s33, 2
      %s35 = scalar_select %p34, 0, %s33
      %s36 = ssub.s32 %s23, %s35
      %s37 = ssub.s32 %s24, %s31
      %s38 = sor.u32 %s36, %s37
      %p39 = scmp.eq.s32.totalorder %s38, 0
      %s41 = sadd.s32 %s40, 1
      %s42 = scalar_select %p39, %s40, %s41
      %p45 = pneg %p39
      %p46 = scmp.eq.s32.totalorder %s16, 1
      %p47 = por %p45, %p46
      %p48 = scmp.ne.s32.totalorder %s40, %s43
      %p49 = scmp.eq.s32.totalorder %s16, 0
      %p50 = por %p48, %p49
      %p51 = scmp.ne.s32.totalorder %s40, %s43
      %p52 = scmp.eq.s32.totalorder %s21, 1
      %p53 = por %p51, %p52
      %p54 = scmp.ne.s32.totalorder %s43, %s44
      %p55 = scmp.eq.s32.totalorder %s21, 0
      %p56 = por %p54, %p55
      %p57 = scmp.ne.s32.totalorder %s43, %s44
      %p58 = scmp.eq.s32.totalorder %s22, 1
      %p59 = por %p57, %p58
      %p61 = scmp.ne.s32.totalorder %s44, %s60
      %p62 = scmp.eq.s32.totalorder %s22, 0
      %p63 = por %p61, %p62
      %s64 = ssub.s32 %s23, %s35
      %s65 = ssub.s32 %s24, %s31
      %s66 = sor.u32 %s64, %s65
      %p67 = scmp.eq.s32.totalorder %s66, 0
      %s69 = sadd.s32 %s68, 1
      %s70 = scalar_select %p67, %s68, %s69
      %p73 = pneg %p67
      %p74 = scmp.eq.s32.totalorder %s16, 1
      %p75 = por %p73, %p74
      %p76 = scmp.ne.s32.totalorder %s68, %s71
      %p77 = scmp.eq.s32.totalorder %s16, 0
      %p78 = por %p76, %p77
      %p79 = scmp.ne.s32.totalorder %s68, %s71
      %p80 = scmp.eq.s32.totalorder %s21, 1
      %p81 = por %p79, %p80
      %p82 = scmp.ne.s32.totalorder %s71, %s72
      %p83 = scmp.eq.s32.totalorder %s21, 0
      %p84 = por %p82, %p83
      %p85 = scmp.ne.s32.totalorder %s71, %s72
      %p86 = scmp.eq.s32.totalorder %s22, 1
      %p87 = por %p85, %p86
      %p89 = scmp.ne.s32.totalorder %s72, %s88
      %p90 = scmp.eq.s32.totalorder %s22, 0
      %p91 = por %p89, %p90
      %s92 = ssub.s32 %s23, %s35
      %s93 = ssub.s32 %s24, %s31
      %s94 = sor.u32 %s92, %s93
      %p95 = scmp.eq.s32.totalorder %s94, 0
      %s97 = sadd.s32 %s96, 1
      %s98 = scalar_select %p95, %s96, %s97
      %p101 = pneg %p95
      %p102 = scmp.eq.s32.totalorder %s16, 1
      %p103 = por %p101, %p102
      %p104 = scmp.ne.s32.totalorder %s96, %s99
      %p105 = scmp.eq.s32.totalorder %s16, 0
      %p106 = por %p104, %p105
      %p107 = scmp.ne.s32.totalorder %s96, %s99
      %p108 = scmp.eq.s32.totalorder %s21, 1
      %p109 = por %p107, %p108
      %p110 = scmp.ne.s32.totalorder %s99, %s100
      %p111 = scmp.eq.s32.totalorder %s21, 0
      %p112 = por %p110, %p111
      %p113 = scmp.ne.s32.totalorder %s99, %s100
      %p114 = scmp.eq.s32.totalorder %s22, 1
      %p115 = por %p113, %p114
      %p117 = scmp.ne.s32.totalorder %s100, %s116
      %p118 = scmp.eq.s32.totalorder %s22, 0
      %p119 = por %p117, %p118
      %s120 = ssub.s32 %s23, %s35
      %s121 = ssub.s32 %s24, %s31
      %s122 = sor.u32 %s120, %s121
      %p123 = scmp.eq.s32.totalorder %s122, 0
      %s125 = sadd.s32 %s124, 1
      %s126 = scalar_select %p123, %s124, %s125
      %p129 = pneg %p123
      %p130 = scmp.eq.s32.totalorder %s16, 1
      %p131 = por %p129, %p130
      %p132 = scmp.ne.s32.totalorder %s124, %s127
      %p133 = scmp.eq.s32.totalorder %s16, 0
      %p134 = por %p132, %p133
      %p135 = scmp.ne.s32.totalorder %s124, %s127
      %p136 = scmp.eq.s32.totalorder %s21, 1
      %p137 = por %p135, %p136
      %p138 = scmp.ne.s32.totalorder %s127, %s128
      %p139 = scmp.eq.s32.totalorder %s21, 0
      %p140 = por %p138, %p139
      %p141 = scmp.ne.s32.totalorder %s127, %s128
      %p142 = scmp.eq.s32.totalorder %s22, 1
      %p143 = por %p141, %p142
      %p145 = scmp.ne.s32.totalorder %s128, %s144
      %p146 = scmp.eq.s32.totalorder %s22, 0
      %p147 = por %p145, %p146
      %p148 = scmp.le.s32.totalorder 1, %s16
      %p149 = scmp.lt.s32.totalorder %s16, 3
      %p150 = pnand %p148, %p149
      %p151 = pneg %p150
      // Predicated region
      $region9: #{decoder_features_nhwc.8} parent=5 // pred_check
        _
      $region10: #{decoder_features_nhwc.8} parent=5 // pred_check_branch
        %153 = sbr.rel (%p150) target = $region12
      $region11: #{decoder_features_nhwc.8} parent=5 // pred_region
        %s154 = ssub.s32 %s16, 1
      $region12: #{decoder_features_nhwc.8} parent=5 // pred_fallthru
        _
      %p155 = scmp.lt.s32.totalorder %s16, 2
      // Predicated region
      $region13: #{decoder_features_nhwc.8} parent=5 // pred_check
        %p156 = pneg %p155
      $region14: #{decoder_features_nhwc.8} parent=5 // pred_check_branch
        %158 = sbr.rel (%p156) target = $region16
      $region15: #{decoder_features_nhwc.8} parent=5 // pred_region
        // Predicated region
        $region17: #{decoder_features_nhwc.8} parent=15 // pred_check
          %p159 = pneg %p50
        $region18: #{decoder_features_nhwc.8} parent=15 // pred_check_branch
          %161 = sbr.rel (%p159) target = $region20
        $region19: #{decoder_features_nhwc.8} parent=15 // pred_region
          %s162 = smul.u32 16, %s24
          %p163 = scmp.lt.s32.totalorder %s23, 1
          %s164 = scalar_select %p163, %s23, 1
          %p165 = scmp.lt.s32.totalorder %s162, 15
          %s166 = scalar_select %p165, %s162, 15
          %s167 = smul.addr %s166, 2
          %s168 = smul.addr %s164, 32
          %s169 = sadd.s32 %s167, %s168
          %s170 = smul.addr %s169, 8
          %s171 = scalar_lea.vmem %s0, %s170
          %s172 = smul.u32 16, %s24
        $region20: #{decoder_features_nhwc.8} parent=15 // pred_fallthru
          _
        // Predicated region
        $region21: #{decoder_features_nhwc.8} parent=15 // pred_check
          %p173 = pneg %p78
        $region22: #{decoder_features_nhwc.8} parent=15 // pred_check_branch
          %175 = sbr.rel (%p173) target = $region24
        $region23: #{decoder_features_nhwc.8} parent=15 // pred_region
          %s176 = sand.u32 %s68, 1
          %s177 = scalar_lea.sflag [#allocation3], %s176
          %s178 = sand.u32 %s68, 1
          %s179 = smul.addr %s178, 256
          %s180 = scalar_lea.vmem [#allocation2], %s179
          %s181 = smul.u32 16, %s24
          %s183 = ssub.s32 4096, 4096
          %184 = vsyncadd %s177, %s183
          %s185 = smul.addr %s181, 2
          %s186 = smul.addr %s23, 32
          %s187 = sadd.s32 %s185, %s186
          %s188 = smul.addr %s187, 128
          %s189 = scalar_lea.hbm %s1, %s188
          %s190 = sshll.u32 %s180, 4
          %s191 = int_to_ptr.vmem [resolvable:$true] %s190
          %196 = dma.hbm_to_vmem [thread:$0]  %s189, 4096, %s191, %s177, 128, 128, 8
        $region24: #{decoder_features_nhwc.8} parent=15 // pred_fallthru
          _
      $region16: #{decoder_features_nhwc.8} parent=5 // pred_fallthru
        _
      %p197 = scmp.le.s32.totalorder 1, %s16
      %p198 = scmp.lt.s32.totalorder %s16, 3
      %p199 = pnand %p197, %p198
      %p200 = pneg %p199
      // Predicated region
      $region25: #{decoder_features_nhwc.8} parent=5 // pred_check
        _
      $region26: #{decoder_features_nhwc.8} parent=5 // pred_check_branch
        %202 = sbr.rel (%p199) target = $region28
      $region27: #{decoder_features_nhwc.8} parent=5 // pred_region
        %s203 = ssub.s32 %s16, 1
        %s204 = sand.u32 %s71, 1
        %s205 = scalar_lea.sflag [#allocation3], %s204
        %s206 = sand.u32 %s71, 1
        %s207 = smul.addr %s206, 256
        %s208 = scalar_lea.vmem [#allocation2], %s207
        // Predicated region
        $region29: #{decoder_features_nhwc.8} parent=27 // pred_check
          %p209 = pneg %p84
        $region30: #{decoder_features_nhwc.8} parent=27 // pred_check_branch
          %211 = sbr.rel (%p209) target = $region32
        $region31: #{decoder_features_nhwc.8} parent=27 // pred_region
          %212 = dma.done %s205, 4096
        $region32: #{decoder_features_nhwc.8} parent=27 // pred_fallthru
          _
        %s213 = smul.u32 16, %s26
        %p214 = scmp.lt.s32.totalorder %s25, 1
        %s215 = scalar_select %p214, %s25, 1
        %p216 = scmp.lt.s32.totalorder %s213, 15
        %s217 = scalar_select %p216, %s213, 15
        %s218 = smul.addr %s217, 2
        %s219 = smul.addr %s215, 32
        %s220 = sadd.s32 %s218, %s219
        %s221 = smul.addr %s220, 8
        %s222 = scalar_lea.vmem %s0, %s221
        %p223 = pneg %p56
        %p224 = pneg %p53
        %s225 = sand.u32 %s71, 1
        %s226 = scalar_lea.sflag [#allocation3], %s225
        %s227 = sand.u32 %s71, 1
        %s228 = smul.addr %s227, 256
        %s229 = scalar_lea.vmem [#allocation2], %s228
        %p230 = pneg %p84
        %p231 = pneg %p81
        %p232 = pneg %p112
        %p233 = pneg %p109
        %s234 = sand.u32 %s99, 1
        %s235 = scalar_lea.sflag [#allocation4], %s234
        %s236 = sand.u32 %s99, 1
        %s237 = smul.addr %s236, 256
        %s238 = scalar_lea.vmem [#allocation5], %s237
        %p239 = pneg %p140
        %p240 = pneg %p137
        %s241 = smul.u32 16, %s26
        %p242 = scmp.lt.s32.totalorder %s25, 1
        %s243 = scalar_select %p242, %s25, 1
        %p244 = scmp.lt.s32.totalorder %s241, 15
        %s245 = scalar_select %p244, %s241, 15
        %s246 = smul.addr %s245, 2
        %s247 = smul.addr %s243, 32
        %s248 = sadd.s32 %s246, %s247
        %s249 = smul.addr %s248, 8
        %s250 = scalar_lea.vmem %s3, %s249
        %s251 = smul.u32 16, %s26
        %p252 = scmp.lt.s32.totalorder %s25, 1
        %s253 = scalar_select %p252, %s25, 1
        %p254 = scmp.lt.s32.totalorder %s251, 15
        %s255 = scalar_select %p254, %s251, 15
        %s256 = smul.addr %s255, 2
        %s257 = smul.addr %s253, 32
        %s258 = sadd.s32 %s256, %s257
        %s259 = smul.addr %s258, 8
        %s260 = scalar_lea.vmem %s0, %s259
        %s261 = smul.u32 16, %s26
        %s262 = smul.u32 16, %s26
        %s263 = smul.u32 16, %s26
        %s264 = smul.u32 16, %s26
        %p265 = scmp.lt.s32.totalorder %s25, 1
        %s266 = scalar_select %p265, %s25, 1
        %p267 = scmp.lt.s32.totalorder %s264, 15
        %s268 = scalar_select %p267, %s264, 15
        %s269 = smul.addr %s268, 2
        %s270 = smul.addr %s266, 32
        %s271 = sadd.s32 %s269, %s270
        %s272 = smul.addr %s271, 8
        %s273 = scalar_lea.vmem %s3, %s272
        %s274 = smul.u32 16, %s26
        %v275 = vld [vmem:[%s260] sm:$0xff]
        %v276 = vld [vmem:[%s260 + $0x8] sm:$0xff]
        %v277 = vld [vmem:[%s260 + $0x10] sm:$0xff]
        %v278 = vld [vmem:[%s260 + $0x18] sm:$0xff]
        %v279 = vld [vmem:[%s260 + $0x20] sm:$0xff]
        %v280 = vld [vmem:[%s260 + $0x28] sm:$0xff]
        %v281 = vld [vmem:[%s260 + $0x30] sm:$0xff]
        %v282 = vld [vmem:[%s260 + $0x38] sm:$0xff]
        %v283 = vld [vmem:[%s260 + $0x40] sm:$0xff]
        %v284 = vld [vmem:[%s260 + $0x48] sm:$0xff]
        %v285 = vld [vmem:[%s260 + $0x50] sm:$0xff]
        %v286 = vld [vmem:[%s260 + $0x58] sm:$0xff]
        %v287 = vld [vmem:[%s260 + $0x60] sm:$0xff]
        %v288 = vld [vmem:[%s260 + $0x68] sm:$0xff]
        %v289 = vld [vmem:[%s260 + $0x70] sm:$0xff]
        %v290 = vld [vmem:[%s260 + $0x78] sm:$0xff]
        %v291 = vld [vmem:[%s260 + $0x80] sm:$0xff]
        %v292 = vld [vmem:[%s260 + $0x88] sm:$0xff]
        %v293 = vld [vmem:[%s260 + $0x90] sm:$0xff]
        %v294 = vld [vmem:[%s260 + $0x98] sm:$0xff]
        %v295 = vld [vmem:[%s260 + $0xa0] sm:$0xff]
        %v296 = vld [vmem:[%s260 + $0xa8] sm:$0xff]
        %v297 = vld [vmem:[%s260 + $0xb0] sm:$0xff]
        %v298 = vld [vmem:[%s260 + $0xb8] sm:$0xff]
        %v299 = vld [vmem:[%s260 + $0xc0] sm:$0xff]
        %v300 = vld [vmem:[%s260 + $0xc8] sm:$0xff]
        %v301 = vld [vmem:[%s260 + $0xd0] sm:$0xff]
        %v302 = vld [vmem:[%s260 + $0xd8] sm:$0xff]
        %v303 = vld [vmem:[%s260 + $0xe0] sm:$0xff]
        %v304 = vld [vmem:[%s260 + $0xe8] sm:$0xff]
        %v305 = vld [vmem:[%s260 + $0xf0] sm:$0xff]
        %v306 = vld [vmem:[%s260 + $0xf8] sm:$0xff]
        %v307 = vld [vmem:[%s208] sm:$0xff]
        %v308 = vld [vmem:[%s208 + $0x8] sm:$0xff]
        %v309 = vld [vmem:[%s208 + $0x10] sm:$0xff]
        %v310 = vld [vmem:[%s208 + $0x18] sm:$0xff]
        %v311 = vld [vmem:[%s208 + $0x20] sm:$0xff]
        %v312 = vld [vmem:[%s208 + $0x28] sm:$0xff]
        %v313 = vld [vmem:[%s208 + $0x30] sm:$0xff]
        %v314 = vld [vmem:[%s208 + $0x38] sm:$0xff]
        %v315 = vld [vmem:[%s208 + $0x40] sm:$0xff]
        %v316 = vld [vmem:[%s208 + $0x48] sm:$0xff]
        %v317 = vld [vmem:[%s208 + $0x50] sm:$0xff]
        %v318 = vld [vmem:[%s208 + $0x58] sm:$0xff]
        %v319 = vld [vmem:[%s208 + $0x60] sm:$0xff]
        %v320 = vld [vmem:[%s208 + $0x68] sm:$0xff]
        %v321 = vld [vmem:[%s208 + $0x70] sm:$0xff]
        %v322 = vld [vmem:[%s208 + $0x78] sm:$0xff]
        %v323 = vld [vmem:[%s208 + $0x80] sm:$0xff]
        %v324 = vld [vmem:[%s208 + $0x88] sm:$0xff]
        %v325 = vld [vmem:[%s208 + $0x90] sm:$0xff]
        %v326 = vld [vmem:[%s208 + $0x98] sm:$0xff]
        %v327 = vld [vmem:[%s208 + $0xa0] sm:$0xff]
        %v328 = vld [vmem:[%s208 + $0xa8] sm:$0xff]
        %v329 = vld [vmem:[%s208 + $0xb0] sm:$0xff]
        %v330 = vld [vmem:[%s208 + $0xb8] sm:$0xff]
        %v331 = vld [vmem:[%s208 + $0xc0] sm:$0xff]
        %v332 = vld [vmem:[%s208 + $0xc8] sm:$0xff]
        %v333 = vld [vmem:[%s208 + $0xd0] sm:$0xff]
        %v334 = vld [vmem:[%s208 + $0xd8] sm:$0xff]
        %v335 = vld [vmem:[%s208 + $0xe0] sm:$0xff]
        %v336 = vld [vmem:[%s208 + $0xe8] sm:$0xff]
        %v337 = vld [vmem:[%s208 + $0xf0] sm:$0xff]
        %v338 = vld [vmem:[%s208 + $0xf8] sm:$0xff]
        %340 = vset.pattern.permute.xlu0 0
        %341 = vperm.xlu0 %340, %v275
        %v342 = vpop.permute.xlu0 %341
        %345 = vset.pattern.permute.xlu0 0
        %346 = vperm.xlu0 %345, %v276
        %v347 = vpop.permute.xlu0 %346
        %350 = vset.pattern.permute.xlu0 0
        %351 = vperm.xlu0 %350, %v277
        %v352 = vpop.permute.xlu0 %351
        %355 = vset.pattern.permute.xlu0 0
        %356 = vperm.xlu0 %355, %v278
        %v357 = vpop.permute.xlu0 %356
        %360 = vset.pattern.permute.xlu0 0
        %361 = vperm.xlu0 %360, %v279
        %v362 = vpop.permute.xlu0 %361
        %365 = vset.pattern.permute.xlu0 0
        %366 = vperm.xlu0 %365, %v280
        %v367 = vpop.permute.xlu0 %366
        %370 = vset.pattern.permute.xlu0 0
        %371 = vperm.xlu0 %370, %v281
        %v372 = vpop.permute.xlu0 %371
        %375 = vset.pattern.permute.xlu0 0
        %376 = vperm.xlu0 %375, %v282
        %v377 = vpop.permute.xlu0 %376
        %380 = vset.pattern.permute.xlu0 0
        %381 = vperm.xlu0 %380, %v283
        %v382 = vpop.permute.xlu0 %381
        %385 = vset.pattern.permute.xlu0 0
        %386 = vperm.xlu0 %385, %v284
        %v387 = vpop.permute.xlu0 %386
        %390 = vset.pattern.permute.xlu0 0
        %391 = vperm.xlu0 %390, %v285
        %v392 = vpop.permute.xlu0 %391
        %395 = vset.pattern.permute.xlu0 0
        %396 = vperm.xlu0 %395, %v286
        %v397 = vpop.permute.xlu0 %396
        %400 = vset.pattern.permute.xlu0 0
        %401 = vperm.xlu0 %400, %v287
        %v402 = vpop.permute.xlu0 %401
        %405 = vset.pattern.permute.xlu0 0
        %406 = vperm.xlu0 %405, %v288
        %v407 = vpop.permute.xlu0 %406
        %410 = vset.pattern.permute.xlu0 0
        %411 = vperm.xlu0 %410, %v289
        %v412 = vpop.permute.xlu0 %411
        %415 = vset.pattern.permute.xlu0 0
        %416 = vperm.xlu0 %415, %v290
        %v417 = vpop.permute.xlu0 %416
        %420 = vset.pattern.permute.xlu0 0
        %421 = vperm.xlu0 %420, %v291
        %v422 = vpop.permute.xlu0 %421
        %425 = vset.pattern.permute.xlu0 0
        %426 = vperm.xlu0 %425, %v292
        %v427 = vpop.permute.xlu0 %426
        %430 = vset.pattern.permute.xlu0 0
        %431 = vperm.xlu0 %430, %v293
        %v432 = vpop.permute.xlu0 %431
        %435 = vset.pattern.permute.xlu0 0
        %436 = vperm.xlu0 %435, %v294
        %v437 = vpop.permute.xlu0 %436
        %440 = vset.pattern.permute.xlu0 0
        %441 = vperm.xlu0 %440, %v295
        %v442 = vpop.permute.xlu0 %441
        %445 = vset.pattern.permute.xlu0 0
        %446 = vperm.xlu0 %445, %v296
        %v447 = vpop.permute.xlu0 %446
        %450 = vset.pattern.permute.xlu0 0
        %451 = vperm.xlu0 %450, %v297
        %v452 = vpop.permute.xlu0 %451
        %455 = vset.pattern.permute.xlu0 0
        %456 = vperm.xlu0 %455, %v298
        %v457 = vpop.permute.xlu0 %456
        %460 = vset.pattern.permute.xlu0 0
        %461 = vperm.xlu0 %460, %v299
        %v462 = vpop.permute.xlu0 %461
        %465 = vset.pattern.permute.xlu0 0
        %466 = vperm.xlu0 %465, %v300
        %v467 = vpop.permute.xlu0 %466
        %470 = vset.pattern.permute.xlu0 0
        %471 = vperm.xlu0 %470, %v301
        %v472 = vpop.permute.xlu0 %471
        %475 = vset.pattern.permute.xlu0 0
        %476 = vperm.xlu0 %475, %v302
        %v477 = vpop.permute.xlu0 %476
        %480 = vset.pattern.permute.xlu0 0
        %481 = vperm.xlu0 %480, %v303
        %v482 = vpop.permute.xlu0 %481
        %485 = vset.pattern.permute.xlu0 0
        %486 = vperm.xlu0 %485, %v304
        %v487 = vpop.permute.xlu0 %486
        %490 = vset.pattern.permute.xlu0 0
        %491 = vperm.xlu0 %490, %v305
        %v492 = vpop.permute.xlu0 %491
        %495 = vset.pattern.permute.xlu0 0
        %496 = vperm.xlu0 %495, %v306
        %v497 = vpop.permute.xlu0 %496
        %v499 = vadd.f32 %v342, %v307
        %v500 = vadd.f32 %v347, %v308
        %v501 = vadd.f32 %v352, %v309
        %v502 = vadd.f32 %v357, %v310
        %v503 = vadd.f32 %v362, %v311
        %v504 = vadd.f32 %v367, %v312
        %v505 = vadd.f32 %v372, %v313
        %v506 = vadd.f32 %v377, %v314
        %v507 = vadd.f32 %v382, %v315
        %v508 = vadd.f32 %v387, %v316
        %v509 = vadd.f32 %v392, %v317
        %v510 = vadd.f32 %v397, %v318
        %v511 = vadd.f32 %v402, %v319
        %v512 = vadd.f32 %v407, %v320
        %v513 = vadd.f32 %v412, %v321
        %v514 = vadd.f32 %v417, %v322
        %v515 = vadd.f32 %v422, %v323
        %v516 = vadd.f32 %v427, %v324
        %v517 = vadd.f32 %v432, %v325
        %v518 = vadd.f32 %v437, %v326
        %v519 = vadd.f32 %v442, %v327
        %v520 = vadd.f32 %v447, %v328
        %v521 = vadd.f32 %v452, %v329
        %v522 = vadd.f32 %v457, %v330
        %v523 = vadd.f32 %v462, %v331
        %v524 = vadd.f32 %v467, %v332
        %v525 = vadd.f32 %v472, %v333
        %v526 = vadd.f32 %v477, %v334
        %v527 = vadd.f32 %v482, %v335
        %v528 = vadd.f32 %v487, %v336
        %v529 = vadd.f32 %v492, %v337
        %v530 = vadd.f32 %v497, %v338
        %vm531 = vcmask 523264
        %532 = vst.msk [vmem:[%s238] sm:$0xff] %vm531, %v499
        %533 = vst.msk [vmem:[%s238 + $0x8] sm:$0xff] %vm531, %v500
        %534 = vst.msk [vmem:[%s238 + $0x10] sm:$0xff] %vm531, %v501
        %535 = vst.msk [vmem:[%s238 + $0x18] sm:$0xff] %vm531, %v502
        %536 = vst.msk [vmem:[%s238 + $0x20] sm:$0xff] %vm531, %v503
        %537 = vst.msk [vmem:[%s238 + $0x28] sm:$0xff] %vm531, %v504
        %538 = vst.msk [vmem:[%s238 + $0x30] sm:$0xff] %vm531, %v505
        %539 = vst.msk [vmem:[%s238 + $0x38] sm:$0xff] %vm531, %v506
        %540 = vst.msk [vmem:[%s238 + $0x40] sm:$0xff] %vm531, %v507
        %541 = vst.msk [vmem:[%s238 + $0x48] sm:$0xff] %vm531, %v508
        %542 = vst.msk [vmem:[%s238 + $0x50] sm:$0xff] %vm531, %v509
        %543 = vst.msk [vmem:[%s238 + $0x58] sm:$0xff] %vm531, %v510
        %544 = vst.msk [vmem:[%s238 + $0x60] sm:$0xff] %vm531, %v511
        %545 = vst.msk [vmem:[%s238 + $0x68] sm:$0xff] %vm531, %v512
        %546 = vst.msk [vmem:[%s238 + $0x70] sm:$0xff] %vm531, %v513
        %547 = vst.msk [vmem:[%s238 + $0x78] sm:$0xff] %vm531, %v514
        %548 = vst.msk [vmem:[%s238 + $0x80] sm:$0xff] %vm531, %v515
        %549 = vst.msk [vmem:[%s238 + $0x88] sm:$0xff] %vm531, %v516
        %550 = vst.msk [vmem:[%s238 + $0x90] sm:$0xff] %vm531, %v517
        %551 = vst.msk [vmem:[%s238 + $0x98] sm:$0xff] %vm531, %v518
        %552 = vst.msk [vmem:[%s238 + $0xa0] sm:$0xff] %vm531, %v519
        %553 = vst.msk [vmem:[%s238 + $0xa8] sm:$0xff] %vm531, %v520
        %554 = vst.msk [vmem:[%s238 + $0xb0] sm:$0xff] %vm531, %v521
        %555 = vst.msk [vmem:[%s238 + $0xb8] sm:$0xff] %vm531, %v522
        %556 = vst.msk [vmem:[%s238 + $0xc0] sm:$0xff] %vm531, %v523
        %557 = vst.msk [vmem:[%s238 + $0xc8] sm:$0xff] %vm531, %v524
        %558 = vst.msk [vmem:[%s238 + $0xd0] sm:$0xff] %vm531, %v525
        %559 = vst.msk [vmem:[%s238 + $0xd8] sm:$0xff] %vm531, %v526
        %560 = vst.msk [vmem:[%s238 + $0xe0] sm:$0xff] %vm531, %v527
        %561 = vst.msk [vmem:[%s238 + $0xe8] sm:$0xff] %vm531, %v528
        %562 = vst.msk [vmem:[%s238 + $0xf0] sm:$0xff] %vm531, %v529
        %563 = vst.msk [vmem:[%s238 + $0xf8] sm:$0xff] %vm531, %v530
        %v564 = vsel %vm531, %v499, 0.0
        %565 = vadd.xlane.f32.xlu0 %v564
        %v566 = vpop.xlane.xlu0 %565
        %v567 = vsel %vm531, %v500, 0.0
        %568 = vadd.xlane.f32.xlu0 %v567
        %v569 = vpop.xlane.xlu0 %568
        %v570 = vsel %vm531, %v501, 0.0
        %571 = vadd.xlane.f32.xlu0 %v570
        %v572 = vpop.xlane.xlu0 %571
        %v573 = vsel %vm531, %v502, 0.0
        %574 = vadd.xlane.f32.xlu0 %v573
        %v575 = vpop.xlane.xlu0 %574
        %v576 = vsel %vm531, %v503, 0.0
        %577 = vadd.xlane.f32.xlu0 %v576
        %v578 = vpop.xlane.xlu0 %577
        %v579 = vsel %vm531, %v504, 0.0
        %580 = vadd.xlane.f32.xlu0 %v579
        %v581 = vpop.xlane.xlu0 %580
        %v582 = vsel %vm531, %v505, 0.0
        %583 = vadd.xlane.f32.xlu0 %v582
        %v584 = vpop.xlane.xlu0 %583
        %v585 = vsel %vm531, %v506, 0.0
        %586 = vadd.xlane.f32.xlu0 %v585
        %v587 = vpop.xlane.xlu0 %586
        %v588 = vsel %vm531, %v507, 0.0
        %589 = vadd.xlane.f32.xlu0 %v588
        %v590 = vpop.xlane.xlu0 %589
        %v591 = vsel %vm531, %v508, 0.0
        %592 = vadd.xlane.f32.xlu0 %v591
        %v593 = vpop.xlane.xlu0 %592
        %v594 = vsel %vm531, %v509, 0.0
        %595 = vadd.xlane.f32.xlu0 %v594
        %v596 = vpop.xlane.xlu0 %595
        %v597 = vsel %vm531, %v510, 0.0
        %598 = vadd.xlane.f32.xlu0 %v597
        %v599 = vpop.xlane.xlu0 %598
        %v600 = vsel %vm531, %v511, 0.0
        %601 = vadd.xlane.f32.xlu0 %v600
        %v602 = vpop.xlane.xlu0 %601
        %v603 = vsel %vm531, %v512, 0.0
        %604 = vadd.xlane.f32.xlu0 %v603
        %v605 = vpop.xlane.xlu0 %604
        %v606 = vsel %vm531, %v513, 0.0
        %607 = vadd.xlane.f32.xlu0 %v606
        %v608 = vpop.xlane.xlu0 %607
        %v609 = vsel %vm531, %v514, 0.0
        %610 = vadd.xlane.f32.xlu0 %v609
        %v611 = vpop.xlane.xlu0 %610
        %v612 = vsel %vm531, %v515, 0.0
        %613 = vadd.xlane.f32.xlu0 %v612
        %v614 = vpop.xlane.xlu0 %613
        %v615 = vsel %vm531, %v516, 0.0
        %616 = vadd.xlane.f32.xlu0 %v615
        %v617 = vpop.xlane.xlu0 %616
        %v618 = vsel %vm531, %v517, 0.0
        %619 = vadd.xlane.f32.xlu0 %v618
        %v620 = vpop.xlane.xlu0 %619
        %v621 = vsel %vm531, %v518, 0.0
        %622 = vadd.xlane.f32.xlu0 %v621
        %v623 = vpop.xlane.xlu0 %622
        %v624 = vsel %vm531, %v519, 0.0
        %625 = vadd.xlane.f32.xlu0 %v624
        %v626 = vpop.xlane.xlu0 %625
        %v627 = vsel %vm531, %v520, 0.0
        %628 = vadd.xlane.f32.xlu0 %v627
        %v629 = vpop.xlane.xlu0 %628
        %v630 = vsel %vm531, %v521, 0.0
        %631 = vadd.xlane.f32.xlu0 %v630
        %v632 = vpop.xlane.xlu0 %631
        %v633 = vsel %vm531, %v522, 0.0
        %634 = vadd.xlane.f32.xlu0 %v633
        %v635 = vpop.xlane.xlu0 %634
        %v636 = vsel %vm531, %v523, 0.0
        %637 = vadd.xlane.f32.xlu0 %v636
        %v638 = vpop.xlane.xlu0 %637
        %v639 = vsel %vm531, %v524, 0.0
        %640 = vadd.xlane.f32.xlu0 %v639
        %v641 = vpop.xlane.xlu0 %640
        %v642 = vsel %vm531, %v525, 0.0
        %643 = vadd.xlane.f32.xlu0 %v642
        %v644 = vpop.xlane.xlu0 %643
        %v645 = vsel %vm531, %v526, 0.0
        %646 = vadd.xlane.f32.xlu0 %v645
        %v647 = vpop.xlane.xlu0 %646
        %v648 = vsel %vm531, %v527, 0.0
        %649 = vadd.xlane.f32.xlu0 %v648
        %v650 = vpop.xlane.xlu0 %649
        %v651 = vsel %vm531, %v528, 0.0
        %652 = vadd.xlane.f32.xlu0 %v651
        %v653 = vpop.xlane.xlu0 %652
        %v654 = vsel %vm531, %v529, 0.0
        %655 = vadd.xlane.f32.xlu0 %v654
        %v656 = vpop.xlane.xlu0 %655
        %v657 = vsel %vm531, %v530, 0.0
        %658 = vadd.xlane.f32.xlu0 %v657
        %v659 = vpop.xlane.xlu0 %658
        %v660 = vrcp.pop 64.0
        %v661 = vmul.f32 %v566, %v660
        %v662 = vmul.f32 %v569, %v660
        %v663 = vmul.f32 %v572, %v660
        %v664 = vmul.f32 %v575, %v660
        %v665 = vmul.f32 %v578, %v660
        %v666 = vmul.f32 %v581, %v660
        %v667 = vmul.f32 %v584, %v660
        %v668 = vmul.f32 %v587, %v660
        %v669 = vmul.f32 %v590, %v660
        %v670 = vmul.f32 %v593, %v660
        %v671 = vmul.f32 %v596, %v660
        %v672 = vmul.f32 %v599, %v660
        %v673 = vmul.f32 %v602, %v660
        %v674 = vmul.f32 %v605, %v660
        %v675 = vmul.f32 %v608, %v660
        %v676 = vmul.f32 %v611, %v660
        %v677 = vmul.f32 %v614, %v660
        %v678 = vmul.f32 %v617, %v660
        %v679 = vmul.f32 %v620, %v660
        %v680 = vmul.f32 %v623, %v660
        %v681 = vmul.f32 %v626, %v660
        %v682 = vmul.f32 %v629, %v660
        %v683 = vmul.f32 %v632, %v660
        %v684 = vmul.f32 %v635, %v660
        %v685 = vmul.f32 %v638, %v660
        %v686 = vmul.f32 %v641, %v660
        %v687 = vmul.f32 %v644, %v660
        %v688 = vmul.f32 %v647, %v660
        %v689 = vmul.f32 %v650, %v660
        %v690 = vmul.f32 %v653, %v660
        %v691 = vmul.f32 %v656, %v660
        %v692 = vmul.f32 %v659, %v660
        %vm693 = vcmask 7168
        %694 = vst.msk [vmem:[%s273] sm:$0xff] %vm693, %v661
        %695 = vst.msk [vmem:[%s273 + $0x8] sm:$0xff] %vm693, %v662
        %696 = vst.msk [vmem:[%s273 + $0x10] sm:$0xff] %vm693, %v663
        %697 = vst.msk [vmem:[%s273 + $0x18] sm:$0xff] %vm693, %v664
        %698 = vst.msk [vmem:[%s273 + $0x20] sm:$0xff] %vm693, %v665
        %699 = vst.msk [vmem:[%s273 + $0x28] sm:$0xff] %vm693, %v666
        %700 = vst.msk [vmem:[%s273 + $0x30] sm:$0xff] %vm693, %v667
        %701 = vst.msk [vmem:[%s273 + $0x38] sm:$0xff] %vm693, %v668
        %702 = vst.msk [vmem:[%s273 + $0x40] sm:$0xff] %vm693, %v669
        %703 = vst.msk [vmem:[%s273 + $0x48] sm:$0xff] %vm693, %v670
        %704 = vst.msk [vmem:[%s273 + $0x50] sm:$0xff] %vm693, %v671
        %705 = vst.msk [vmem:[%s273 + $0x58] sm:$0xff] %vm693, %v672
        %706 = vst.msk [vmem:[%s273 + $0x60] sm:$0xff] %vm693, %v673
        %707 = vst.msk [vmem:[%s273 + $0x68] sm:$0xff] %vm693, %v674
        %708 = vst.msk [vmem:[%s273 + $0x70] sm:$0xff] %vm693, %v675
        %709 = vst.msk [vmem:[%s273 + $0x78] sm:$0xff] %vm693, %v676
        %710 = vst.msk [vmem:[%s273 + $0x80] sm:$0xff] %vm693, %v677
        %711 = vst.msk [vmem:[%s273 + $0x88] sm:$0xff] %vm693, %v678
        %712 = vst.msk [vmem:[%s273 + $0x90] sm:$0xff] %vm693, %v679
        %713 = vst.msk [vmem:[%s273 + $0x98] sm:$0xff] %vm693, %v680
        %714 = vst.msk [vmem:[%s273 + $0xa0] sm:$0xff] %vm693, %v681
        %715 = vst.msk [vmem:[%s273 + $0xa8] sm:$0xff] %vm693, %v682
        %716 = vst.msk [vmem:[%s273 + $0xb0] sm:$0xff] %vm693, %v683
        %717 = vst.msk [vmem:[%s273 + $0xb8] sm:$0xff] %vm693, %v684
        %718 = vst.msk [vmem:[%s273 + $0xc0] sm:$0xff] %vm693, %v685
        %719 = vst.msk [vmem:[%s273 + $0xc8] sm:$0xff] %vm693, %v686
        %720 = vst.msk [vmem:[%s273 + $0xd0] sm:$0xff] %vm693, %v687
        %721 = vst.msk [vmem:[%s273 + $0xd8] sm:$0xff] %vm693, %v688
        %722 = vst.msk [vmem:[%s273 + $0xe0] sm:$0xff] %vm693, %v689
        %723 = vst.msk [vmem:[%s273 + $0xe8] sm:$0xff] %vm693, %v690
        %724 = vst.msk [vmem:[%s273 + $0xf0] sm:$0xff] %vm693, %v691
        %725 = vst.msk [vmem:[%s273 + $0xf8] sm:$0xff] %vm693, %v692
        %s726 = sand.u32 %s99, 1
        %s727 = scalar_lea.sflag [#allocation4], %s726
        %s728 = sand.u32 %s99, 1
        %s729 = smul.addr %s728, 256
        %s730 = scalar_lea.vmem [#allocation5], %s729
        %s731 = smul.u32 16, %s26
        %p732 = scmp.lt.s32.totalorder %s25, 1
        %s733 = scalar_select %p732, %s25, 1
        %p734 = scmp.lt.s32.totalorder %s731, 15
        %s735 = scalar_select %p734, %s731, 15
        %s736 = smul.addr %s735, 2
        %s737 = smul.addr %s733, 32
        %s738 = sadd.s32 %s736, %s737
        %s739 = smul.addr %s738, 8
        %s740 = scalar_lea.vmem %s3, %s739
        // Predicated region
        $region33: #{decoder_features_nhwc.8} parent=27 // pred_check
          %p741 = pneg %p109
        $region34: #{decoder_features_nhwc.8} parent=27 // pred_check_branch
          %743 = sbr.rel (%p741) target = $region36
        $region35: #{decoder_features_nhwc.8} parent=27 // pred_region
          %s744 = smul.u32 16, %s26
          %s746 = ssub.s32 4096, 4096
          %747 = vsyncadd %s727, %s746
          %s748 = smul.addr %s744, 2
          %s749 = smul.addr %s25, 32
          %s750 = sadd.s32 %s748, %s749
          %s751 = smul.addr %s750, 128
          %s752 = scalar_lea.hbm %s2, %s751
          %s753 = sshll.u32 %s730, 4
          %s754 = int_to_ptr.vmem [resolvable:$true] %s753
          %759 = dma.vmem_to_hbm [thread:$0]  %s754, 4096, %s752, %s727, 128, 128, 8
        $region36: #{decoder_features_nhwc.8} parent=27 // pred_fallthru
          _
        // Predicated region
        $region37: #{decoder_features_nhwc.8} parent=27 // pred_check
          %p760 = pneg %p137
        $region38: #{decoder_features_nhwc.8} parent=27 // pred_check_branch
          %762 = sbr.rel (%p760) target = $region40
        $region39: #{decoder_features_nhwc.8} parent=27 // pred_region
          %s763 = smul.u32 16, %s26
        $region40: #{decoder_features_nhwc.8} parent=27 // pred_fallthru
          _
      $region28: #{decoder_features_nhwc.8} parent=5 // pred_fallthru
        _
      %p764 = scmp.le.s32.totalorder 2, %s16
      // Predicated region
      $region41: #{decoder_features_nhwc.8} parent=5 // pred_check
        %p765 = pneg %p764
      $region42: #{decoder_features_nhwc.8} parent=5 // pred_check_branch
        %767 = sbr.rel (%p765) target = $region44
      $region43: #{decoder_features_nhwc.8} parent=5 // pred_region
        %s768 = ssub.s32 %s16, 2
        // Predicated region
        $region45: #{decoder_features_nhwc.8} parent=43 // pred_check
          %p769 = pneg %p115
        $region46: #{decoder_features_nhwc.8} parent=43 // pred_check_branch
          %771 = sbr.rel (%p769) target = $region48
        $region47: #{decoder_features_nhwc.8} parent=43 // pred_region
          %s772 = sand.u32 %s100, 1
          %s773 = scalar_lea.sflag [#allocation4], %s772
          %s774 = sand.u32 %s100, 1
          %s775 = smul.addr %s774, 256
          %s776 = scalar_lea.vmem [#allocation5], %s775
          %777 = dma.done %s773, 4096
        $region48: #{decoder_features_nhwc.8} parent=43 // pred_fallthru
          _
        // Predicated region
        $region49: #{decoder_features_nhwc.8} parent=43 // pred_check
          %p778 = pneg %p143
        $region50: #{decoder_features_nhwc.8} parent=43 // pred_check_branch
          %780 = sbr.rel (%p778) target = $region52
        $region51: #{decoder_features_nhwc.8} parent=43 // pred_region
          %s781 = smul.u32 16, %s28
          %p782 = scmp.lt.s32.totalorder %s27, 1
          %s783 = scalar_select %p782, %s27, 1
          %p784 = scmp.lt.s32.totalorder %s781, 15
          %s785 = scalar_select %p784, %s781, 15
          %s786 = smul.addr %s785, 2
          %s787 = smul.addr %s783, 32
          %s788 = sadd.s32 %s786, %s787
          %s789 = smul.addr %s788, 8
          %s790 = scalar_lea.vmem %s3, %s789
        $region52: #{decoder_features_nhwc.8} parent=43 // pred_fallthru
          _
      $region44: #{decoder_features_nhwc.8} parent=5 // pred_fallthru
        _
    $region6: #{decoder_features_nhwc.8} parent=1 // loop_footer
      %s20 = sadd.s32 1, %s16
    $region7: #{decoder_features_nhwc.8} parent=1 // loop_footer_branch
      %15 = sbr.rel target = $region3
    $region8: #{decoder_features_nhwc.8} parent=1 // loop_exit
      _
    %791 = vsyncpa [#allocation3], 1
    %s792 = scalar_lea.sflag [#allocation3], 1
    %793 = vsyncpa %s792, 1
    %794 = vsyncpa [#allocation4], 1
    %s795 = scalar_lea.sflag [#allocation4], 1
    %796 = vsyncpa %s795, 1

// kernel: decoder_features_nhwc.9
$region0: #{decoder_features_nhwc.9}
  #allocation0 [shape = 'u32[]', space=smem, size = 0x4, offset = 0x4, fixed_abs, tag = 'smem constant byte address 0x4 - core index']
  #allocation1 [shape = 'u32[144,128]{1,0:T(1,128)}', space=vmem, size = 0x12000, scoped, tag = 'internal scratch']
  %s0 = inlined_call_operand.vmem [shape: f32[2,32,32,1], index: 0, kind: input, shape index: {}]
  %s1 = inlined_call_operand.vmem [shape: f32[2,32,32,64], index: 1, kind: input, shape index: {}]
  %s2 = inlined_call_operand.hbm [shape: f32[2,32,32,64], index: 2, kind: output, shape index: {0}]
  %s3 = inlined_call_operand.vmem [shape: f32[2,32,32,1], index: 3, kind: output, shape index: {1}]
  %4 = xla_tuple %s2, %s3
  %s5 = sld [smem:[#allocation0]]
  $region49: #{decoder_features_nhwc.9} parent=0
    _
  %s7 = ssub.s32 1, %s5
  %s8 = scalar_select 0, %s7, %s5
  $region1: #{decoder_features_nhwc.9} parent=0
    #allocation2 [shape = 'u8[1048576]{0}', space=vmem, size = 0x100000, scoped, tag = 'output window, operand 0']
    #allocation3 [shape = 's32[2]{0}', space=sflag, size = 0x8, scoped, tag = 'scoped memory for decoder_features_nhwc.9']
    %9 = vsyncpa [#allocation3], 0
    %s10 = scalar_lea.sflag [#allocation3], 1
    %11 = vsyncpa %s10, 0
    loop: start=0, step=1, limit=4
    $region2: #{decoder_features_nhwc.9} parent=1 // loop_pre_header
      _
    $region3: #{decoder_features_nhwc.9} parent=1 // loop_header
      %s13 = sphi 0, %s17
      %p14 = scmp.ge.s32.totalorder %s13, 4
      %s20 = sphi 0, %s32
      %s21 = sphi 0, %s28
      %s22 = sphi 0, %s20
      %s23 = sphi 0, %s21
      %s24 = sphi 0, %s22
      %s25 = sphi 0, %s23
      %s37 = sphi 0, %s39
      %s40 = sphi 0, %s37
      %s41 = sphi 0, %s40
      %s57 = sphi 0, %s41
      %s65 = sphi 0, %s67
      %s68 = sphi 0, %s65
      %s69 = sphi 0, %s68
      %s85 = sphi 0, %s69
      %s93 = sphi 0, %s95
      %s96 = sphi 0, %s93
      %s97 = sphi 0, %s96
      %s113 = sphi 0, %s97
      %s121 = sphi 0, %s123
      %s124 = sphi 0, %s121
      %s125 = sphi 0, %s124
      %s141 = sphi 0, %s125
    $region4: #{decoder_features_nhwc.9} parent=1 // loop_header_branch
      %16 = sbr.rel (%p14) target = $region8
    $region5: #{decoder_features_nhwc.9} parent=1 // loop_body
      %s18 = ssub.s32 %s13, 1
      %s19 = ssub.s32 %s13, 2
      %s26 = sadd.s32 1, %s21
      %p27 = scmp.ge.s32.totalorder %s26, 1
      %s28 = scalar_select %p27, 0, %s26
      %s29 = sadd.s32 1, %s20
      %s30 = scalar_select %p27, %s29, %s20
      %p31 = scmp.ge.s32.totalorder %s30, 2
      %s32 = scalar_select %p31, 0, %s30
      %s33 = ssub.s32 %s20, %s32
      %s34 = ssub.s32 %s21, %s28
      %s35 = sor.u32 %s33, %s34
      %p36 = scmp.eq.s32.totalorder %s35, 0
      %s38 = sadd.s32 %s37, 1
      %s39 = scalar_select %p36, %s37, %s38
      %p42 = pneg %p36
      %p43 = scmp.eq.s32.totalorder %s13, 1
      %p44 = por %p42, %p43
      %p45 = scmp.ne.s32.totalorder %s37, %s40
      %p46 = scmp.eq.s32.totalorder %s13, 0
      %p47 = por %p45, %p46
      %p48 = scmp.ne.s32.totalorder %s37, %s40
      %p49 = scmp.eq.s32.totalorder %s18, 1
      %p50 = por %p48, %p49
      %p51 = scmp.ne.s32.totalorder %s40, %s41
      %p52 = scmp.eq.s32.totalorder %s18, 0
      %p53 = por %p51, %p52
      %p54 = scmp.ne.s32.totalorder %s40, %s41
      %p55 = scmp.eq.s32.totalorder %s19, 1
      %p56 = por %p54, %p55
      %p58 = scmp.ne.s32.totalorder %s41, %s57
      %p59 = scmp.eq.s32.totalorder %s19, 0
      %p60 = por %p58, %p59
      %s61 = ssub.s32 %s20, %s32
      %s62 = ssub.s32 %s21, %s28
      %s63 = sor.u32 %s61, %s62
      %p64 = scmp.eq.s32.totalorder %s63, 0
      %s66 = sadd.s32 %s65, 1
      %s67 = scalar_select %p64, %s65, %s66
      %p70 = pneg %p64
      %p71 = scmp.eq.s32.totalorder %s13, 1
      %p72 = por %p70, %p71
      %p73 = scmp.ne.s32.totalorder %s65, %s68
      %p74 = scmp.eq.s32.totalorder %s13, 0
      %p75 = por %p73, %p74
      %p76 = scmp.ne.s32.totalorder %s65, %s68
      %p77 = scmp.eq.s32.totalorder %s18, 1
      %p78 = por %p76, %p77
      %p79 = scmp.ne.s32.totalorder %s68, %s69
      %p80 = scmp.eq.s32.totalorder %s18, 0
      %p81 = por %p79, %p80
      %p82 = scmp.ne.s32.totalorder %s68, %s69
      %p83 = scmp.eq.s32.totalorder %s19, 1
      %p84 = por %p82, %p83
      %p86 = scmp.ne.s32.totalorder %s69, %s85
      %p87 = scmp.eq.s32.totalorder %s19, 0
      %p88 = por %p86, %p87
      %s89 = ssub.s32 %s20, %s32
      %s90 = ssub.s32 %s21, %s28
      %s91 = sor.u32 %s89, %s90
      %p92 = scmp.eq.s32.totalorder %s91, 0
      %s94 = sadd.s32 %s93, 1
      %s95 = scalar_select %p92, %s93, %s94
      %p98 = pneg %p92
      %p99 = scmp.eq.s32.totalorder %s13, 1
      %p100 = por %p98, %p99
      %p101 = scmp.ne.s32.totalorder %s93, %s96
      %p102 = scmp.eq.s32.totalorder %s13, 0
      %p103 = por %p101, %p102
      %p104 = scmp.ne.s32.totalorder %s93, %s96
      %p105 = scmp.eq.s32.totalorder %s18, 1
      %p106 = por %p104, %p105
      %p107 = scmp.ne.s32.totalorder %s96, %s97
      %p108 = scmp.eq.s32.totalorder %s18, 0
      %p109 = por %p107, %p108
      %p110 = scmp.ne.s32.totalorder %s96, %s97
      %p111 = scmp.eq.s32.totalorder %s19, 1
      %p112 = por %p110, %p111
      %p114 = scmp.ne.s32.totalorder %s97, %s113
      %p115 = scmp.eq.s32.totalorder %s19, 0
      %p116 = por %p114, %p115
      %s117 = ssub.s32 %s20, %s32
      %s118 = ssub.s32 %s21, %s28
      %s119 = sor.u32 %s117, %s118
      %p120 = scmp.eq.s32.totalorder %s119, 0
      %s122 = sadd.s32 %s121, 1
      %s123 = scalar_select %p120, %s121, %s122
      %p126 = pneg %p120
      %p127 = scmp.eq.s32.totalorder %s13, 1
      %p128 = por %p126, %p127
      %p129 = scmp.ne.s32.totalorder %s121, %s124
      %p130 = scmp.eq.s32.totalorder %s13, 0
      %p131 = por %p129, %p130
      %p132 = scmp.ne.s32.totalorder %s121, %s124
      %p133 = scmp.eq.s32.totalorder %s18, 1
      %p134 = por %p132, %p133
      %p135 = scmp.ne.s32.totalorder %s124, %s125
      %p136 = scmp.eq.s32.totalorder %s18, 0
      %p137 = por %p135, %p136
      %p138 = scmp.ne.s32.totalorder %s124, %s125
      %p139 = scmp.eq.s32.totalorder %s19, 1
      %p140 = por %p138, %p139
      %p142 = scmp.ne.s32.totalorder %s125, %s141
      %p143 = scmp.eq.s32.totalorder %s19, 0
      %p144 = por %p142, %p143
      %p145 = scmp.le.s32.totalorder 1, %s13
      %p146 = scmp.lt.s32.totalorder %s13, 3
      %p147 = pnand %p145, %p146
      %p148 = pneg %p147
      // Predicated region
      $region9: #{decoder_features_nhwc.9} parent=5 // pred_check
        _
      $region10: #{decoder_features_nhwc.9} parent=5 // pred_check_branch
        %150 = sbr.rel (%p147) target = $region12
      $region11: #{decoder_features_nhwc.9} parent=5 // pred_region
        %s151 = ssub.s32 %s13, 1
      $region12: #{decoder_features_nhwc.9} parent=5 // pred_fallthru
        _
      %p152 = scmp.lt.s32.totalorder %s13, 2
      // Predicated region
      $region13: #{decoder_features_nhwc.9} parent=5 // pred_check
        %p153 = pneg %p152
      $region14: #{decoder_features_nhwc.9} parent=5 // pred_check_branch
        %155 = sbr.rel (%p153) target = $region16
      $region15: #{decoder_features_nhwc.9} parent=5 // pred_region
        // Predicated region
        $region17: #{decoder_features_nhwc.9} parent=15 // pred_check
          %p156 = pneg %p47
        $region18: #{decoder_features_nhwc.9} parent=15 // pred_check_branch
          %158 = sbr.rel (%p156) target = $region20
        $region19: #{decoder_features_nhwc.9} parent=15 // pred_region
          %s159 = smul.u32 32, %s21
          %p160 = scmp.lt.s32.totalorder %s20, 1
          %s161 = scalar_select %p160, %s20, 1
          %p162 = scmp.lt.s32.totalorder %s159, 31
          %s163 = scalar_select %p162, %s159, 31
          %s164 = smul.addr %s163, 4
          %s165 = smul.addr %s161, 128
          %s166 = sadd.s32 %s164, %s165
          %s167 = smul.addr %s166, 8
          %s168 = scalar_lea.vmem %s0, %s167
          %s169 = smul.u32 32, %s21
        $region20: #{decoder_features_nhwc.9} parent=15 // pred_fallthru
          _
        // Predicated region
        $region21: #{decoder_features_nhwc.9} parent=15 // pred_check
          %p170 = pneg %p75
        $region22: #{decoder_features_nhwc.9} parent=15 // pred_check_branch
          %172 = sbr.rel (%p170) target = $region24
        $region23: #{decoder_features_nhwc.9} parent=15 // pred_region
          %s173 = smul.u32 32, %s21
          %p174 = scmp.lt.s32.totalorder %s20, 1
          %s175 = scalar_select %p174, %s20, 1
          %p176 = scmp.lt.s32.totalorder %s173, 31
          %s177 = scalar_select %p176, %s173, 31
          %s178 = smul.addr %s177, 4
          %s179 = smul.addr %s175, 128
          %s180 = sadd.s32 %s178, %s179
          %s181 = smul.addr %s180, 8
          %s182 = scalar_lea.vmem %s1, %s181
          %s183 = smul.u32 32, %s21
        $region24: #{decoder_features_nhwc.9} parent=15 // pred_fallthru
          _
      $region16: #{decoder_features_nhwc.9} parent=5 // pred_fallthru
        _
      %p184 = scmp.le.s32.totalorder 1, %s13
      %p185 = scmp.lt.s32.totalorder %s13, 3
      %p186 = pnand %p184, %p185
      %p187 = pneg %p186
      // Predicated region
      $region25: #{decoder_features_nhwc.9} parent=5 // pred_check
        _
      $region26: #{decoder_features_nhwc.9} parent=5 // pred_check_branch
        %189 = sbr.rel (%p186) target = $region28
      $region27: #{decoder_features_nhwc.9} parent=5 // pred_region
        %s190 = ssub.s32 %s13, 1
        %s191 = smul.u32 32, %s23
        %p192 = scmp.lt.s32.totalorder %s22, 1
        %s193 = scalar_select %p192, %s22, 1
        %p194 = scmp.lt.s32.totalorder %s191, 31
        %s195 = scalar_select %p194, %s191, 31
        %s196 = smul.addr %s195, 4
        %s197 = smul.addr %s193, 128
        %s198 = sadd.s32 %s196, %s197
        %s199 = smul.addr %s198, 8
        %s200 = scalar_lea.vmem %s0, %s199
        %p201 = pneg %p53
        %p202 = pneg %p50
        %s203 = smul.u32 32, %s23
        %p204 = scmp.lt.s32.totalorder %s22, 1
        %s205 = scalar_select %p204, %s22, 1
        %p206 = scmp.lt.s32.totalorder %s203, 31
        %s207 = scalar_select %p206, %s203, 31
        %s208 = smul.addr %s207, 4
        %s209 = smul.addr %s205, 128
        %s210 = sadd.s32 %s208, %s209
        %s211 = smul.addr %s210, 8
        %s212 = scalar_lea.vmem %s1, %s211
        %p213 = pneg %p81
        %p214 = pneg %p78
        %p215 = pneg %p109
        %p216 = pneg %p106
        %s217 = sand.u32 %s96, 1
        %s218 = scalar_lea.sflag [#allocation3], %s217
        %s219 = sand.u32 %s96, 1
        %s220 = smul.addr %s219, 1024
        %s221 = scalar_lea.vmem [#allocation2], %s220
        %p222 = pneg %p137
        %p223 = pneg %p134
        %s224 = smul.u32 32, %s23
        %p225 = scmp.lt.s32.totalorder %s22, 1
        %s226 = scalar_select %p225, %s22, 1
        %p227 = scmp.lt.s32.totalorder %s224, 31
        %s228 = scalar_select %p227, %s224, 31
        %s229 = smul.addr %s228, 4
        %s230 = smul.addr %s226, 128
        %s231 = sadd.s32 %s229, %s230
        %s232 = smul.addr %s231, 8
        %s233 = scalar_lea.vmem %s3, %s232
        %s234 = smul.u32 32, %s23
        %p235 = scmp.lt.s32.totalorder %s22, 1
        %s236 = scalar_select %p235, %s22, 1
        %p237 = scmp.lt.s32.totalorder %s234, 31
        %s238 = scalar_select %p237, %s234, 31
        %s239 = smul.addr %s238, 4
        %s240 = smul.addr %s236, 128
        %s241 = sadd.s32 %s239, %s240
        %s242 = smul.addr %s241, 8
        %s243 = scalar_lea.vmem %s0, %s242
        %s244 = smul.u32 32, %s23
        %s245 = smul.u32 32, %s23
        %p246 = scmp.lt.s32.totalorder %s22, 1
        %s247 = scalar_select %p246, %s22, 1
        %p248 = scmp.lt.s32.totalorder %s245, 31
        %s249 = scalar_select %p248, %s245, 31
        %s250 = smul.addr %s249, 4
        %s251 = smul.addr %s247, 128
        %s252 = sadd.s32 %s250, %s251
        %s253 = smul.addr %s252, 8
        %s254 = scalar_lea.vmem %s1, %s253
        %s255 = smul.u32 32, %s23
        %s256 = smul.u32 32, %s23
        %s257 = smul.u32 32, %s23
        %p258 = scmp.lt.s32.totalorder %s22, 1
        %s259 = scalar_select %p258, %s22, 1
        %p260 = scmp.lt.s32.totalorder %s257, 31
        %s261 = scalar_select %p260, %s257, 31
        %s262 = smul.addr %s261, 4
        %s263 = smul.addr %s259, 128
        %s264 = sadd.s32 %s262, %s263
        %s265 = smul.addr %s264, 8
        %s266 = scalar_lea.vmem %s3, %s265
        %s267 = smul.u32 32, %s23
        %v268 = vld [vmem:[%s243] sm:$0xff]
        %v269 = vld [vmem:[%s243 + $0x8] sm:$0xff]
        %v270 = vld [vmem:[%s243 + $0x10] sm:$0xff]
        %v271 = vld [vmem:[%s243 + $0x18] sm:$0xff]
        %v272 = vld [vmem:[%s243 + $0x20] sm:$0xff]
        %v273 = vld [vmem:[%s243 + $0x28] sm:$0xff]
        %v274 = vld [vmem:[%s243 + $0x30] sm:$0xff]
        %v275 = vld [vmem:[%s243 + $0x38] sm:$0xff]
        %v276 = vld [vmem:[%s243 + $0x40] sm:$0xff]
        %v277 = vld [vmem:[%s243 + $0x48] sm:$0xff]
        %v278 = vld [vmem:[%s243 + $0x50] sm:$0xff]
        %v279 = vld [vmem:[%s243 + $0x58] sm:$0xff]
        %v280 = vld [vmem:[%s243 + $0x60] sm:$0xff]
        %v281 = vld [vmem:[%s243 + $0x68] sm:$0xff]
        %v282 = vld [vmem:[%s243 + $0x70] sm:$0xff]
        %v283 = vld [vmem:[%s243 + $0x78] sm:$0xff]
        %v284 = vld [vmem:[%s243 + $0x80] sm:$0xff]
        %v285 = vld [vmem:[%s243 + $0x88] sm:$0xff]
        %v286 = vld [vmem:[%s243 + $0x90] sm:$0xff]
        %v287 = vld [vmem:[%s243 + $0x98] sm:$0xff]
        %v288 = vld [vmem:[%s243 + $0xa0] sm:$0xff]
        %v289 = vld [vmem:[%s243 + $0xa8] sm:$0xff]
        %v290 = vld [vmem:[%s243 + $0xb0] sm:$0xff]
        %v291 = vld [vmem:[%s243 + $0xb8] sm:$0xff]
        %v292 = vld [vmem:[%s243 + $0xc0] sm:$0xff]
        %v293 = vld [vmem:[%s243 + $0xc8] sm:$0xff]
        %v294 = vld [vmem:[%s243 + $0xd0] sm:$0xff]
        %v295 = vld [vmem:[%s243 + $0xd8] sm:$0xff]
        %v296 = vld [vmem:[%s243 + $0xe0] sm:$0xff]
        %v297 = vld [vmem:[%s243 + $0xe8] sm:$0xff]
        %v298 = vld [vmem:[%s243 + $0xf0] sm:$0xff]
        %v299 = vld [vmem:[%s243 + $0xf8] sm:$0xff]
        %v300 = vld [vmem:[%s243 + $0x100] sm:$0xff]
        %v301 = vld [vmem:[%s243 + $0x108] sm:$0xff]
        %v302 = vld [vmem:[%s243 + $0x110] sm:$0xff]
        %v303 = vld [vmem:[%s243 + $0x118] sm:$0xff]
        %v304 = vld [vmem:[%s243 + $0x120] sm:$0xff]
        %v305 = vld [vmem:[%s243 + $0x128] sm:$0xff]
        %v306 = vld [vmem:[%s243 + $0x130] sm:$0xff]
        %v307 = vld [vmem:[%s243 + $0x138] sm:$0xff]
        %v308 = vld [vmem:[%s243 + $0x140] sm:$0xff]
        %v309 = vld [vmem:[%s243 + $0x148] sm:$0xff]
        %v310 = vld [vmem:[%s243 + $0x150] sm:$0xff]
        %v311 = vld [vmem:[%s243 + $0x158] sm:$0xff]
        %v312 = vld [vmem:[%s243 + $0x160] sm:$0xff]
        %v313 = vld [vmem:[%s243 + $0x168] sm:$0xff]
        %v314 = vld [vmem:[%s243 + $0x170] sm:$0xff]
        %v315 = vld [vmem:[%s243 + $0x178] sm:$0xff]
        %v316 = vld [vmem:[%s243 + $0x180] sm:$0xff]
        %v317 = vld [vmem:[%s243 + $0x188] sm:$0xff]
        %v318 = vld [vmem:[%s243 + $0x190] sm:$0xff]
        %v319 = vld [vmem:[%s243 + $0x198] sm:$0xff]
        %v320 = vld [vmem:[%s243 + $0x1a0] sm:$0xff]
        %v321 = vld [vmem:[%s243 + $0x1a8] sm:$0xff]
        %v322 = vld [vmem:[%s243 + $0x1b0] sm:$0xff]
        %v323 = vld [vmem:[%s243 + $0x1b8] sm:$0xff]
        %v324 = vld [vmem:[%s243 + $0x1c0] sm:$0xff]
        %v325 = vld [vmem:[%s243 + $0x1c8] sm:$0xff]
        %v326 = vld [vmem:[%s243 + $0x1d0] sm:$0xff]
        %v327 = vld [vmem:[%s243 + $0x1d8] sm:$0xff]
        %v328 = vld [vmem:[%s243 + $0x1e0] sm:$0xff]
        %v329 = vld [vmem:[%s243 + $0x1e8] sm:$0xff]
        %v330 = vld [vmem:[%s243 + $0x1f0] sm:$0xff]
        %v331 = vld [vmem:[%s243 + $0x1f8] sm:$0xff]
        %v332 = vld [vmem:[%s243 + $0x200] sm:$0xff]
        %v333 = vld [vmem:[%s243 + $0x208] sm:$0xff]
        %v334 = vld [vmem:[%s243 + $0x210] sm:$0xff]
        %v335 = vld [vmem:[%s243 + $0x218] sm:$0xff]
        %v336 = vld [vmem:[%s243 + $0x220] sm:$0xff]
        %v337 = vld [vmem:[%s243 + $0x228] sm:$0xff]
        %v338 = vld [vmem:[%s243 + $0x230] sm:$0xff]
        %v339 = vld [vmem:[%s243 + $0x238] sm:$0xff]
        %v340 = vld [vmem:[%s243 + $0x240] sm:$0xff]
        %v341 = vld [vmem:[%s243 + $0x248] sm:$0xff]
        %v342 = vld [vmem:[%s243 + $0x250] sm:$0xff]
        %v343 = vld [vmem:[%s243 + $0x258] sm:$0xff]
        %v344 = vld [vmem:[%s243 + $0x260] sm:$0xff]
        %v345 = vld [vmem:[%s243 + $0x268] sm:$0xff]
        %v346 = vld [vmem:[%s243 + $0x270] sm:$0xff]
        %v347 = vld [vmem:[%s243 + $0x278] sm:$0xff]
        %v348 = vld [vmem:[%s243 + $0x280] sm:$0xff]
        %v349 = vld [vmem:[%s243 + $0x288] sm:$0xff]
        %v350 = vld [vmem:[%s243 + $0x290] sm:$0xff]
        %v351 = vld [vmem:[%s243 + $0x298] sm:$0xff]
        %v352 = vld [vmem:[%s243 + $0x2a0] sm:$0xff]
        %v353 = vld [vmem:[%s243 + $0x2a8] sm:$0xff]
        %v354 = vld [vmem:[%s243 + $0x2b0] sm:$0xff]
        %v355 = vld [vmem:[%s243 + $0x2b8] sm:$0xff]
        %v356 = vld [vmem:[%s243 + $0x2c0] sm:$0xff]
        %v357 = vld [vmem:[%s243 + $0x2c8] sm:$0xff]
        %v358 = vld [vmem:[%s243 + $0x2d0] sm:$0xff]
        %v359 = vld [vmem:[%s243 + $0x2d8] sm:$0xff]
        %v360 = vld [vmem:[%s243 + $0x2e0] sm:$0xff]
        %v361 = vld [vmem:[%s243 + $0x2e8] sm:$0xff]
        %v362 = vld [vmem:[%s243 + $0x2f0] sm:$0xff]
        %v363 = vld [vmem:[%s243 + $0x2f8] sm:$0xff]
        %v364 = vld [vmem:[%s243 + $0x300] sm:$0xff]
        %v365 = vld [vmem:[%s243 + $0x308] sm:$0xff]
        %v366 = vld [vmem:[%s243 + $0x310] sm:$0xff]
        %v367 = vld [vmem:[%s243 + $0x318] sm:$0xff]
        %v368 = vld [vmem:[%s243 + $0x320] sm:$0xff]
        %v369 = vld [vmem:[%s243 + $0x328] sm:$0xff]
        %v370 = vld [vmem:[%s243 + $0x330] sm:$0xff]
        %v371 = vld [vmem:[%s243 + $0x338] sm:$0xff]
        %v372 = vld [vmem:[%s243 + $0x340] sm:$0xff]
        %v373 = vld [vmem:[%s243 + $0x348] sm:$0xff]
        %v374 = vld [vmem:[%s243 + $0x350] sm:$0xff]
        %v375 = vld [vmem:[%s243 + $0x358] sm:$0xff]
        %v376 = vld [vmem:[%s243 + $0x360] sm:$0xff]
        %v377 = vld [vmem:[%s243 + $0x368] sm:$0xff]
        %v378 = vld [vmem:[%s243 + $0x370] sm:$0xff]
        %v379 = vld [vmem:[%s243 + $0x378] sm:$0xff]
        %v380 = vld [vmem:[%s243 + $0x380] sm:$0xff]
        %v381 = vld [vmem:[%s243 + $0x388] sm:$0xff]
        %v382 = vld [vmem:[%s243 + $0x390] sm:$0xff]
        %v383 = vld [vmem:[%s243 + $0x398] sm:$0xff]
        %v384 = vld [vmem:[%s243 + $0x3a0] sm:$0xff]
        %v385 = vld [vmem:[%s243 + $0x3a8] sm:$0xff]
        %v386 = vld [vmem:[%s243 + $0x3b0] sm:$0xff]
        %v387 = vld [vmem:[%s243 + $0x3b8] sm:$0xff]
        %v388 = vld [vmem:[%s243 + $0x3c0] sm:$0xff]
        %v389 = vld [vmem:[%s243 + $0x3c8] sm:$0xff]
        %v390 = vld [vmem:[%s243 + $0x3d0] sm:$0xff]
        %v391 = vld [vmem:[%s243 + $0x3d8] sm:$0xff]
        %v392 = vld [vmem:[%s243 + $0x3e0] sm:$0xff]
        %v393 = vld [vmem:[%s243 + $0x3e8] sm:$0xff]
        %v394 = vld [vmem:[%s243 + $0x3f0] sm:$0xff]
        %v395 = vld [vmem:[%s243 + $0x3f8] sm:$0xff]
        %v396 = vld [vmem:[%s254] sm:$0xff]
        %v397 = vld [vmem:[%s254 + $0x8] sm:$0xff]
        %v398 = vld [vmem:[%s254 + $0x10] sm:$0xff]
        %v399 = vld [vmem:[%s254 + $0x18] sm:$0xff]
        %v400 = vld [vmem:[%s254 + $0x20] sm:$0xff]
        %v401 = vld [vmem:[%s254 + $0x28] sm:$0xff]
        %v402 = vld [vmem:[%s254 + $0x30] sm:$0xff]
        %v403 = vld [vmem:[%s254 + $0x38] sm:$0xff]
        %v404 = vld [vmem:[%s254 + $0x40] sm:$0xff]
        %v405 = vld [vmem:[%s254 + $0x48] sm:$0xff]
        %v406 = vld [vmem:[%s254 + $0x50] sm:$0xff]
        %v407 = vld [vmem:[%s254 + $0x58] sm:$0xff]
        %v408 = vld [vmem:[%s254 + $0x60] sm:$0xff]
        %v409 = vld [vmem:[%s254 + $0x68] sm:$0xff]
        %v410 = vld [vmem:[%s254 + $0x70] sm:$0xff]
        %v411 = vld [vmem:[%s254 + $0x78] sm:$0xff]
        %v412 = vld [vmem:[%s254 + $0x80] sm:$0xff]
        %v413 = vld [vmem:[%s254 + $0x88] sm:$0xff]
        %v414 = vld [vmem:[%s254 + $0x90] sm:$0xff]
        %v415 = vld [vmem:[%s254 + $0x98] sm:$0xff]
        %v416 = vld [vmem:[%s254 + $0xa0] sm:$0xff]
        %v417 = vld [vmem:[%s254 + $0xa8] sm:$0xff]
        %v418 = vld [vmem:[%s254 + $0xb0] sm:$0xff]
        %v419 = vld [vmem:[%s254 + $0xb8] sm:$0xff]
        %v420 = vld [vmem:[%s254 + $0xc0] sm:$0xff]
        %v421 = vld [vmem:[%s254 + $0xc8] sm:$0xff]
        %v422 = vld [vmem:[%s254 + $0xd0] sm:$0xff]
        %v423 = vld [vmem:[%s254 + $0xd8] sm:$0xff]
        %v424 = vld [vmem:[%s254 + $0xe0] sm:$0xff]
        %v425 = vld [vmem:[%s254 + $0xe8] sm:$0xff]
        %v426 = vld [vmem:[%s254 + $0xf0] sm:$0xff]
        %v427 = vld [vmem:[%s254 + $0xf8] sm:$0xff]
        %v428 = vld [vmem:[%s254 + $0x100] sm:$0xff]
        %v429 = vld [vmem:[%s254 + $0x108] sm:$0xff]
        %v430 = vld [vmem:[%s254 + $0x110] sm:$0xff]
        %v431 = vld [vmem:[%s254 + $0x118] sm:$0xff]
        %v432 = vld [vmem:[%s254 + $0x120] sm:$0xff]
        %v433 = vld [vmem:[%s254 + $0x128] sm:$0xff]
        %v434 = vld [vmem:[%s254 + $0x130] sm:$0xff]
        %v435 = vld [vmem:[%s254 + $0x138] sm:$0xff]
        %v436 = vld [vmem:[%s254 + $0x140] sm:$0xff]
        %v437 = vld [vmem:[%s254 + $0x148] sm:$0xff]
        %v438 = vld [vmem:[%s254 + $0x150] sm:$0xff]
        %v439 = vld [vmem:[%s254 + $0x158] sm:$0xff]
        %v440 = vld [vmem:[%s254 + $0x160] sm:$0xff]
        %v441 = vld [vmem:[%s254 + $0x168] sm:$0xff]
        %v442 = vld [vmem:[%s254 + $0x170] sm:$0xff]
        %v443 = vld [vmem:[%s254 + $0x178] sm:$0xff]
        %v444 = vld [vmem:[%s254 + $0x180] sm:$0xff]
        %v445 = vld [vmem:[%s254 + $0x188] sm:$0xff]
        %v446 = vld [vmem:[%s254 + $0x190] sm:$0xff]
        %v447 = vld [vmem:[%s254 + $0x198] sm:$0xff]
        %v448 = vld [vmem:[%s254 + $0x1a0] sm:$0xff]
        %v449 = vld [vmem:[%s254 + $0x1a8] sm:$0xff]
        %v450 = vld [vmem:[%s254 + $0x1b0] sm:$0xff]
        %v451 = vld [vmem:[%s254 + $0x1b8] sm:$0xff]
        %v452 = vld [vmem:[%s254 + $0x1c0] sm:$0xff]
        %v453 = vld [vmem:[%s254 + $0x1c8] sm:$0xff]
        %v454 = vld [vmem:[%s254 + $0x1d0] sm:$0xff]
        %v455 = vld [vmem:[%s254 + $0x1d8] sm:$0xff]
        %v456 = vld [vmem:[%s254 + $0x1e0] sm:$0xff]
        %v457 = vld [vmem:[%s254 + $0x1e8] sm:$0xff]
        %v458 = vld [vmem:[%s254 + $0x1f0] sm:$0xff]
        %v459 = vld [vmem:[%s254 + $0x1f8] sm:$0xff]
        %v460 = vld [vmem:[%s254 + $0x200] sm:$0xff]
        %v461 = vld [vmem:[%s254 + $0x208] sm:$0xff]
        %v462 = vld [vmem:[%s254 + $0x210] sm:$0xff]
        %v463 = vld [vmem:[%s254 + $0x218] sm:$0xff]
        %v464 = vld [vmem:[%s254 + $0x220] sm:$0xff]
        %v465 = vld [vmem:[%s254 + $0x228] sm:$0xff]
        %v466 = vld [vmem:[%s254 + $0x230] sm:$0xff]
        %v467 = vld [vmem:[%s254 + $0x238] sm:$0xff]
        %v468 = vld [vmem:[%s254 + $0x240] sm:$0xff]
        %v469 = vld [vmem:[%s254 + $0x248] sm:$0xff]
        %v470 = vld [vmem:[%s254 + $0x250] sm:$0xff]
        %v471 = vld [vmem:[%s254 + $0x258] sm:$0xff]
        %v472 = vld [vmem:[%s254 + $0x260] sm:$0xff]
        %v473 = vld [vmem:[%s254 + $0x268] sm:$0xff]
        %v474 = vld [vmem:[%s254 + $0x270] sm:$0xff]
        %v475 = vld [vmem:[%s254 + $0x278] sm:$0xff]
        %v476 = vld [vmem:[%s254 + $0x280] sm:$0xff]
        %v477 = vld [vmem:[%s254 + $0x288] sm:$0xff]
        %v478 = vld [vmem:[%s254 + $0x290] sm:$0xff]
        %v479 = vld [vmem:[%s254 + $0x298] sm:$0xff]
        %v480 = vld [vmem:[%s254 + $0x2a0] sm:$0xff]
        %v481 = vld [vmem:[%s254 + $0x2a8] sm:$0xff]
        %v482 = vld [vmem:[%s254 + $0x2b0] sm:$0xff]
        %v483 = vld [vmem:[%s254 + $0x2b8] sm:$0xff]
        %v484 = vld [vmem:[%s254 + $0x2c0] sm:$0xff]
        %v485 = vld [vmem:[%s254 + $0x2c8] sm:$0xff]
        %v486 = vld [vmem:[%s254 + $0x2d0] sm:$0xff]
        %v487 = vld [vmem:[%s254 + $0x2d8] sm:$0xff]
        %v488 = vld [vmem:[%s254 + $0x2e0] sm:$0xff]
        %v489 = vld [vmem:[%s254 + $0x2e8] sm:$0xff]
        %v490 = vld [vmem:[%s254 + $0x2f0] sm:$0xff]
        %v491 = vld [vmem:[%s254 + $0x2f8] sm:$0xff]
        %v492 = vld [vmem:[%s254 + $0x300] sm:$0xff]
        %v493 = vld [vmem:[%s254 + $0x308] sm:$0xff]
        %v494 = vld [vmem:[%s254 + $0x310] sm:$0xff]
        %v495 = vld [vmem:[%s254 + $0x318] sm:$0xff]
        %v496 = vld [vmem:[%s254 + $0x320] sm:$0xff]
        %v497 = vld [vmem:[%s254 + $0x328] sm:$0xff]
        %v498 = vld [vmem:[%s254 + $0x330] sm:$0xff]
        %v499 = vld [vmem:[%s254 + $0x338] sm:$0xff]
        %v500 = vld [vmem:[%s254 + $0x340] sm:$0xff]
        %v501 = vld [vmem:[%s254 + $0x348] sm:$0xff]
        %v502 = vld [vmem:[%s254 + $0x350] sm:$0xff]
        %v503 = vld [vmem:[%s254 + $0x358] sm:$0xff]
        %v504 = vld [vmem:[%s254 + $0x360] sm:$0xff]
        %v505 = vld [vmem:[%s254 + $0x368] sm:$0xff]
        %v506 = vld [vmem:[%s254 + $0x370] sm:$0xff]
        %v507 = vld [vmem:[%s254 + $0x378] sm:$0xff]
        %v508 = vld [vmem:[%s254 + $0x380] sm:$0xff]
        %v509 = vld [vmem:[%s254 + $0x388] sm:$0xff]
        %v510 = vld [vmem:[%s254 + $0x390] sm:$0xff]
        %v511 = vld [vmem:[%s254 + $0x398] sm:$0xff]
        %v512 = vld [vmem:[%s254 + $0x3a0] sm:$0xff]
        %v513 = vld [vmem:[%s254 + $0x3a8] sm:$0xff]
        %v514 = vld [vmem:[%s254 + $0x3b0] sm:$0xff]
        %v515 = vld [vmem:[%s254 + $0x3b8] sm:$0xff]
        %v516 = vld [vmem:[%s254 + $0x3c0] sm:$0xff]
        %v517 = vld [vmem:[%s254 + $0x3c8] sm:$0xff]
        %v518 = vld [vmem:[%s254 + $0x3d0] sm:$0xff]
        %v519 = vld [vmem:[%s254 + $0x3d8] sm:$0xff]
        %v520 = vld [vmem:[%s254 + $0x3e0] sm:$0xff]
        %v521 = vld [vmem:[%s254 + $0x3e8] sm:$0xff]
        %v522 = vld [vmem:[%s254 + $0x3f0] sm:$0xff]
        %v523 = vld [vmem:[%s254 + $0x3f8] sm:$0xff]
        %525 = vset.pattern.permute.xlu0 0
        %526 = vperm.xlu0 %525, %v268
        %v527 = vpop.permute.xlu0 %526
        %530 = vset.pattern.permute.xlu0 0
        %531 = vperm.xlu0 %530, %v269
        %v532 = vpop.permute.xlu0 %531
        %535 = vset.pattern.permute.xlu0 0
        %536 = vperm.xlu0 %535, %v270
        %v537 = vpop.permute.xlu0 %536
        %540 = vset.pattern.permute.xlu0 0
        %541 = vperm.xlu0 %540, %v271
        %v542 = vpop.permute.xlu0 %541
        %545 = vset.pattern.permute.xlu0 0
        %546 = vperm.xlu0 %545, %v272
        %v547 = vpop.permute.xlu0 %546
        %550 = vset.pattern.permute.xlu0 0
        %551 = vperm.xlu0 %550, %v273
        %v552 = vpop.permute.xlu0 %551
        %555 = vset.pattern.permute.xlu0 0
        %556 = vperm.xlu0 %555, %v274
        %v557 = vpop.permute.xlu0 %556
        %560 = vset.pattern.permute.xlu0 0
        %561 = vperm.xlu0 %560, %v275
        %v562 = vpop.permute.xlu0 %561
        %565 = vset.pattern.permute.xlu0 0
        %566 = vperm.xlu0 %565, %v276
        %v567 = vpop.permute.xlu0 %566
        %570 = vset.pattern.permute.xlu0 0
        %571 = vperm.xlu0 %570, %v277
        %v572 = vpop.permute.xlu0 %571
        %575 = vset.pattern.permute.xlu0 0
        %576 = vperm.xlu0 %575, %v278
        %v577 = vpop.permute.xlu0 %576
        %580 = vset.pattern.permute.xlu0 0
        %581 = vperm.xlu0 %580, %v279
        %v582 = vpop.permute.xlu0 %581
        %585 = vset.pattern.permute.xlu0 0
        %586 = vperm.xlu0 %585, %v280
        %v587 = vpop.permute.xlu0 %586
        %590 = vset.pattern.permute.xlu0 0
        %591 = vperm.xlu0 %590, %v281
        %v592 = vpop.permute.xlu0 %591
        %595 = vset.pattern.permute.xlu0 0
        %596 = vperm.xlu0 %595, %v282
        %v597 = vpop.permute.xlu0 %596
        %600 = vset.pattern.permute.xlu0 0
        %601 = vperm.xlu0 %600, %v283
        %v602 = vpop.permute.xlu0 %601
        %605 = vset.pattern.permute.xlu0 0
        %606 = vperm.xlu0 %605, %v284
        %v607 = vpop.permute.xlu0 %606
        %610 = vset.pattern.permute.xlu0 0
        %611 = vperm.xlu0 %610, %v285
        %v612 = vpop.permute.xlu0 %611
        %615 = vset.pattern.permute.xlu0 0
        %616 = vperm.xlu0 %615, %v286
        %v617 = vpop.permute.xlu0 %616
        %620 = vset.pattern.permute.xlu0 0
        %621 = vperm.xlu0 %620, %v287
        %v622 = vpop.permute.xlu0 %621
        %625 = vset.pattern.permute.xlu0 0
        %626 = vperm.xlu0 %625, %v288
        %v627 = vpop.permute.xlu0 %626
        %630 = vset.pattern.permute.xlu0 0
        %631 = vperm.xlu0 %630, %v289
        %v632 = vpop.permute.xlu0 %631
        %635 = vset.pattern.permute.xlu0 0
        %636 = vperm.xlu0 %635, %v290
        %v637 = vpop.permute.xlu0 %636
        %640 = vset.pattern.permute.xlu0 0
        %641 = vperm.xlu0 %640, %v291
        %v642 = vpop.permute.xlu0 %641
        %645 = vset.pattern.permute.xlu0 0
        %646 = vperm.xlu0 %645, %v292
        %v647 = vpop.permute.xlu0 %646
        %650 = vset.pattern.permute.xlu0 0
        %651 = vperm.xlu0 %650, %v293
        %v652 = vpop.permute.xlu0 %651
        %655 = vset.pattern.permute.xlu0 0
        %656 = vperm.xlu0 %655, %v294
        %v657 = vpop.permute.xlu0 %656
        %660 = vset.pattern.permute.xlu0 0
        %661 = vperm.xlu0 %660, %v295
        %v662 = vpop.permute.xlu0 %661
        %665 = vset.pattern.permute.xlu0 0
        %666 = vperm.xlu0 %665, %v296
        %v667 = vpop.permute.xlu0 %666
        %670 = vset.pattern.permute.xlu0 0
        %671 = vperm.xlu0 %670, %v297
        %v672 = vpop.permute.xlu0 %671
        %675 = vset.pattern.permute.xlu0 0
        %676 = vperm.xlu0 %675, %v298
        %v677 = vpop.permute.xlu0 %676
        %680 = vset.pattern.permute.xlu0 0
        %681 = vperm.xlu0 %680, %v299
        %v682 = vpop.permute.xlu0 %681
        %685 = vset.pattern.permute.xlu0 0
        %686 = vperm.xlu0 %685, %v300
        %v687 = vpop.permute.xlu0 %686
        %690 = vset.pattern.permute.xlu0 0
        %691 = vperm.xlu0 %690, %v301
        %v692 = vpop.permute.xlu0 %691
        %695 = vset.pattern.permute.xlu0 0
        %696 = vperm.xlu0 %695, %v302
        %v697 = vpop.permute.xlu0 %696
        %700 = vset.pattern.permute.xlu0 0
        %701 = vperm.xlu0 %700, %v303
        %v702 = vpop.permute.xlu0 %701
        %705 = vset.pattern.permute.xlu0 0
        %706 = vperm.xlu0 %705, %v304
        %v707 = vpop.permute.xlu0 %706
        %710 = vset.pattern.permute.xlu0 0
        %711 = vperm.xlu0 %710, %v305
        %v712 = vpop.permute.xlu0 %711
        %715 = vset.pattern.permute.xlu0 0
        %716 = vperm.xlu0 %715, %v306
        %v717 = vpop.permute.xlu0 %716
        %720 = vset.pattern.permute.xlu0 0
        %721 = vperm.xlu0 %720, %v307
        %v722 = vpop.permute.xlu0 %721
        %725 = vset.pattern.permute.xlu0 0
        %726 = vperm.xlu0 %725, %v308
        %v727 = vpop.permute.xlu0 %726
        %730 = vset.pattern.permute.xlu0 0
        %731 = vperm.xlu0 %730, %v309
        %v732 = vpop.permute.xlu0 %731
        %735 = vset.pattern.permute.xlu0 0
        %736 = vperm.xlu0 %735, %v310
        %v737 = vpop.permute.xlu0 %736
        %740 = vset.pattern.permute.xlu0 0
        %741 = vperm.xlu0 %740, %v311
        %v742 = vpop.permute.xlu0 %741
        %745 = vset.pattern.permute.xlu0 0
        %746 = vperm.xlu0 %745, %v312
        %v747 = vpop.permute.xlu0 %746
        %750 = vset.pattern.permute.xlu0 0
        %751 = vperm.xlu0 %750, %v313
        %v752 = vpop.permute.xlu0 %751
        %755 = vset.pattern.permute.xlu0 0
        %756 = vperm.xlu0 %755, %v314
        %v757 = vpop.permute.xlu0 %756
        %760 = vset.pattern.permute.xlu0 0
        %761 = vperm.xlu0 %760, %v315
        %v762 = vpop.permute.xlu0 %761
        %765 = vset.pattern.permute.xlu0 0
        %766 = vperm.xlu0 %765, %v316
        %v767 = vpop.permute.xlu0 %766
        %770 = vset.pattern.permute.xlu0 0
        %771 = vperm.xlu0 %770, %v317
        %v772 = vpop.permute.xlu0 %771
        %775 = vset.pattern.permute.xlu0 0
        %776 = vperm.xlu0 %775, %v318
        %v777 = vpop.permute.xlu0 %776
        %780 = vset.pattern.permute.xlu0 0
        %781 = vperm.xlu0 %780, %v319
        %v782 = vpop.permute.xlu0 %781
        %785 = vset.pattern.permute.xlu0 0
        %786 = vperm.xlu0 %785, %v320
        %v787 = vpop.permute.xlu0 %786
        %790 = vset.pattern.permute.xlu0 0
        %791 = vperm.xlu0 %790, %v321
        %v792 = vpop.permute.xlu0 %791
        %795 = vset.pattern.permute.xlu0 0
        %796 = vperm.xlu0 %795, %v322
        %v797 = vpop.permute.xlu0 %796
        %800 = vset.pattern.permute.xlu0 0
        %801 = vperm.xlu0 %800, %v323
        %v802 = vpop.permute.xlu0 %801
        %805 = vset.pattern.permute.xlu0 0
        %806 = vperm.xlu0 %805, %v324
        %v807 = vpop.permute.xlu0 %806
        %810 = vset.pattern.permute.xlu0 0
        %811 = vperm.xlu0 %810, %v325
        %v812 = vpop.permute.xlu0 %811
        %815 = vset.pattern.permute.xlu0 0
        %816 = vperm.xlu0 %815, %v326
        %v817 = vpop.permute.xlu0 %816
        %820 = vset.pattern.permute.xlu0 0
        %821 = vperm.xlu0 %820, %v327
        %v822 = vpop.permute.xlu0 %821
        %825 = vset.pattern.permute.xlu0 0
        %826 = vperm.xlu0 %825, %v328
        %v827 = vpop.permute.xlu0 %826
        %830 = vset.pattern.permute.xlu0 0
        %831 = vperm.xlu0 %830, %v329
        %v832 = vpop.permute.xlu0 %831
        %835 = vset.pattern.permute.xlu0 0
        %836 = vperm.xlu0 %835, %v330
        %v837 = vpop.permute.xlu0 %836
        %840 = vset.pattern.permute.xlu0 0
        %841 = vperm.xlu0 %840, %v331
        %v842 = vpop.permute.xlu0 %841
        %845 = vset.pattern.permute.xlu0 0
        %846 = vperm.xlu0 %845, %v332
        %v847 = vpop.permute.xlu0 %846
        %850 = vset.pattern.permute.xlu0 0
        %851 = vperm.xlu0 %850, %v333
        %v852 = vpop.permute.xlu0 %851
        %855 = vset.pattern.permute.xlu0 0
        %856 = vperm.xlu0 %855, %v334
        %v857 = vpop.permute.xlu0 %856
        %860 = vset.pattern.permute.xlu0 0
        %861 = vperm.xlu0 %860, %v335
        %v862 = vpop.permute.xlu0 %861
        %865 = vset.pattern.permute.xlu0 0
        %866 = vperm.xlu0 %865, %v336
        %v867 = vpop.permute.xlu0 %866
        %870 = vset.pattern.permute.xlu0 0
        %871 = vperm.xlu0 %870, %v337
        %v872 = vpop.permute.xlu0 %871
        %875 = vset.pattern.permute.xlu0 0
        %876 = vperm.xlu0 %875, %v338
        %v877 = vpop.permute.xlu0 %876
        %880 = vset.pattern.permute.xlu0 0
        %881 = vperm.xlu0 %880, %v339
        %v882 = vpop.permute.xlu0 %881
        %885 = vset.pattern.permute.xlu0 0
        %886 = vperm.xlu0 %885, %v340
        %v887 = vpop.permute.xlu0 %886
        %890 = vset.pattern.permute.xlu0 0
        %891 = vperm.xlu0 %890, %v341
        %v892 = vpop.permute.xlu0 %891
        %895 = vset.pattern.permute.xlu0 0
        %896 = vperm.xlu0 %895, %v342
        %v897 = vpop.permute.xlu0 %896
        %900 = vset.pattern.permute.xlu0 0
        %901 = vperm.xlu0 %900, %v343
        %v902 = vpop.permute.xlu0 %901
        %905 = vset.pattern.permute.xlu0 0
        %906 = vperm.xlu0 %905, %v344
        %v907 = vpop.permute.xlu0 %906
        %910 = vset.pattern.permute.xlu0 0
        %911 = vperm.xlu0 %910, %v345
        %v912 = vpop.permute.xlu0 %911
        %915 = vset.pattern.permute.xlu0 0
        %916 = vperm.xlu0 %915, %v346
        %v917 = vpop.permute.xlu0 %916
        %920 = vset.pattern.permute.xlu0 0
        %921 = vperm.xlu0 %920, %v347
        %v922 = vpop.permute.xlu0 %921
        %925 = vset.pattern.permute.xlu0 0
        %926 = vperm.xlu0 %925, %v348
        %v927 = vpop.permute.xlu0 %926
        %930 = vset.pattern.permute.xlu0 0
        %931 = vperm.xlu0 %930, %v349
        %v932 = vpop.permute.xlu0 %931
        %935 = vset.pattern.permute.xlu0 0
        %936 = vperm.xlu0 %935, %v350
        %v937 = vpop.permute.xlu0 %936
        %940 = vset.pattern.permute.xlu0 0
        %941 = vperm.xlu0 %940, %v351
        %v942 = vpop.permute.xlu0 %941
        %945 = vset.pattern.permute.xlu0 0
        %946 = vperm.xlu0 %945, %v352
        %v947 = vpop.permute.xlu0 %946
        %950 = vset.pattern.permute.xlu0 0
        %951 = vperm.xlu0 %950, %v353
        %v952 = vpop.permute.xlu0 %951
        %955 = vset.pattern.permute.xlu0 0
        %956 = vperm.xlu0 %955, %v354
        %v957 = vpop.permute.xlu0 %956
        %960 = vset.pattern.permute.xlu0 0
        %961 = vperm.xlu0 %960, %v355
        %v962 = vpop.permute.xlu0 %961
        %965 = vset.pattern.permute.xlu0 0
        %966 = vperm.xlu0 %965, %v356
        %v967 = vpop.permute.xlu0 %966
        %970 = vset.pattern.permute.xlu0 0
        %971 = vperm.xlu0 %970, %v357
        %v972 = vpop.permute.xlu0 %971
        %975 = vset.pattern.permute.xlu0 0
        %976 = vperm.xlu0 %975, %v358
        %v977 = vpop.permute.xlu0 %976
        %980 = vset.pattern.permute.xlu0 0
        %981 = vperm.xlu0 %980, %v359
        %v982 = vpop.permute.xlu0 %981
        %985 = vset.pattern.permute.xlu0 0
        %986 = vperm.xlu0 %985, %v360
        %v987 = vpop.permute.xlu0 %986
        %990 = vset.pattern.permute.xlu0 0
        %991 = vperm.xlu0 %990, %v361
        %v992 = vpop.permute.xlu0 %991
        %995 = vset.pattern.permute.xlu0 0
        %996 = vperm.xlu0 %995, %v362
        %v997 = vpop.permute.xlu0 %996
        %1000 = vset.pattern.permute.xlu0 0
        %1001 = vperm.xlu0 %1000, %v363
        %v1002 = vpop.permute.xlu0 %1001
        %1005 = vset.pattern.permute.xlu0 0
        %1006 = vperm.xlu0 %1005, %v364
        %v1007 = vpop.permute.xlu0 %1006
        %1010 = vset.pattern.permute.xlu0 0
        %1011 = vperm.xlu0 %1010, %v365
        %v1012 = vpop.permute.xlu0 %1011
        %1015 = vset.pattern.permute.xlu0 0
        %1016 = vperm.xlu0 %1015, %v366
        %v1017 = vpop.permute.xlu0 %1016
        %1020 = vset.pattern.permute.xlu0 0
        %1021 = vperm.xlu0 %1020, %v367
        %v1022 = vpop.permute.xlu0 %1021
        %1025 = vset.pattern.permute.xlu0 0
        %1026 = vperm.xlu0 %1025, %v368
        %v1027 = vpop.permute.xlu0 %1026
        %1030 = vset.pattern.permute.xlu0 0
        %1031 = vperm.xlu0 %1030, %v369
        %v1032 = vpop.permute.xlu0 %1031
        %1035 = vset.pattern.permute.xlu0 0
        %1036 = vperm.xlu0 %1035, %v370
        %v1037 = vpop.permute.xlu0 %1036
        %1040 = vset.pattern.permute.xlu0 0
        %1041 = vperm.xlu0 %1040, %v371
        %v1042 = vpop.permute.xlu0 %1041
        %1045 = vset.pattern.permute.xlu0 0
        %1046 = vperm.xlu0 %1045, %v372
        %v1047 = vpop.permute.xlu0 %1046
        %1050 = vset.pattern.permute.xlu0 0
        %1051 = vperm.xlu0 %1050, %v373
        %v1052 = vpop.permute.xlu0 %1051
        %1055 = vset.pattern.permute.xlu0 0
        %1056 = vperm.xlu0 %1055, %v374
        %v1057 = vpop.permute.xlu0 %1056
        %1060 = vset.pattern.permute.xlu0 0
        %1061 = vperm.xlu0 %1060, %v375
        %v1062 = vpop.permute.xlu0 %1061
        %1065 = vset.pattern.permute.xlu0 0
        %1066 = vperm.xlu0 %1065, %v376
        %v1067 = vpop.permute.xlu0 %1066
        %1070 = vset.pattern.permute.xlu0 0
        %1071 = vperm.xlu0 %1070, %v377
        %v1072 = vpop.permute.xlu0 %1071
        %1075 = vset.pattern.permute.xlu0 0
        %1076 = vperm.xlu0 %1075, %v378
        %v1077 = vpop.permute.xlu0 %1076
        %1080 = vset.pattern.permute.xlu0 0
        %1081 = vperm.xlu0 %1080, %v379
        %v1082 = vpop.permute.xlu0 %1081
        %1085 = vset.pattern.permute.xlu0 0
        %1086 = vperm.xlu0 %1085, %v380
        %v1087 = vpop.permute.xlu0 %1086
        %1090 = vset.pattern.permute.xlu0 0
        %1091 = vperm.xlu0 %1090, %v381
        %v1092 = vpop.permute.xlu0 %1091
        %1095 = vset.pattern.permute.xlu0 0
        %1096 = vperm.xlu0 %1095, %v382
        %v1097 = vpop.permute.xlu0 %1096
        %1100 = vset.pattern.permute.xlu0 0
        %1101 = vperm.xlu0 %1100, %v383
        %v1102 = vpop.permute.xlu0 %1101
        %1105 = vset.pattern.permute.xlu0 0
        %1106 = vperm.xlu0 %1105, %v384
        %v1107 = vpop.permute.xlu0 %1106
        %1110 = vset.pattern.permute.xlu0 0
        %1111 = vperm.xlu0 %1110, %v385
        %v1112 = vpop.permute.xlu0 %1111
        %1115 = vset.pattern.permute.xlu0 0
        %1116 = vperm.xlu0 %1115, %v386
        %v1117 = vpop.permute.xlu0 %1116
        %1120 = vset.pattern.permute.xlu0 0
        %1121 = vperm.xlu0 %1120, %v387
        %v1122 = vpop.permute.xlu0 %1121
        %1125 = vset.pattern.permute.xlu0 0
        %1126 = vperm.xlu0 %1125, %v388
        %v1127 = vpop.permute.xlu0 %1126
        %1130 = vset.pattern.permute.xlu0 0
        %1131 = vperm.xlu0 %1130, %v389
        %v1132 = vpop.permute.xlu0 %1131
        %1135 = vset.pattern.permute.xlu0 0
        %1136 = vperm.xlu0 %1135, %v390
        %v1137 = vpop.permute.xlu0 %1136
        %1140 = vset.pattern.permute.xlu0 0
        %1141 = vperm.xlu0 %1140, %v391
        %v1142 = vpop.permute.xlu0 %1141
        %1145 = vset.pattern.permute.xlu0 0
        %1146 = vperm.xlu0 %1145, %v392
        %v1147 = vpop.permute.xlu0 %1146
        %1150 = vset.pattern.permute.xlu0 0
        %1151 = vperm.xlu0 %1150, %v393
        %v1152 = vpop.permute.xlu0 %1151
        %1155 = vset.pattern.permute.xlu0 0
        %1156 = vperm.xlu0 %1155, %v394
        %v1157 = vpop.permute.xlu0 %1156
        %1160 = vset.pattern.permute.xlu0 0
        %1161 = vperm.xlu0 %1160, %v395
        %v1162 = vpop.permute.xlu0 %1161
        %v1164 = vadd.f32 %v527, %v396
        %v1165 = vadd.f32 %v532, %v397
        %v1166 = vadd.f32 %v537, %v398
        %v1167 = vadd.f32 %v542, %v399
        %v1168 = vadd.f32 %v547, %v400
        %v1169 = vadd.f32 %v552, %v401
        %v1170 = vadd.f32 %v557, %v402
        %v1171 = vadd.f32 %v562, %v403
        %v1172 = vadd.f32 %v567, %v404
        %v1173 = vadd.f32 %v572, %v405
        %v1174 = vadd.f32 %v577, %v406
        %v1175 = vadd.f32 %v582, %v407
        %v1176 = vadd.f32 %v587, %v408
        %v1177 = vadd.f32 %v592, %v409
        %v1178 = vadd.f32 %v597, %v410
        %v1179 = vadd.f32 %v602, %v411
        %v1180 = vadd.f32 %v607, %v412
        %v1181 = vadd.f32 %v612, %v413
        %v1182 = vadd.f32 %v617, %v414
        %v1183 = vadd.f32 %v622, %v415
        %v1184 = vadd.f32 %v627, %v416
        %v1185 = vadd.f32 %v632, %v417
        %v1186 = vadd.f32 %v637, %v418
        %v1187 = vadd.f32 %v642, %v419
        %v1188 = vadd.f32 %v647, %v420
        %v1189 = vadd.f32 %v652, %v421
        %v1190 = vadd.f32 %v657, %v422
        %v1191 = vadd.f32 %v662, %v423
        %v1192 = vadd.f32 %v667, %v424
        %v1193 = vadd.f32 %v672, %v425
        %v1194 = vadd.f32 %v677, %v426
        %v1195 = vadd.f32 %v682, %v427
        %v1196 = vadd.f32 %v687, %v428
        %v1197 = vadd.f32 %v692, %v429
        %v1198 = vadd.f32 %v697, %v430
        %v1199 = vadd.f32 %v702, %v431
        %v1200 = vadd.f32 %v707, %v432
        %v1201 = vadd.f32 %v712, %v433
        %v1202 = vadd.f32 %v717, %v434
        %v1203 = vadd.f32 %v722, %v435
        %v1204 = vadd.f32 %v727, %v436
        %v1205 = vadd.f32 %v732, %v437
        %v1206 = vadd.f32 %v737, %v438
        %v1207 = vadd.f32 %v742, %v439
        %v1208 = vadd.f32 %v747, %v440
        %v1209 = vadd.f32 %v752, %v441
        %v1210 = vadd.f32 %v757, %v442
        %v1211 = vadd.f32 %v762, %v443
        %v1212 = vadd.f32 %v767, %v444
        %v1213 = vadd.f32 %v772, %v445
        %v1214 = vadd.f32 %v777, %v446
        %v1215 = vadd.f32 %v782, %v447
        %v1216 = vadd.f32 %v787, %v448
        %v1217 = vadd.f32 %v792, %v449
        %v1218 = vadd.f32 %v797, %v450
        %v1219 = vadd.f32 %v802, %v451
        %v1220 = vadd.f32 %v807, %v452
        %v1221 = vadd.f32 %v812, %v453
        %v1222 = vadd.f32 %v817, %v454
        %v1223 = vadd.f32 %v822, %v455
        %v1224 = vadd.f32 %v827, %v456
        %v1225 = vadd.f32 %v832, %v457
        %v1226 = vadd.f32 %v837, %v458
        %v1227 = vadd.f32 %v842, %v459
        %v1228 = vadd.f32 %v847, %v460
        %v1229 = vadd.f32 %v852, %v461
        %v1230 = vadd.f32 %v857, %v462
        %v1231 = vadd.f32 %v862, %v463
        %v1232 = vadd.f32 %v867, %v464
        %v1233 = vadd.f32 %v872, %v465
        %v1234 = vadd.f32 %v877, %v466
        %v1235 = vadd.f32 %v882, %v467
        %v1236 = vadd.f32 %v887, %v468
        %v1237 = vadd.f32 %v892, %v469
        %v1238 = vadd.f32 %v897, %v470
        %v1239 = vadd.f32 %v902, %v471
        %v1240 = vadd.f32 %v907, %v472
        %v1241 = vadd.f32 %v912, %v473
        %v1242 = vadd.f32 %v917, %v474
        %v1243 = vadd.f32 %v922, %v475
        %v1244 = vadd.f32 %v927, %v476
        %v1245 = vadd.f32 %v932, %v477
        %v1246 = vadd.f32 %v937, %v478
        %v1247 = vadd.f32 %v942, %v479
        %v1248 = vadd.f32 %v947, %v480
        %v1249 = vadd.f32 %v952, %v481
        %v1250 = vadd.f32 %v957, %v482
        %v1251 = vadd.f32 %v962, %v483
        %v1252 = vadd.f32 %v967, %v484
        %v1253 = vadd.f32 %v972, %v485
        %v1254 = vadd.f32 %v977, %v486
        %v1255 = vadd.f32 %v982, %v487
        %v1256 = vadd.f32 %v987, %v488
        %v1257 = vadd.f32 %v992, %v489
        %v1258 = vadd.f32 %v997, %v490
        %v1259 = vadd.f32 %v1002, %v491
        %v1260 = vadd.f32 %v1007, %v492
        %v1261 = vadd.f32 %v1012, %v493
        %v1262 = vadd.f32 %v1017, %v494
        %v1263 = vadd.f32 %v1022, %v495
        %v1264 = vadd.f32 %v1027, %v496
        %v1265 = vadd.f32 %v1032, %v497
        %v1266 = vadd.f32 %v1037, %v498
        %v1267 = vadd.f32 %v1042, %v499
        %v1268 = vadd.f32 %v1047, %v500
        %v1269 = vadd.f32 %v1052, %v501
        %v1270 = vadd.f32 %v1057, %v502
        %v1271 = vadd.f32 %v1062, %v503
        %v1272 = vadd.f32 %v1067, %v504
        %v1273 = vadd.f32 %v1072, %v505
        %v1274 = vadd.f32 %v1077, %v506
        %v1275 = vadd.f32 %v1082, %v507
        %v1276 = vadd.f32 %v1087, %v508
        %v1277 = vadd.f32 %v1092, %v509
        %v1278 = vadd.f32 %v1097, %v510
        %v1279 = vadd.f32 %v1102, %v511
        %v1280 = vadd.f32 %v1107, %v512
        %v1281 = vadd.f32 %v1112, %v513
        %v1282 = vadd.f32 %v1117, %v514
        %v1283 = vadd.f32 %v1122, %v515
        %v1284 = vadd.f32 %v1127, %v516
        %v1285 = vadd.f32 %v1132, %v517
        %v1286 = vadd.f32 %v1137, %v518
        %v1287 = vadd.f32 %v1142, %v519
        %v1288 = vadd.f32 %v1147, %v520
        %v1289 = vadd.f32 %v1152, %v521
        %v1290 = vadd.f32 %v1157, %v522
        %v1291 = vadd.f32 %v1162, %v523
        %vm1292 = vcmask 523264
        %1293 = vst.msk [vmem:[%s221] sm:$0xff] %vm1292, %v1164
        %1294 = vst.msk [vmem:[%s221 + $0x8] sm:$0xff] %vm1292, %v1165
        %1295 = vst.msk [vmem:[%s221 + $0x10] sm:$0xff] %vm1292, %v1166
        %1296 = vst.msk [vmem:[%s221 + $0x18] sm:$0xff] %vm1292, %v1167
        %1297 = vst.msk [vmem:[%s221 + $0x20] sm:$0xff] %vm1292, %v1168
        %1298 = vst.msk [vmem:[%s221 + $0x28] sm:$0xff] %vm1292, %v1169
        %1299 = vst.msk [vmem:[%s221 + $0x30] sm:$0xff] %vm1292, %v1170
        %1300 = vst.msk [vmem:[%s221 + $0x38] sm:$0xff] %vm1292, %v1171
        %1301 = vst.msk [vmem:[%s221 + $0x40] sm:$0xff] %vm1292, %v1172
        %1302 = vst.msk [vmem:[%s221 + $0x48] sm:$0xff] %vm1292, %v1173
        %1303 = vst.msk [vmem:[%s221 + $0x50] sm:$0xff] %vm1292, %v1174
        %1304 = vst.msk [vmem:[%s221 + $0x58] sm:$0xff] %vm1292, %v1175
        %1305 = vst.msk [vmem:[%s221 + $0x60] sm:$0xff] %vm1292, %v1176
        %1306 = vst.msk [vmem:[%s221 + $0x68] sm:$0xff] %vm1292, %v1177
        %1307 = vst.msk [vmem:[%s221 + $0x70] sm:$0xff] %vm1292, %v1178
        %1308 = vst.msk [vmem:[%s221 + $0x78] sm:$0xff] %vm1292, %v1179
        %1309 = vst.msk [vmem:[%s221 + $0x80] sm:$0xff] %vm1292, %v1180
        %1310 = vst.msk [vmem:[%s221 + $0x88] sm:$0xff] %vm1292, %v1181
        %1311 = vst.msk [vmem:[%s221 + $0x90] sm:$0xff] %vm1292, %v1182
        %1312 = vst.msk [vmem:[%s221 + $0x98] sm:$0xff] %vm1292, %v1183
        %1313 = vst.msk [vmem:[%s221 + $0xa0] sm:$0xff] %vm1292, %v1184
        %1314 = vst.msk [vmem:[%s221 + $0xa8] sm:$0xff] %vm1292, %v1185
        %1315 = vst.msk [vmem:[%s221 + $0xb0] sm:$0xff] %vm1292, %v1186
        %1316 = vst.msk [vmem:[%s221 + $0xb8] sm:$0xff] %vm1292, %v1187
        %1317 = vst.msk [vmem:[%s221 + $0xc0] sm:$0xff] %vm1292, %v1188
        %1318 = vst.msk [vmem:[%s221 + $0xc8] sm:$0xff] %vm1292, %v1189
        %1319 = vst.msk [vmem:[%s221 + $0xd0] sm:$0xff] %vm1292, %v1190
        %1320 = vst.msk [vmem:[%s221 + $0xd8] sm:$0xff] %vm1292, %v1191
        %1321 = vst.msk [vmem:[%s221 + $0xe0] sm:$0xff] %vm1292, %v1192
        %1322 = vst.msk [vmem:[%s221 + $0xe8] sm:$0xff] %vm1292, %v1193
        %1323 = vst.msk [vmem:[%s221 + $0xf0] sm:$0xff] %vm1292, %v1194
        %1324 = vst.msk [vmem:[%s221 + $0xf8] sm:$0xff] %vm1292, %v1195
        %1325 = vst.msk [vmem:[%s221 + $0x100] sm:$0xff] %vm1292, %v1196
        %1326 = vst.msk [vmem:[%s221 + $0x108] sm:$0xff] %vm1292, %v1197
        %1327 = vst.msk [vmem:[%s221 + $0x110] sm:$0xff] %vm1292, %v1198
        %1328 = vst.msk [vmem:[%s221 + $0x118] sm:$0xff] %vm1292, %v1199
        %1329 = vst.msk [vmem:[%s221 + $0x120] sm:$0xff] %vm1292, %v1200
        %1330 = vst.msk [vmem:[%s221 + $0x128] sm:$0xff] %vm1292, %v1201
        %1331 = vst.msk [vmem:[%s221 + $0x130] sm:$0xff] %vm1292, %v1202
        %1332 = vst.msk [vmem:[%s221 + $0x138] sm:$0xff] %vm1292, %v1203
        %1333 = vst.msk [vmem:[%s221 + $0x140] sm:$0xff] %vm1292, %v1204
        %1334 = vst.msk [vmem:[%s221 + $0x148] sm:$0xff] %vm1292, %v1205
        %1335 = vst.msk [vmem:[%s221 + $0x150] sm:$0xff] %vm1292, %v1206
        %1336 = vst.msk [vmem:[%s221 + $0x158] sm:$0xff] %vm1292, %v1207
        %1337 = vst.msk [vmem:[%s221 + $0x160] sm:$0xff] %vm1292, %v1208
        %1338 = vst.msk [vmem:[%s221 + $0x168] sm:$0xff] %vm1292, %v1209
        %1339 = vst.msk [vmem:[%s221 + $0x170] sm:$0xff] %vm1292, %v1210
        %1340 = vst.msk [vmem:[%s221 + $0x178] sm:$0xff] %vm1292, %v1211
        %1341 = vst.msk [vmem:[%s221 + $0x180] sm:$0xff] %vm1292, %v1212
        %1342 = vst.msk [vmem:[%s221 + $0x188] sm:$0xff] %vm1292, %v1213
        %1343 = vst.msk [vmem:[%s221 + $0x190] sm:$0xff] %vm1292, %v1214
        %1344 = vst.msk [vmem:[%s221 + $0x198] sm:$0xff] %vm1292, %v1215
        %1345 = vst.msk [vmem:[%s221 + $0x1a0] sm:$0xff] %vm1292, %v1216
        %1346 = vst.msk [vmem:[%s221 + $0x1a8] sm:$0xff] %vm1292, %v1217
        %1347 = vst.msk [vmem:[%s221 + $0x1b0] sm:$0xff] %vm1292, %v1218
        %1348 = vst.msk [vmem:[%s221 + $0x1b8] sm:$0xff] %vm1292, %v1219
        %1349 = vst.msk [vmem:[%s221 + $0x1c0] sm:$0xff] %vm1292, %v1220
        %1350 = vst.msk [vmem:[%s221 + $0x1c8] sm:$0xff] %vm1292, %v1221
        %1351 = vst.msk [vmem:[%s221 + $0x1d0] sm:$0xff] %vm1292, %v1222
        %1352 = vst.msk [vmem:[%s221 + $0x1d8] sm:$0xff] %vm1292, %v1223
        %1353 = vst.msk [vmem:[%s221 + $0x1e0] sm:$0xff] %vm1292, %v1224
        %1354 = vst.msk [vmem:[%s221 + $0x1e8] sm:$0xff] %vm1292, %v1225
        %1355 = vst.msk [vmem:[%s221 + $0x1f0] sm:$0xff] %vm1292, %v1226
        %1356 = vst.msk [vmem:[%s221 + $0x1f8] sm:$0xff] %vm1292, %v1227
        %1357 = vst.msk [vmem:[%s221 + $0x200] sm:$0xff] %vm1292, %v1228
        %1358 = vst.msk [vmem:[%s221 + $0x208] sm:$0xff] %vm1292, %v1229
        %1359 = vst.msk [vmem:[%s221 + $0x210] sm:$0xff] %vm1292, %v1230
        %1360 = vst.msk [vmem:[%s221 + $0x218] sm:$0xff] %vm1292, %v1231
        %1361 = vst.msk [vmem:[%s221 + $0x220] sm:$0xff] %vm1292, %v1232
        %1362 = vst.msk [vmem:[%s221 + $0x228] sm:$0xff] %vm1292, %v1233
        %1363 = vst.msk [vmem:[%s221 + $0x230] sm:$0xff] %vm1292, %v1234
        %1364 = vst.msk [vmem:[%s221 + $0x238] sm:$0xff] %vm1292, %v1235
        %1365 = vst.msk [vmem:[%s221 + $0x240] sm:$0xff] %vm1292, %v1236
        %1366 = vst.msk [vmem:[%s221 + $0x248] sm:$0xff] %vm1292, %v1237
        %1367 = vst.msk [vmem:[%s221 + $0x250] sm:$0xff] %vm1292, %v1238
        %1368 = vst.msk [vmem:[%s221 + $0x258] sm:$0xff] %vm1292, %v1239
        %1369 = vst.msk [vmem:[%s221 + $0x260] sm:$0xff] %vm1292, %v1240
        %1370 = vst.msk [vmem:[%s221 + $0x268] sm:$0xff] %vm1292, %v1241
        %1371 = vst.msk [vmem:[%s221 + $0x270] sm:$0xff] %vm1292, %v1242
        %1372 = vst.msk [vmem:[%s221 + $0x278] sm:$0xff] %vm1292, %v1243
        %1373 = vst.msk [vmem:[%s221 + $0x280] sm:$0xff] %vm1292, %v1244
        %1374 = vst.msk [vmem:[%s221 + $0x288] sm:$0xff] %vm1292, %v1245
        %1375 = vst.msk [vmem:[%s221 + $0x290] sm:$0xff] %vm1292, %v1246
        %1376 = vst.msk [vmem:[%s221 + $0x298] sm:$0xff] %vm1292, %v1247
        %1377 = vst.msk [vmem:[%s221 + $0x2a0] sm:$0xff] %vm1292, %v1248
        %1378 = vst.msk [vmem:[%s221 + $0x2a8] sm:$0xff] %vm1292, %v1249
        %1379 = vst.msk [vmem:[%s221 + $0x2b0] sm:$0xff] %vm1292, %v1250
        %1380 = vst.msk [vmem:[%s221 + $0x2b8] sm:$0xff] %vm1292, %v1251
        %1381 = vst.msk [vmem:[%s221 + $0x2c0] sm:$0xff] %vm1292, %v1252
        %1382 = vst.msk [vmem:[%s221 + $0x2c8] sm:$0xff] %vm1292, %v1253
        %1383 = vst.msk [vmem:[%s221 + $0x2d0] sm:$0xff] %vm1292, %v1254
        %1384 = vst.msk [vmem:[%s221 + $0x2d8] sm:$0xff] %vm1292, %v1255
        %1385 = vst.msk [vmem:[%s221 + $0x2e0] sm:$0xff] %vm1292, %v1256
        %1386 = vst.msk [vmem:[%s221 + $0x2e8] sm:$0xff] %vm1292, %v1257
        %1387 = vst.msk [vmem:[%s221 + $0x2f0] sm:$0xff] %vm1292, %v1258
        %1388 = vst.msk [vmem:[%s221 + $0x2f8] sm:$0xff] %vm1292, %v1259
        %1389 = vst.msk [vmem:[%s221 + $0x300] sm:$0xff] %vm1292, %v1260
        %1390 = vst.msk [vmem:[%s221 + $0x308] sm:$0xff] %vm1292, %v1261
        %1391 = vst.msk [vmem:[%s221 + $0x310] sm:$0xff] %vm1292, %v1262
        %1392 = vst.msk [vmem:[%s221 + $0x318] sm:$0xff] %vm1292, %v1263
        %1393 = vst.msk [vmem:[%s221 + $0x320] sm:$0xff] %vm1292, %v1264
        %1394 = vst.msk [vmem:[%s221 + $0x328] sm:$0xff] %vm1292, %v1265
        %1395 = vst.msk [vmem:[%s221 + $0x330] sm:$0xff] %vm1292, %v1266
        %1396 = vst.msk [vmem:[%s221 + $0x338] sm:$0xff] %vm1292, %v1267
        %1397 = vst.msk [vmem:[%s221 + $0x340] sm:$0xff] %vm1292, %v1268
        %1398 = vst.msk [vmem:[%s221 + $0x348] sm:$0xff] %vm1292, %v1269
        %1399 = vst.msk [vmem:[%s221 + $0x350] sm:$0xff] %vm1292, %v1270
        %1400 = vst.msk [vmem:[%s221 + $0x358] sm:$0xff] %vm1292, %v1271
        %1401 = vst.msk [vmem:[%s221 + $0x360] sm:$0xff] %vm1292, %v1272
        %1402 = vst.msk [vmem:[%s221 + $0x368] sm:$0xff] %vm1292, %v1273
        %1403 = vst.msk [vmem:[%s221 + $0x370] sm:$0xff] %vm1292, %v1274
        %1404 = vst.msk [vmem:[%s221 + $0x378] sm:$0xff] %vm1292, %v1275
        %1405 = vst.msk [vmem:[%s221 + $0x380] sm:$0xff] %vm1292, %v1276
        %1406 = vst.msk [vmem:[%s221 + $0x388] sm:$0xff] %vm1292, %v1277
        %1407 = vst.msk [vmem:[%s221 + $0x390] sm:$0xff] %vm1292, %v1278
        %1408 = vst.msk [vmem:[%s221 + $0x398] sm:$0xff] %vm1292, %v1279
        %1409 = vst.msk [vmem:[%s221 + $0x3a0] sm:$0xff] %vm1292, %v1280
        %1410 = vst.msk [vmem:[%s221 + $0x3a8] sm:$0xff] %vm1292, %v1281
        %1411 = vst.msk [vmem:[%s221 + $0x3b0] sm:$0xff] %vm1292, %v1282
        %1412 = vst.msk [vmem:[%s221 + $0x3b8] sm:$0xff] %vm1292, %v1283
        %1413 = vst.msk [vmem:[%s221 + $0x3c0] sm:$0xff] %vm1292, %v1284
        %1414 = vst.msk [vmem:[%s221 + $0x3c8] sm:$0xff] %vm1292, %v1285
        %1415 = vst.msk [vmem:[%s221 + $0x3d0] sm:$0xff] %vm1292, %v1286
        %1416 = vst.msk [vmem:[%s221 + $0x3d8] sm:$0xff] %vm1292, %v1287
        %1417 = vst.msk [vmem:[%s221 + $0x3e0] sm:$0xff] %vm1292, %v1288
        %1418 = vst.msk [vmem:[%s221 + $0x3e8] sm:$0xff] %vm1292, %v1289
        %1419 = vst.msk [vmem:[%s221 + $0x3f0] sm:$0xff] %vm1292, %v1290
        %1420 = vst.msk [vmem:[%s221 + $0x3f8] sm:$0xff] %vm1292, %v1291
        %v1421 = vsel %vm1292, %v1164, 0.0
        %1422 = vadd.xlane.f32.xlu0 %v1421
        %v1423 = vpop.xlane.xlu0 %1422
        %v1424 = vsel %vm1292, %v1165, 0.0
        %1425 = vadd.xlane.f32.xlu0 %v1424
        %v1426 = vpop.xlane.xlu0 %1425
        %v1427 = vsel %vm1292, %v1166, 0.0
        %1428 = vadd.xlane.f32.xlu0 %v1427
        %v1429 = vpop.xlane.xlu0 %1428
        %v1430 = vsel %vm1292, %v1167, 0.0
        %1431 = vadd.xlane.f32.xlu0 %v1430
        %v1432 = vpop.xlane.xlu0 %1431
        %v1433 = vsel %vm1292, %v1168, 0.0
        %1434 = vadd.xlane.f32.xlu0 %v1433
        %v1435 = vpop.xlane.xlu0 %1434
        %v1436 = vsel %vm1292, %v1169, 0.0
        %1437 = vadd.xlane.f32.xlu0 %v1436
        %v1438 = vpop.xlane.xlu0 %1437
        %v1439 = vsel %vm1292, %v1170, 0.0
        %1440 = vadd.xlane.f32.xlu0 %v1439
        %v1441 = vpop.xlane.xlu0 %1440
        %v1442 = vsel %vm1292, %v1171, 0.0
        %1443 = vadd.xlane.f32.xlu0 %v1442
        %v1444 = vpop.xlane.xlu0 %1443
        %v1445 = vsel %vm1292, %v1172, 0.0
        %1446 = vadd.xlane.f32.xlu0 %v1445
        %v1447 = vpop.xlane.xlu0 %1446
        %v1448 = vsel %vm1292, %v1173, 0.0
        %1449 = vadd.xlane.f32.xlu0 %v1448
        %v1450 = vpop.xlane.xlu0 %1449
        %v1451 = vsel %vm1292, %v1174, 0.0
        %1452 = vadd.xlane.f32.xlu0 %v1451
        %v1453 = vpop.xlane.xlu0 %1452
        %v1454 = vsel %vm1292, %v1175, 0.0
        %1455 = vadd.xlane.f32.xlu0 %v1454
        %v1456 = vpop.xlane.xlu0 %1455
        %v1457 = vsel %vm1292, %v1176, 0.0
        %1458 = vadd.xlane.f32.xlu0 %v1457
        %v1459 = vpop.xlane.xlu0 %1458
        %v1460 = vsel %vm1292, %v1177, 0.0
        %1461 = vadd.xlane.f32.xlu0 %v1460
        %v1462 = vpop.xlane.xlu0 %1461
        %v1463 = vsel %vm1292, %v1178, 0.0
        %1464 = vadd.xlane.f32.xlu0 %v1463
        %v1465 = vpop.xlane.xlu0 %1464
        %v1466 = vsel %vm1292, %v1179, 0.0
        %1467 = vadd.xlane.f32.xlu0 %v1466
        %v1468 = vpop.xlane.xlu0 %1467
        %v1469 = vsel %vm1292, %v1180, 0.0
        %1470 = vadd.xlane.f32.xlu0 %v1469
        %v1471 = vpop.xlane.xlu0 %1470
        %v1472 = vsel %vm1292, %v1181, 0.0
        %1473 = vadd.xlane.f32.xlu0 %v1472
        %v1474 = vpop.xlane.xlu0 %1473
        %v1475 = vsel %vm1292, %v1182, 0.0
        %1476 = vadd.xlane.f32.xlu0 %v1475
        %v1477 = vpop.xlane.xlu0 %1476
        %v1478 = vsel %vm1292, %v1183, 0.0
        %1479 = vadd.xlane.f32.xlu0 %v1478
        %v1480 = vpop.xlane.xlu0 %1479
        %v1481 = vsel %vm1292, %v1184, 0.0
        %1482 = vadd.xlane.f32.xlu0 %v1481
        %v1483 = vpop.xlane.xlu0 %1482
        %v1484 = vsel %vm1292, %v1185, 0.0
        %1485 = vadd.xlane.f32.xlu0 %v1484
        %v1486 = vpop.xlane.xlu0 %1485
        %v1487 = vsel %vm1292, %v1186, 0.0
        %1488 = vadd.xlane.f32.xlu0 %v1487
        %v1489 = vpop.xlane.xlu0 %1488
        %v1490 = vsel %vm1292, %v1187, 0.0
        %1491 = vadd.xlane.f32.xlu0 %v1490
        %v1492 = vpop.xlane.xlu0 %1491
        %v1493 = vsel %vm1292, %v1188, 0.0
        %1494 = vadd.xlane.f32.xlu0 %v1493
        %v1495 = vpop.xlane.xlu0 %1494
        %v1496 = vsel %vm1292, %v1189, 0.0
        %1497 = vadd.xlane.f32.xlu0 %v1496
        %v1498 = vpop.xlane.xlu0 %1497
        %v1499 = vsel %vm1292, %v1190, 0.0
        %1500 = vadd.xlane.f32.xlu0 %v1499
        %v1501 = vpop.xlane.xlu0 %1500
        %v1502 = vsel %vm1292, %v1191, 0.0
        %1503 = vadd.xlane.f32.xlu0 %v1502
        %v1504 = vpop.xlane.xlu0 %1503
        %v1505 = vsel %vm1292, %v1192, 0.0
        %1506 = vadd.xlane.f32.xlu0 %v1505
        %v1507 = vpop.xlane.xlu0 %1506
        %v1508 = vsel %vm1292, %v1193, 0.0
        %1509 = vadd.xlane.f32.xlu0 %v1508
        %v1510 = vpop.xlane.xlu0 %1509
        %v1511 = vsel %vm1292, %v1194, 0.0
        %1512 = vadd.xlane.f32.xlu0 %v1511
        %v1513 = vpop.xlane.xlu0 %1512
        %v1514 = vsel %vm1292, %v1195, 0.0
        %1515 = vadd.xlane.f32.xlu0 %v1514
        %v1516 = vpop.xlane.xlu0 %1515
        %v1517 = vsel %vm1292, %v1196, 0.0
        %1518 = vadd.xlane.f32.xlu0 %v1517
        %v1519 = vpop.xlane.xlu0 %1518
        %v1520 = vsel %vm1292, %v1197, 0.0
        %1521 = vadd.xlane.f32.xlu0 %v1520
        %v1522 = vpop.xlane.xlu0 %1521
        %v1523 = vsel %vm1292, %v1198, 0.0
        %1524 = vadd.xlane.f32.xlu0 %v1523
        %v1525 = vpop.xlane.xlu0 %1524
        %v1526 = vsel %vm1292, %v1199, 0.0
        %1527 = vadd.xlane.f32.xlu0 %v1526
        %v1528 = vpop.xlane.xlu0 %1527
        %v1529 = vsel %vm1292, %v1200, 0.0
        %1530 = vadd.xlane.f32.xlu0 %v1529
        %v1531 = vpop.xlane.xlu0 %1530
        %v1532 = vsel %vm1292, %v1201, 0.0
        %1533 = vadd.xlane.f32.xlu0 %v1532
        %v1534 = vpop.xlane.xlu0 %1533
        %v1535 = vsel %vm1292, %v1202, 0.0
        %1536 = vadd.xlane.f32.xlu0 %v1535
        %v1537 = vpop.xlane.xlu0 %1536
        %v1538 = vsel %vm1292, %v1203, 0.0
        %1539 = vadd.xlane.f32.xlu0 %v1538
        %v1540 = vpop.xlane.xlu0 %1539
        %v1541 = vsel %vm1292, %v1204, 0.0
        %1542 = vadd.xlane.f32.xlu0 %v1541
        %v1543 = vpop.xlane.xlu0 %1542
        %v1544 = vsel %vm1292, %v1205, 0.0
        %1545 = vadd.xlane.f32.xlu0 %v1544
        %v1546 = vpop.xlane.xlu0 %1545
        %v1547 = vsel %vm1292, %v1206, 0.0
        %1548 = vadd.xlane.f32.xlu0 %v1547
        %v1549 = vpop.xlane.xlu0 %1548
        %v1550 = vsel %vm1292, %v1207, 0.0
        %1551 = vadd.xlane.f32.xlu0 %v1550
        %v1552 = vpop.xlane.xlu0 %1551
        %v1553 = vsel %vm1292, %v1208, 0.0
        %1554 = vadd.xlane.f32.xlu0 %v1553
        %v1555 = vpop.xlane.xlu0 %1554
        %v1556 = vsel %vm1292, %v1209, 0.0
        %1557 = vadd.xlane.f32.xlu0 %v1556
        %v1558 = vpop.xlane.xlu0 %1557
        %v1559 = vsel %vm1292, %v1210, 0.0
        %1560 = vadd.xlane.f32.xlu0 %v1559
        %v1561 = vpop.xlane.xlu0 %1560
        %v1562 = vsel %vm1292, %v1211, 0.0
        %1563 = vadd.xlane.f32.xlu0 %v1562
        %v1564 = vpop.xlane.xlu0 %1563
        %v1565 = vsel %vm1292, %v1212, 0.0
        %1566 = vadd.xlane.f32.xlu0 %v1565
        %v1567 = vpop.xlane.xlu0 %1566
        %v1568 = vsel %vm1292, %v1213, 0.0
        %1569 = vadd.xlane.f32.xlu0 %v1568
        %v1570 = vpop.xlane.xlu0 %1569
        %v1571 = vsel %vm1292, %v1214, 0.0
        %1572 = vadd.xlane.f32.xlu0 %v1571
        %v1573 = vpop.xlane.xlu0 %1572
        %v1574 = vsel %vm1292, %v1215, 0.0
        %1575 = vadd.xlane.f32.xlu0 %v1574
        %v1576 = vpop.xlane.xlu0 %1575
        %v1577 = vsel %vm1292, %v1216, 0.0
        %1578 = vadd.xlane.f32.xlu0 %v1577
        %v1579 = vpop.xlane.xlu0 %1578
        %v1580 = vsel %vm1292, %v1217, 0.0
        %1581 = vadd.xlane.f32.xlu0 %v1580
        %v1582 = vpop.xlane.xlu0 %1581
        %v1583 = vsel %vm1292, %v1218, 0.0
        %1584 = vadd.xlane.f32.xlu0 %v1583
        %v1585 = vpop.xlane.xlu0 %1584
        %v1586 = vsel %vm1292, %v1219, 0.0
        %1587 = vadd.xlane.f32.xlu0 %v1586
        %v1588 = vpop.xlane.xlu0 %1587
        %v1589 = vsel %vm1292, %v1220, 0.0
        %1590 = vadd.xlane.f32.xlu0 %v1589
        %v1591 = vpop.xlane.xlu0 %1590
        %v1592 = vsel %vm1292, %v1221, 0.0
        %1593 = vadd.xlane.f32.xlu0 %v1592
        %v1594 = vpop.xlane.xlu0 %1593
        %v1595 = vsel %vm1292, %v1222, 0.0
        %1596 = vadd.xlane.f32.xlu0 %v1595
        %v1597 = vpop.xlane.xlu0 %1596
        %v1598 = vsel %vm1292, %v1223, 0.0
        %1599 = vadd.xlane.f32.xlu0 %v1598
        %v1600 = vpop.xlane.xlu0 %1599
        %v1601 = vsel %vm1292, %v1224, 0.0
        %1602 = vadd.xlane.f32.xlu0 %v1601
        %v1603 = vpop.xlane.xlu0 %1602
        %v1604 = vsel %vm1292, %v1225, 0.0
        %1605 = vadd.xlane.f32.xlu0 %v1604
        %v1606 = vpop.xlane.xlu0 %1605
        %v1607 = vsel %vm1292, %v1226, 0.0
        %1608 = vadd.xlane.f32.xlu0 %v1607
        %v1609 = vpop.xlane.xlu0 %1608
        %v1610 = vsel %vm1292, %v1227, 0.0
        %1611 = vadd.xlane.f32.xlu0 %v1610
        %v1612 = vpop.xlane.xlu0 %1611
        %v1613 = vsel %vm1292, %v1228, 0.0
        %1614 = vadd.xlane.f32.xlu0 %v1613
        %v1615 = vpop.xlane.xlu0 %1614
        %v1616 = vsel %vm1292, %v1229, 0.0
        %1617 = vadd.xlane.f32.xlu0 %v1616
        %v1618 = vpop.xlane.xlu0 %1617
        %v1619 = vsel %vm1292, %v1230, 0.0
        %1620 = vadd.xlane.f32.xlu0 %v1619
        %v1621 = vpop.xlane.xlu0 %1620
        %v1622 = vsel %vm1292, %v1231, 0.0
        %1623 = vadd.xlane.f32.xlu0 %v1622
        %v1624 = vpop.xlane.xlu0 %1623
        %v1625 = vsel %vm1292, %v1232, 0.0
        %1626 = vadd.xlane.f32.xlu0 %v1625
        %v1627 = vpop.xlane.xlu0 %1626
        %v1628 = vsel %vm1292, %v1233, 0.0
        %1629 = vadd.xlane.f32.xlu0 %v1628
        %v1630 = vpop.xlane.xlu0 %1629
        %v1631 = vsel %vm1292, %v1234, 0.0
        %1632 = vadd.xlane.f32.xlu0 %v1631
        %v1633 = vpop.xlane.xlu0 %1632
        %v1634 = vsel %vm1292, %v1235, 0.0
        %1635 = vadd.xlane.f32.xlu0 %v1634
        %v1636 = vpop.xlane.xlu0 %1635
        %v1637 = vsel %vm1292, %v1236, 0.0
        %1638 = vadd.xlane.f32.xlu0 %v1637
        %v1639 = vpop.xlane.xlu0 %1638
        %v1640 = vsel %vm1292, %v1237, 0.0
        %1641 = vadd.xlane.f32.xlu0 %v1640
        %v1642 = vpop.xlane.xlu0 %1641
        %v1643 = vsel %vm1292, %v1238, 0.0
        %1644 = vadd.xlane.f32.xlu0 %v1643
        %v1645 = vpop.xlane.xlu0 %1644
        %v1646 = vsel %vm1292, %v1239, 0.0
        %1647 = vadd.xlane.f32.xlu0 %v1646
        %v1648 = vpop.xlane.xlu0 %1647
        %v1649 = vsel %vm1292, %v1240, 0.0
        %1650 = vadd.xlane.f32.xlu0 %v1649
        %v1651 = vpop.xlane.xlu0 %1650
        %v1652 = vsel %vm1292, %v1241, 0.0
        %1653 = vadd.xlane.f32.xlu0 %v1652
        %v1654 = vpop.xlane.xlu0 %1653
        %v1655 = vsel %vm1292, %v1242, 0.0
        %1656 = vadd.xlane.f32.xlu0 %v1655
        %v1657 = vpop.xlane.xlu0 %1656
        %v1658 = vsel %vm1292, %v1243, 0.0
        %1659 = vadd.xlane.f32.xlu0 %v1658
        %v1660 = vpop.xlane.xlu0 %1659
        %v1661 = vsel %vm1292, %v1244, 0.0
        %1662 = vadd.xlane.f32.xlu0 %v1661
        %v1663 = vpop.xlane.xlu0 %1662
        %v1664 = vsel %vm1292, %v1245, 0.0
        %1665 = vadd.xlane.f32.xlu0 %v1664
        %v1666 = vpop.xlane.xlu0 %1665
        %v1667 = vsel %vm1292, %v1246, 0.0
        %1668 = vadd.xlane.f32.xlu0 %v1667
        %v1669 = vpop.xlane.xlu0 %1668
        %v1670 = vsel %vm1292, %v1247, 0.0
        %1671 = vadd.xlane.f32.xlu0 %v1670
        %v1672 = vpop.xlane.xlu0 %1671
        %v1673 = vsel %vm1292, %v1248, 0.0
        %1674 = vadd.xlane.f32.xlu0 %v1673
        %v1675 = vpop.xlane.xlu0 %1674
        %v1676 = vsel %vm1292, %v1249, 0.0
        %1677 = vadd.xlane.f32.xlu0 %v1676
        %v1678 = vpop.xlane.xlu0 %1677
        %v1679 = vsel %vm1292, %v1250, 0.0
        %1680 = vadd.xlane.f32.xlu0 %v1679
        %v1681 = vpop.xlane.xlu0 %1680
        %v1682 = vsel %vm1292, %v1251, 0.0
        %1683 = vadd.xlane.f32.xlu0 %v1682
        %v1684 = vpop.xlane.xlu0 %1683
        %v1685 = vsel %vm1292, %v1252, 0.0
        %1686 = vadd.xlane.f32.xlu0 %v1685
        %v1687 = vpop.xlane.xlu0 %1686
        %v1688 = vsel %vm1292, %v1253, 0.0
        %1689 = vadd.xlane.f32.xlu0 %v1688
        %v1690 = vpop.xlane.xlu0 %1689
        %v1691 = vsel %vm1292, %v1254, 0.0
        %1692 = vadd.xlane.f32.xlu0 %v1691
        %v1693 = vpop.xlane.xlu0 %1692
        %v1694 = vsel %vm1292, %v1255, 0.0
        %1695 = vadd.xlane.f32.xlu0 %v1694
        %v1696 = vpop.xlane.xlu0 %1695
        %v1697 = vsel %vm1292, %v1256, 0.0
        %1698 = vadd.xlane.f32.xlu0 %v1697
        %v1699 = vpop.xlane.xlu0 %1698
        %v1700 = vsel %vm1292, %v1257, 0.0
        %1701 = vadd.xlane.f32.xlu0 %v1700
        %v1702 = vpop.xlane.xlu0 %1701
        %v1703 = vsel %vm1292, %v1258, 0.0
        %1704 = vadd.xlane.f32.xlu0 %v1703
        %v1705 = vpop.xlane.xlu0 %1704
        %v1706 = vsel %vm1292, %v1259, 0.0
        %1707 = vadd.xlane.f32.xlu0 %v1706
        %v1708 = vpop.xlane.xlu0 %1707
        %v1709 = vsel %vm1292, %v1260, 0.0
        %1710 = vadd.xlane.f32.xlu0 %v1709
        %v1711 = vpop.xlane.xlu0 %1710
        %v1712 = vsel %vm1292, %v1261, 0.0
        %1713 = vadd.xlane.f32.xlu0 %v1712
        %v1714 = vpop.xlane.xlu0 %1713
        %v1715 = vsel %vm1292, %v1262, 0.0
        %1716 = vadd.xlane.f32.xlu0 %v1715
        %v1717 = vpop.xlane.xlu0 %1716
        %v1718 = vsel %vm1292, %v1263, 0.0
        %1719 = vadd.xlane.f32.xlu0 %v1718
        %v1720 = vpop.xlane.xlu0 %1719
        %v1721 = vsel %vm1292, %v1264, 0.0
        %1722 = vadd.xlane.f32.xlu0 %v1721
        %v1723 = vpop.xlane.xlu0 %1722
        %v1724 = vsel %vm1292, %v1265, 0.0
        %1725 = vadd.xlane.f32.xlu0 %v1724
        %v1726 = vpop.xlane.xlu0 %1725
        %v1727 = vsel %vm1292, %v1266, 0.0
        %1728 = vadd.xlane.f32.xlu0 %v1727
        %v1729 = vpop.xlane.xlu0 %1728
        %v1730 = vsel %vm1292, %v1267, 0.0
        %1731 = vadd.xlane.f32.xlu0 %v1730
        %v1732 = vpop.xlane.xlu0 %1731
        %v1733 = vsel %vm1292, %v1268, 0.0
        %1734 = vadd.xlane.f32.xlu0 %v1733
        %v1735 = vpop.xlane.xlu0 %1734
        %v1736 = vsel %vm1292, %v1269, 0.0
        %1737 = vadd.xlane.f32.xlu0 %v1736
        %v1738 = vpop.xlane.xlu0 %1737
        %v1739 = vsel %vm1292, %v1270, 0.0
        %1740 = vadd.xlane.f32.xlu0 %v1739
        %v1741 = vpop.xlane.xlu0 %1740
        %v1742 = vsel %vm1292, %v1271, 0.0
        %1743 = vadd.xlane.f32.xlu0 %v1742
        %v1744 = vpop.xlane.xlu0 %1743
        %v1745 = vsel %vm1292, %v1272, 0.0
        %1746 = vadd.xlane.f32.xlu0 %v1745
        %v1747 = vpop.xlane.xlu0 %1746
        %v1748 = vsel %vm1292, %v1273, 0.0
        %1749 = vadd.xlane.f32.xlu0 %v1748
        %v1750 = vpop.xlane.xlu0 %1749
        %v1751 = vsel %vm1292, %v1274, 0.0
        %1752 = vadd.xlane.f32.xlu0 %v1751
        %v1753 = vpop.xlane.xlu0 %1752
        %v1754 = vsel %vm1292, %v1275, 0.0
        %1755 = vadd.xlane.f32.xlu0 %v1754
        %v1756 = vpop.xlane.xlu0 %1755
        %v1757 = vsel %vm1292, %v1276, 0.0
        %1758 = vadd.xlane.f32.xlu0 %v1757
        %v1759 = vpop.xlane.xlu0 %1758
        %v1760 = vsel %vm1292, %v1277, 0.0
        %1761 = vadd.xlane.f32.xlu0 %v1760
        %v1762 = vpop.xlane.xlu0 %1761
        %v1763 = vsel %vm1292, %v1278, 0.0
        %1764 = vadd.xlane.f32.xlu0 %v1763
        %v1765 = vpop.xlane.xlu0 %1764
        %v1766 = vsel %vm1292, %v1279, 0.0
        %1767 = vadd.xlane.f32.xlu0 %v1766
        %v1768 = vpop.xlane.xlu0 %1767
        %v1769 = vsel %vm1292, %v1280, 0.0
        %1770 = vadd.xlane.f32.xlu0 %v1769
        %v1771 = vpop.xlane.xlu0 %1770
        %v1772 = vsel %vm1292, %v1281, 0.0
        %1773 = vadd.xlane.f32.xlu0 %v1772
        %v1774 = vpop.xlane.xlu0 %1773
        %v1775 = vsel %vm1292, %v1282, 0.0
        %1776 = vadd.xlane.f32.xlu0 %v1775
        %v1777 = vpop.xlane.xlu0 %1776
        %v1778 = vsel %vm1292, %v1283, 0.0
        %1779 = vadd.xlane.f32.xlu0 %v1778
        %v1780 = vpop.xlane.xlu0 %1779
        %v1781 = vsel %vm1292, %v1284, 0.0
        %1782 = vadd.xlane.f32.xlu0 %v1781
        %v1783 = vpop.xlane.xlu0 %1782
        %v1784 = vsel %vm1292, %v1285, 0.0
        %1785 = vadd.xlane.f32.xlu0 %v1784
        %v1786 = vpop.xlane.xlu0 %1785
        %v1787 = vsel %vm1292, %v1286, 0.0
        %1788 = vadd.xlane.f32.xlu0 %v1787
        %v1789 = vpop.xlane.xlu0 %1788
        %v1790 = vsel %vm1292, %v1287, 0.0
        %1791 = vadd.xlane.f32.xlu0 %v1790
        %v1792 = vpop.xlane.xlu0 %1791
        %v1793 = vsel %vm1292, %v1288, 0.0
        %1794 = vadd.xlane.f32.xlu0 %v1793
        %v1795 = vpop.xlane.xlu0 %1794
        %v1796 = vsel %vm1292, %v1289, 0.0
        %1797 = vadd.xlane.f32.xlu0 %v1796
        %v1798 = vpop.xlane.xlu0 %1797
        %v1799 = vsel %vm1292, %v1290, 0.0
        %1800 = vadd.xlane.f32.xlu0 %v1799
        %v1801 = vpop.xlane.xlu0 %1800
        %v1802 = vsel %vm1292, %v1291, 0.0
        %1803 = vadd.xlane.f32.xlu0 %v1802
        %v1804 = vpop.xlane.xlu0 %1803
        %v1805 = vrcp.pop 64.0
        %v1806 = vmul.f32 %v1423, %v1805
        %v1807 = vmul.f32 %v1426, %v1805
        %v1808 = vmul.f32 %v1429, %v1805
        %v1809 = vmul.f32 %v1432, %v1805
        %v1810 = vmul.f32 %v1435, %v1805
        %v1811 = vmul.f32 %v1438, %v1805
        %v1812 = vmul.f32 %v1441, %v1805
        %v1813 = vmul.f32 %v1444, %v1805
        %v1814 = vmul.f32 %v1447, %v1805
        %v1815 = vmul.f32 %v1450, %v1805
        %v1816 = vmul.f32 %v1453, %v1805
        %v1817 = vmul.f32 %v1456, %v1805
        %v1818 = vmul.f32 %v1459, %v1805
        %v1819 = vmul.f32 %v1462, %v1805
        %v1820 = vmul.f32 %v1465, %v1805
        %v1821 = vmul.f32 %v1468, %v1805
        %v1822 = vmul.f32 %v1471, %v1805
        %v1823 = vmul.f32 %v1474, %v1805
        %v1824 = vmul.f32 %v1477, %v1805
        %v1825 = vmul.f32 %v1480, %v1805
        %v1826 = vmul.f32 %v1483, %v1805
        %v1827 = vmul.f32 %v1486, %v1805
        %v1828 = vmul.f32 %v1489, %v1805
        %v1829 = vmul.f32 %v1492, %v1805
        %v1830 = vmul.f32 %v1495, %v1805
        %v1831 = vmul.f32 %v1498, %v1805
        %v1832 = vmul.f32 %v1501, %v1805
        %v1833 = vmul.f32 %v1504, %v1805
        %v1834 = vmul.f32 %v1507, %v1805
        %v1835 = vmul.f32 %v1510, %v1805
        %v1836 = vmul.f32 %v1513, %v1805
        %v1837 = vmul.f32 %v1516, %v1805
        %v1838 = vmul.f32 %v1519, %v1805
        %v1839 = vmul.f32 %v1522, %v1805
        %v1840 = vmul.f32 %v1525, %v1805
        %v1841 = vmul.f32 %v1528, %v1805
        %v1842 = vmul.f32 %v1531, %v1805
        %v1843 = vmul.f32 %v1534, %v1805
        %v1844 = vmul.f32 %v1537, %v1805
        %v1845 = vmul.f32 %v1540, %v1805
        %v1846 = vmul.f32 %v1543, %v1805
        %v1847 = vmul.f32 %v1546, %v1805
        %v1848 = vmul.f32 %v1549, %v1805
        %v1849 = vmul.f32 %v1552, %v1805
        %v1850 = vmul.f32 %v1555, %v1805
        %v1851 = vmul.f32 %v1558, %v1805
        %v1852 = vmul.f32 %v1561, %v1805
        %v1853 = vmul.f32 %v1564, %v1805
        %v1854 = vmul.f32 %v1567, %v1805
        %v1855 = vmul.f32 %v1570, %v1805
        %v1856 = vmul.f32 %v1573, %v1805
        %v1857 = vmul.f32 %v1576, %v1805
        %v1858 = vmul.f32 %v1579, %v1805
        %v1859 = vmul.f32 %v1582, %v1805
        %v1860 = vmul.f32 %v1585, %v1805
        %v1861 = vmul.f32 %v1588, %v1805
        %v1862 = vmul.f32 %v1591, %v1805
        %v1863 = vmul.f32 %v1594, %v1805
        %v1864 = vmul.f32 %v1597, %v1805
        %v1865 = vmul.f32 %v1600, %v1805
        %v1866 = vmul.f32 %v1603, %v1805
        %v1867 = vmul.f32 %v1606, %v1805
        %v1868 = vmul.f32 %v1609, %v1805
        %v1869 = vmul.f32 %v1612, %v1805
        %v1870 = vmul.f32 %v1615, %v1805
        %v1871 = vmul.f32 %v1618, %v1805
        %v1872 = vmul.f32 %v1621, %v1805
        %v1873 = vmul.f32 %v1624, %v1805
        %v1874 = vmul.f32 %v1627, %v1805
        %v1875 = vmul.f32 %v1630, %v1805
        %v1876 = vmul.f32 %v1633, %v1805
        %v1877 = vmul.f32 %v1636, %v1805
        %v1878 = vmul.f32 %v1639, %v1805
        %v1879 = vmul.f32 %v1642, %v1805
        %v1880 = vmul.f32 %v1645, %v1805
        %v1881 = vmul.f32 %v1648, %v1805
        %v1882 = vmul.f32 %v1651, %v1805
        %v1883 = vmul.f32 %v1654, %v1805
        %v1884 = vmul.f32 %v1657, %v1805
        %v1885 = vmul.f32 %v1660, %v1805
        %v1886 = vmul.f32 %v1663, %v1805
        %v1887 = vmul.f32 %v1666, %v1805
        %v1888 = vmul.f32 %v1669, %v1805
        %v1889 = vmul.f32 %v1672, %v1805
        %v1890 = vmul.f32 %v1675, %v1805
        %v1891 = vmul.f32 %v1678, %v1805
        %v1892 = vmul.f32 %v1681, %v1805
        %v1893 = vmul.f32 %v1684, %v1805
        %v1894 = vmul.f32 %v1687, %v1805
        %v1895 = vmul.f32 %v1690, %v1805
        %v1896 = vmul.f32 %v1693, %v1805
        %v1897 = vmul.f32 %v1696, %v1805
        %v1898 = vmul.f32 %v1699, %v1805
        %v1899 = vmul.f32 %v1702, %v1805
        %v1900 = vmul.f32 %v1705, %v1805
        %v1901 = vmul.f32 %v1708, %v1805
        %v1902 = vmul.f32 %v1711, %v1805
        %v1903 = vmul.f32 %v1714, %v1805
        %v1904 = vmul.f32 %v1717, %v1805
        %v1905 = vmul.f32 %v1720, %v1805
        %v1906 = vmul.f32 %v1723, %v1805
        %v1907 = vmul.f32 %v1726, %v1805
        %v1908 = vmul.f32 %v1729, %v1805
        %v1909 = vmul.f32 %v1732, %v1805
        %v1910 = vmul.f32 %v1735, %v1805
        %v1911 = vmul.f32 %v1738, %v1805
        %v1912 = vmul.f32 %v1741, %v1805
        %v1913 = vmul.f32 %v1744, %v1805
        %v1914 = vmul.f32 %v1747, %v1805
        %v1915 = vmul.f32 %v1750, %v1805
        %v1916 = vmul.f32 %v1753, %v1805
        %v1917 = vmul.f32 %v1756, %v1805
        %v1918 = vmul.f32 %v1759, %v1805
        %v1919 = vmul.f32 %v1762, %v1805
        %v1920 = vmul.f32 %v1765, %v1805
        %v1921 = vmul.f32 %v1768, %v1805
        %v1922 = vmul.f32 %v1771, %v1805
        %v1923 = vmul.f32 %v1774, %v1805
        %v1924 = vmul.f32 %v1777, %v1805
        %v1925 = vmul.f32 %v1780, %v1805
        %v1926 = vmul.f32 %v1783, %v1805
        %v1927 = vmul.f32 %v1786, %v1805
        %v1928 = vmul.f32 %v1789, %v1805
        %v1929 = vmul.f32 %v1792, %v1805
        %v1930 = vmul.f32 %v1795, %v1805
        %v1931 = vmul.f32 %v1798, %v1805
        %v1932 = vmul.f32 %v1801, %v1805
        %v1933 = vmul.f32 %v1804, %v1805
        %vm1934 = vcmask 7168
        %1935 = vst.msk [vmem:[%s266] sm:$0xff] %vm1934, %v1806
        %1936 = vst.msk [vmem:[%s266 + $0x8] sm:$0xff] %vm1934, %v1807
        %1937 = vst.msk [vmem:[%s266 + $0x10] sm:$0xff] %vm1934, %v1808
        %1938 = vst.msk [vmem:[%s266 + $0x18] sm:$0xff] %vm1934, %v1809
        %1939 = vst.msk [vmem:[%s266 + $0x20] sm:$0xff] %vm1934, %v1810
        %1940 = vst.msk [vmem:[%s266 + $0x28] sm:$0xff] %vm1934, %v1811
        %1941 = vst.msk [vmem:[%s266 + $0x30] sm:$0xff] %vm1934, %v1812
        %1942 = vst.msk [vmem:[%s266 + $0x38] sm:$0xff] %vm1934, %v1813
        %1943 = vst.msk [vmem:[%s266 + $0x40] sm:$0xff] %vm1934, %v1814
        %1944 = vst.msk [vmem:[%s266 + $0x48] sm:$0xff] %vm1934, %v1815
        %1945 = vst.msk [vmem:[%s266 + $0x50] sm:$0xff] %vm1934, %v1816
        %1946 = vst.msk [vmem:[%s266 + $0x58] sm:$0xff] %vm1934, %v1817
        %1947 = vst.msk [vmem:[%s266 + $0x60] sm:$0xff] %vm1934, %v1818
        %1948 = vst.msk [vmem:[%s266 + $0x68] sm:$0xff] %vm1934, %v1819
        %1949 = vst.msk [vmem:[%s266 + $0x70] sm:$0xff] %vm1934, %v1820
        %1950 = vst.msk [vmem:[%s266 + $0x78] sm:$0xff] %vm1934, %v1821
        %1951 = vst.msk [vmem:[%s266 + $0x80] sm:$0xff] %vm1934, %v1822
        %1952 = vst.msk [vmem:[%s266 + $0x88] sm:$0xff] %vm1934, %v1823
        %1953 = vst.msk [vmem:[%s266 + $0x90] sm:$0xff] %vm1934, %v1824
        %1954 = vst.msk [vmem:[%s266 + $0x98] sm:$0xff] %vm1934, %v1825
        %1955 = vst.msk [vmem:[%s266 + $0xa0] sm:$0xff] %vm1934, %v1826
        %1956 = vst.msk [vmem:[%s266 + $0xa8] sm:$0xff] %vm1934, %v1827
        %1957 = vst.msk [vmem:[%s266 + $0xb0] sm:$0xff] %vm1934, %v1828
        %1958 = vst.msk [vmem:[%s266 + $0xb8] sm:$0xff] %vm1934, %v1829
        %1959 = vst.msk [vmem:[%s266 + $0xc0] sm:$0xff] %vm1934, %v1830
        %1960 = vst.msk [vmem:[%s266 + $0xc8] sm:$0xff] %vm1934, %v1831
        %1961 = vst.msk [vmem:[%s266 + $0xd0] sm:$0xff] %vm1934, %v1832
        %1962 = vst.msk [vmem:[%s266 + $0xd8] sm:$0xff] %vm1934, %v1833
        %1963 = vst.msk [vmem:[%s266 + $0xe0] sm:$0xff] %vm1934, %v1834
        %1964 = vst.msk [vmem:[%s266 + $0xe8] sm:$0xff] %vm1934, %v1835
        %1965 = vst.msk [vmem:[%s266 + $0xf0] sm:$0xff] %vm1934, %v1836
        %1966 = vst.msk [vmem:[%s266 + $0xf8] sm:$0xff] %vm1934, %v1837
        %1967 = vst.msk [vmem:[%s266 + $0x100] sm:$0xff] %vm1934, %v1838
        %1968 = vst.msk [vmem:[%s266 + $0x108] sm:$0xff] %vm1934, %v1839
        %1969 = vst.msk [vmem:[%s266 + $0x110] sm:$0xff] %vm1934, %v1840
        %1970 = vst.msk [vmem:[%s266 + $0x118] sm:$0xff] %vm1934, %v1841
        %1971 = vst.msk [vmem:[%s266 + $0x120] sm:$0xff] %vm1934, %v1842
        %1972 = vst.msk [vmem:[%s266 + $0x128] sm:$0xff] %vm1934, %v1843
        %1973 = vst.msk [vmem:[%s266 + $0x130] sm:$0xff] %vm1934, %v1844
        %1974 = vst.msk [vmem:[%s266 + $0x138] sm:$0xff] %vm1934, %v1845
        %1975 = vst.msk [vmem:[%s266 + $0x140] sm:$0xff] %vm1934, %v1846
        %1976 = vst.msk [vmem:[%s266 + $0x148] sm:$0xff] %vm1934, %v1847
        %1977 = vst.msk [vmem:[%s266 + $0x150] sm:$0xff] %vm1934, %v1848
        %1978 = vst.msk [vmem:[%s266 + $0x158] sm:$0xff] %vm1934, %v1849
        %1979 = vst.msk [vmem:[%s266 + $0x160] sm:$0xff] %vm1934, %v1850
        %1980 = vst.msk [vmem:[%s266 + $0x168] sm:$0xff] %vm1934, %v1851
        %1981 = vst.msk [vmem:[%s266 + $0x170] sm:$0xff] %vm1934, %v1852
        %1982 = vst.msk [vmem:[%s266 + $0x178] sm:$0xff] %vm1934, %v1853
        %1983 = vst.msk [vmem:[%s266 + $0x180] sm:$0xff] %vm1934, %v1854
        %1984 = vst.msk [vmem:[%s266 + $0x188] sm:$0xff] %vm1934, %v1855
        %1985 = vst.msk [vmem:[%s266 + $0x190] sm:$0xff] %vm1934, %v1856
        %1986 = vst.msk [vmem:[%s266 + $0x198] sm:$0xff] %vm1934, %v1857
        %1987 = vst.msk [vmem:[%s266 + $0x1a0] sm:$0xff] %vm1934, %v1858
        %1988 = vst.msk [vmem:[%s266 + $0x1a8] sm:$0xff] %vm1934, %v1859
        %1989 = vst.msk [vmem:[%s266 + $0x1b0] sm:$0xff] %vm1934, %v1860
        %1990 = vst.msk [vmem:[%s266 + $0x1b8] sm:$0xff] %vm1934, %v1861
        %1991 = vst.msk [vmem:[%s266 + $0x1c0] sm:$0xff] %vm1934, %v1862
        %1992 = vst.msk [vmem:[%s266 + $0x1c8] sm:$0xff] %vm1934, %v1863
        %1993 = vst.msk [vmem:[%s266 + $0x1d0] sm:$0xff] %vm1934, %v1864
        %1994 = vst.msk [vmem:[%s266 + $0x1d8] sm:$0xff] %vm1934, %v1865
        %1995 = vst.msk [vmem:[%s266 + $0x1e0] sm:$0xff] %vm1934, %v1866
        %1996 = vst.msk [vmem:[%s266 + $0x1e8] sm:$0xff] %vm1934, %v1867
        %1997 = vst.msk [vmem:[%s266 + $0x1f0] sm:$0xff] %vm1934, %v1868
        %1998 = vst.msk [vmem:[%s266 + $0x1f8] sm:$0xff] %vm1934, %v1869
        %1999 = vst.msk [vmem:[%s266 + $0x200] sm:$0xff] %vm1934, %v1870
        %2000 = vst.msk [vmem:[%s266 + $0x208] sm:$0xff] %vm1934, %v1871
        %2001 = vst.msk [vmem:[%s266 + $0x210] sm:$0xff] %vm1934, %v1872
        %2002 = vst.msk [vmem:[%s266 + $0x218] sm:$0xff] %vm1934, %v1873
        %2003 = vst.msk [vmem:[%s266 + $0x220] sm:$0xff] %vm1934, %v1874
        %2004 = vst.msk [vmem:[%s266 + $0x228] sm:$0xff] %vm1934, %v1875
        %2005 = vst.msk [vmem:[%s266 + $0x230] sm:$0xff] %vm1934, %v1876
        %2006 = vst.msk [vmem:[%s266 + $0x238] sm:$0xff] %vm1934, %v1877
        %2007 = vst.msk [vmem:[%s266 + $0x240] sm:$0xff] %vm1934, %v1878
        %2008 = vst.msk [vmem:[%s266 + $0x248] sm:$0xff] %vm1934, %v1879
        %2009 = vst.msk [vmem:[%s266 + $0x250] sm:$0xff] %vm1934, %v1880
        %2010 = vst.msk [vmem:[%s266 + $0x258] sm:$0xff] %vm1934, %v1881
        %2011 = vst.msk [vmem:[%s266 + $0x260] sm:$0xff] %vm1934, %v1882
        %2012 = vst.msk [vmem:[%s266 + $0x268] sm:$0xff] %vm1934, %v1883
        %2013 = vst.msk [vmem:[%s266 + $0x270] sm:$0xff] %vm1934, %v1884
        %2014 = vst.msk [vmem:[%s266 + $0x278] sm:$0xff] %vm1934, %v1885
        %2015 = vst.msk [vmem:[%s266 + $0x280] sm:$0xff] %vm1934, %v1886
        %2016 = vst.msk [vmem:[%s266 + $0x288] sm:$0xff] %vm1934, %v1887
        %2017 = vst.msk [vmem:[%s266 + $0x290] sm:$0xff] %vm1934, %v1888
        %2018 = vst.msk [vmem:[%s266 + $0x298] sm:$0xff] %vm1934, %v1889
        %2019 = vst.msk [vmem:[%s266 + $0x2a0] sm:$0xff] %vm1934, %v1890
        %2020 = vst.msk [vmem:[%s266 + $0x2a8] sm:$0xff] %vm1934, %v1891
        %2021 = vst.msk [vmem:[%s266 + $0x2b0] sm:$0xff] %vm1934, %v1892
        %2022 = vst.msk [vmem:[%s266 + $0x2b8] sm:$0xff] %vm1934, %v1893
        %2023 = vst.msk [vmem:[%s266 + $0x2c0] sm:$0xff] %vm1934, %v1894
        %2024 = vst.msk [vmem:[%s266 + $0x2c8] sm:$0xff] %vm1934, %v1895
        %2025 = vst.msk [vmem:[%s266 + $0x2d0] sm:$0xff] %vm1934, %v1896
        %2026 = vst.msk [vmem:[%s266 + $0x2d8] sm:$0xff] %vm1934, %v1897
        %2027 = vst.msk [vmem:[%s266 + $0x2e0] sm:$0xff] %vm1934, %v1898
        %2028 = vst.msk [vmem:[%s266 + $0x2e8] sm:$0xff] %vm1934, %v1899
        %2029 = vst.msk [vmem:[%s266 + $0x2f0] sm:$0xff] %vm1934, %v1900
        %2030 = vst.msk [vmem:[%s266 + $0x2f8] sm:$0xff] %vm1934, %v1901
        %2031 = vst.msk [vmem:[%s266 + $0x300] sm:$0xff] %vm1934, %v1902
        %2032 = vst.msk [vmem:[%s266 + $0x308] sm:$0xff] %vm1934, %v1903
        %2033 = vst.msk [vmem:[%s266 + $0x310] sm:$0xff] %vm1934, %v1904
        %2034 = vst.msk [vmem:[%s266 + $0x318] sm:$0xff] %vm1934, %v1905
        %2035 = vst.msk [vmem:[%s266 + $0x320] sm:$0xff] %vm1934, %v1906
        %2036 = vst.msk [vmem:[%s266 + $0x328] sm:$0xff] %vm1934, %v1907
        %2037 = vst.msk [vmem:[%s266 + $0x330] sm:$0xff] %vm1934, %v1908
        %2038 = vst.msk [vmem:[%s266 + $0x338] sm:$0xff] %vm1934, %v1909
        %2039 = vst.msk [vmem:[%s266 + $0x340] sm:$0xff] %vm1934, %v1910
        %2040 = vst.msk [vmem:[%s266 + $0x348] sm:$0xff] %vm1934, %v1911
        %2041 = vst.msk [vmem:[%s266 + $0x350] sm:$0xff] %vm1934, %v1912
        %2042 = vst.msk [vmem:[%s266 + $0x358] sm:$0xff] %vm1934, %v1913
        %2043 = vst.msk [vmem:[%s266 + $0x360] sm:$0xff] %vm1934, %v1914
        %2044 = vst.msk [vmem:[%s266 + $0x368] sm:$0xff] %vm1934, %v1915
        %2045 = vst.msk [vmem:[%s266 + $0x370] sm:$0xff] %vm1934, %v1916
        %2046 = vst.msk [vmem:[%s266 + $0x378] sm:$0xff] %vm1934, %v1917
        %2047 = vst.msk [vmem:[%s266 + $0x380] sm:$0xff] %vm1934, %v1918
        %2048 = vst.msk [vmem:[%s266 + $0x388] sm:$0xff] %vm1934, %v1919
        %2049 = vst.msk [vmem:[%s266 + $0x390] sm:$0xff] %vm1934, %v1920
        %2050 = vst.msk [vmem:[%s266 + $0x398] sm:$0xff] %vm1934, %v1921
        %2051 = vst.msk [vmem:[%s266 + $0x3a0] sm:$0xff] %vm1934, %v1922
        %2052 = vst.msk [vmem:[%s266 + $0x3a8] sm:$0xff] %vm1934, %v1923
        %2053 = vst.msk [vmem:[%s266 + $0x3b0] sm:$0xff] %vm1934, %v1924
        %2054 = vst.msk [vmem:[%s266 + $0x3b8] sm:$0xff] %vm1934, %v1925
        %2055 = vst.msk [vmem:[%s266 + $0x3c0] sm:$0xff] %vm1934, %v1926
        %2056 = vst.msk [vmem:[%s266 + $0x3c8] sm:$0xff] %vm1934, %v1927
        %2057 = vst.msk [vmem:[%s266 + $0x3d0] sm:$0xff] %vm1934, %v1928
        %2058 = vst.msk [vmem:[%s266 + $0x3d8] sm:$0xff] %vm1934, %v1929
        %2059 = vst.msk [vmem:[%s266 + $0x3e0] sm:$0xff] %vm1934, %v1930
        %2060 = vst.msk [vmem:[%s266 + $0x3e8] sm:$0xff] %vm1934, %v1931
        %2061 = vst.msk [vmem:[%s266 + $0x3f0] sm:$0xff] %vm1934, %v1932
        %2062 = vst.msk [vmem:[%s266 + $0x3f8] sm:$0xff] %vm1934, %v1933
        %s2063 = sand.u32 %s96, 1
        %s2064 = scalar_lea.sflag [#allocation3], %s2063
        %s2065 = sand.u32 %s96, 1
        %s2066 = smul.addr %s2065, 1024
        %s2067 = scalar_lea.vmem [#allocation2], %s2066
        %s2068 = smul.u32 32, %s23
        %p2069 = scmp.lt.s32.totalorder %s22, 1
        %s2070 = scalar_select %p2069, %s22, 1
        %p2071 = scmp.lt.s32.totalorder %s2068, 31
        %s2072 = scalar_select %p2071, %s2068, 31
        %s2073 = smul.addr %s2072, 4
        %s2074 = smul.addr %s2070, 128
        %s2075 = sadd.s32 %s2073, %s2074
        %s2076 = smul.addr %s2075, 8
        %s2077 = scalar_lea.vmem %s3, %s2076
        // Predicated region
        $region29: #{decoder_features_nhwc.9} parent=27 // pred_check
          %p2078 = pneg %p106
        $region30: #{decoder_features_nhwc.9} parent=27 // pred_check_branch
          %2080 = sbr.rel (%p2078) target = $region32
        $region31: #{decoder_features_nhwc.9} parent=27 // pred_region
          %s2081 = smul.u32 32, %s23
          %s2083 = ssub.s32 16384, 16384
          %2084 = vsyncadd %s2064, %s2083
          %s2085 = smul.addr %s2081, 4
          %s2086 = smul.addr %s22, 128
          %s2087 = sadd.s32 %s2085, %s2086
          %s2088 = smul.addr %s2087, 128
          %s2089 = scalar_lea.hbm %s2, %s2088
          %s2090 = sshll.u32 %s2067, 4
          %s2091 = int_to_ptr.vmem [resolvable:$true] %s2090
          %2096 = dma.vmem_to_hbm [thread:$0]  %s2091, 16384, %s2089, %s2064, 128, 128, 8
        $region32: #{decoder_features_nhwc.9} parent=27 // pred_fallthru
          _
        // Predicated region
        $region33: #{decoder_features_nhwc.9} parent=27 // pred_check
          %p2097 = pneg %p134
        $region34: #{decoder_features_nhwc.9} parent=27 // pred_check_branch
          %2099 = sbr.rel (%p2097) target = $region36
        $region35: #{decoder_features_nhwc.9} parent=27 // pred_region
          %s2100 = smul.u32 32, %s23
        $region36: #{decoder_features_nhwc.9} parent=27 // pred_fallthru
          _
      $region28: #{decoder_features_nhwc.9} parent=5 // pred_fallthru
        _
      %p2101 = scmp.le.s32.totalorder 2, %s13
      // Predicated region
      $region37: #{decoder_features_nhwc.9} parent=5 // pred_check
        %p2102 = pneg %p2101
      $region38: #{decoder_features_nhwc.9} parent=5 // pred_check_branch
        %2104 = sbr.rel (%p2102) target = $region40
      $region39: #{decoder_features_nhwc.9} parent=5 // pred_region
        %s2105 = ssub.s32 %s13, 2
        // Predicated region
        $region41: #{decoder_features_nhwc.9} parent=39 // pred_check
          %p2106 = pneg %p112
        $region42: #{decoder_features_nhwc.9} parent=39 // pred_check_branch
          %2108 = sbr.rel (%p2106) target = $region44
        $region43: #{decoder_features_nhwc.9} parent=39 // pred_region
          %s2109 = sand.u32 %s97, 1
          %s2110 = scalar_lea.sflag [#allocation3], %s2109
          %s2111 = sand.u32 %s97, 1
          %s2112 = smul.addr %s2111, 1024
          %s2113 = scalar_lea.vmem [#allocation2], %s2112
          %2114 = dma.done %s2110, 16384
        $region44: #{decoder_features_nhwc.9} parent=39 // pred_fallthru
          _
        // Predicated region
        $region45: #{decoder_features_nhwc.9} parent=39 // pred_check
          %p2115 = pneg %p140
        $region46: #{decoder_features_nhwc.9} parent=39 // pred_check_branch
          %2117 = sbr.rel (%p2115) target = $region48
        $region47: #{decoder_features_nhwc.9} parent=39 // pred_region
          %s2118 = smul.u32 32, %s25
          %p2119 = scmp.lt.s32.totalorder %s24, 1
          %s2120 = scalar_select %p2119, %s24, 1
          %p2121 = scmp.lt.s32.totalorder %s2118, 31
          %s2122 = scalar_select %p2121, %s2118, 31
          %s2123 = smul.addr %s2122, 4
          %s2124 = smul.addr %s2120, 128
          %s2125 = sadd.s32 %s2123, %s2124
          %s2126 = smul.addr %s2125, 8
          %s2127 = scalar_lea.vmem %s3, %s2126
        $region48: #{decoder_features_nhwc.9} parent=39 // pred_fallthru
          _
      $region40: #{decoder_features_nhwc.9} parent=5 // pred_fallthru
        _
    $region6: #{decoder_features_nhwc.9} parent=1 // loop_footer
      %s17 = sadd.s32 1, %s13
    $region7: #{decoder_features_nhwc.9} parent=1 // loop_footer_branch
      %12 = sbr.rel target = $region3
    $region8: #{decoder_features_nhwc.9} parent=1 // loop_exit
      _
    %2128 = vsyncpa [#allocation3], 1
    %s2129 = scalar_lea.sflag [#allocation3], 1
    %2130 = vsyncpa %s2129, 1

</llo_original>
